<compile_context>
chip_gen: v6e
topology: v6e:2x2x1
jax: 0.10.0
libtpu: 0.0.40
codegen_flags: <defaults>
</compile_context>

<pallas_src>
import jax
import jax.numpy as jnp
from jax.experimental import pallas as pl
from jax.experimental.pallas import tpu as pltpu

# ---- synthetic "bert-base" config at small, lane-friendly shapes -----------
D_MODEL    = 128     # hidden size (stands in for 768); multiple of 128 lanes
NUM_HEADS  = 4
HEAD_DIM   = D_MODEL // NUM_HEADS
D_FF       = 256     # intermediate size (stands in for 3072)
N_LAYERS   = 2       # stands in for 12
VOCAB      = 32
MAX_POS    = 16
TYPE_VOCAB = 2
H_CLS      = 128     # classifier hidden (stands in for H=50)
N_CLASSES  = 2
CLS_PAD    = 128     # lane-padded logits width (sliced to N_CLASSES outside)
LN_EPS     = 1e-12

B, S = 2, 8          # batch, sequence length
BS = B * S


def _layernorm(x, gamma, beta, eps=LN_EPS):
    mu = jnp.mean(x, axis=-1, keepdims=True)
    var = jnp.mean((x - mu) ** 2, axis=-1, keepdims=True)
    return (x - mu) * jax.lax.rsqrt(var + eps) * gamma + beta


# ---------------------------------------------------------------------------
# Fused kernel: embedding LN + N_LAYERS encoder layers + classifier head.
# grid=(N_LAYERS,) "arbitrary"; hidden state resident in VMEM scratch.
# ---------------------------------------------------------------------------
def bert_kernel(x_ref, amask_ref, emb_g_ref, emb_b_ref,
                wqkv_ref, bqkv_ref, wo_ref, bo_ref,
                ln1_g_ref, ln1_b_ref,
                w1_ref, b1_ref, w2_ref, b2_ref,
                ln2_g_ref, ln2_b_ref,
                cw1_ref, cb1_ref, cw2_ref, cb2_ref,
                logits_ref, h_scr):
    layer = pl.program_id(0)
    n_layers = pl.num_programs(0)

    # Embedding LayerNorm only on the first grid step; afterwards the hidden
    # state stays resident in the h_scr VMEM scratch buffer.
    @pl.when(layer == 0)
    def _():
        h_scr[...] = _layernorm(x_ref[...], emb_g_ref[...], emb_b_ref[...])
        logits_ref[...] = jnp.zeros_like(logits_ref)

    h = h_scr[...]                                    # (B*S, D) f32
    h_bf = h.astype(jnp.bfloat16)

    # ---- fused QKV projection: one bf16 MXU matmul, f32 accumulation ----
    qkv = jnp.dot(h_bf, wqkv_ref[...],
                  preferred_element_type=jnp.float32) + bqkv_ref[...]
    q = qkv[:, :D_MODEL] * (HEAD_DIM ** -0.5)         # scale Q once (not scores)
    k = qkv[:, D_MODEL:2 * D_MODEL]
    v = qkv[:, 2 * D_MODEL:]

    q3 = q.reshape(B, S, D_MODEL)
    k3 = k.reshape(B, S, D_MODEL)
    v3 = v.reshape(B, S, D_MODEL)

    # Hoist the additive-mask broadcast out of the head loop.
    am = jnp.broadcast_to(amask_ref[...], (B, S, S))   # (B,1,S) -> (B,S,S)

    ctx_heads = []
    for hd in range(NUM_HEADS):
        c0, c1 = hd * HEAD_DIM, (hd + 1) * HEAD_DIM
        qh = q3[:, :, c0:c1].astype(jnp.bfloat16)      # (B,S,HEAD_DIM)
        kh = k3[:, :, c0:c1].astype(jnp.bfloat16)
        vh = v3[:, :, c0:c1].astype(jnp.bfloat16)
        scores = jnp.einsum('bqd,bkd->bqk', qh, kh,
                            preferred_element_type=jnp.float32) + am
        m = jnp.max(scores, axis=-1, keepdims=True)
        p = jnp.exp(scores - m)
        p = p * pl.reciprocal(jnp.sum(p, axis=-1, keepdims=True), approx=True)
        ctx_heads.append(jnp.einsum('bqk,bkd->bqd', p.astype(jnp.bfloat16), vh,
                                    preferred_element_type=jnp.float32))
    # Context stays in vregs; no VMEM scratch, no masked column stores.
    ctx = jnp.concatenate(ctx_heads, axis=-1).reshape(BS, D_MODEL)

    attn = jnp.dot(ctx.astype(jnp.bfloat16), wo_ref[...],
                   preferred_element_type=jnp.float32) + bo_ref[...]
    h1 = _layernorm(h + attn, ln1_g_ref[...], ln1_b_ref[...])

    ff = jnp.dot(h1.astype(jnp.bfloat16), w1_ref[...],
                 preferred_element_type=jnp.float32) + b1_ref[...]
    ff = jax.nn.gelu(ff, approximate=True)             # tanh GELU (EUP)
    ff = jnp.dot(ff.astype(jnp.bfloat16), w2_ref[...],
                 preferred_element_type=jnp.float32) + b2_ref[...]

    h_new = _layernorm(h1 + ff, ln2_g_ref[...], ln2_b_ref[...])
    h_scr[...] = h_new

    # Classifier head fused into the last grid step: CLS rows -> Linear ->
    # ReLU -> Linear into the lane-padded logits output block.
    @pl.when(layer == n_layers - 1)
    def _():
        cls = h_new.reshape(B, S, D_MODEL)[:, 0, :]    # (B, D)
        hid = jnp.dot(cls.astype(jnp.bfloat16), cw1_ref[...],
                      preferred_element_type=jnp.float32) + cb1_ref[...]
        hid = jnp.maximum(hid, 0.0)
        logits_ref[...] = jnp.dot(hid.astype(jnp.bfloat16), cw2_ref[...],
                                  preferred_element_type=jnp.float32) + cb2_ref[...]


def bert_call(x2d, amask, emb_g, emb_b, lp, cw1, cb1, cw2, cb2):
    def fixed(shape):
        return pl.BlockSpec(shape, lambda i, _n=len(shape): (0,) * _n)

    def per_layer(shape):                        # shape excludes the layer dim
        return pl.BlockSpec((None,) + shape,
                            lambda i, _n=len(shape): (i,) + (0,) * _n)

    in_specs = [
        fixed((BS, D_MODEL)), fixed((B, 1, S)),
        fixed((1, D_MODEL)), fixed((1, D_MODEL)),
        per_layer((D_MODEL, 3 * D_MODEL)), per_layer((1, 3 * D_MODEL)),  # wqkv, bqkv
        per_layer((D_MODEL, D_MODEL)), per_layer((1, D_MODEL)),          # wo, bo
        per_layer((1, D_MODEL)), per_layer((1, D_MODEL)),                # ln1_g, ln1_b
        per_layer((D_MODEL, D_FF)), per_layer((1, D_FF)),                # w1, b1
        per_layer((D_FF, D_MODEL)), per_layer((1, D_MODEL)),             # w2, b2
        per_layer((1, D_MODEL)), per_layer((1, D_MODEL)),                # ln2_g, ln2_b
        fixed((D_MODEL, H_CLS)), fixed((1, H_CLS)),                      # cls_w1, cls_b1
        fixed((H_CLS, CLS_PAD)), fixed((1, CLS_PAD)),                    # cls_w2, cls_b2
    ]

    grid_spec = pltpu.PrefetchScalarGridSpec(
        num_scalar_prefetch=0,
        grid=(N_LAYERS,),
        in_specs=in_specs,
        out_specs=pl.BlockSpec((B, CLS_PAD), lambda i: (0, 0)),
        scratch_shapes=[pltpu.VMEM((BS, D_MODEL), jnp.float32)],
    )

    return pl.pallas_call(
        bert_kernel,
        out_shape=jax.ShapeDtypeStruct((B, CLS_PAD), jnp.float32),
        grid_spec=grid_spec,
        compiler_params=pltpu.CompilerParams(
            dimension_semantics=("arbitrary",)),
    )(x2d, amask, emb_g, emb_b,
      lp["wqkv"], lp["bqkv"], lp["wo"], lp["bo"],
      lp["ln1_g"], lp["ln1_b"],
      lp["w1"], lp["b1"], lp["w2"], lp["b2"],
      lp["ln2_g"], lp["ln2_b"],
      cw1, cb1, cw2, cb2)


# ---------------------------------------------------------------------------
# Parameters (deterministic, BERT-style init) and forward glue
# ---------------------------------------------------------------------------
def init_params(key):
    keys = iter(jax.random.split(key, 16))

    def w(shape, dtype=jnp.bfloat16):
        return (0.02 * jax.random.normal(next(keys), shape, jnp.float32)).astype(dtype)

    def zeros(shape):
        return jnp.zeros(shape, jnp.float32)

    def ones(shape):
        return jnp.ones(shape, jnp.float32)

    L = N_LAYERS
    layers = dict(
        wqkv=w((L, D_MODEL, 3 * D_MODEL)), bqkv=zeros((L, 1, 3 * D_MODEL)),
        wo=w((L, D_MODEL, D_MODEL)), bo=zeros((L, 1, D_MODEL)),
        ln1_g=ones((L, 1, D_MODEL)), ln1_b=zeros((L, 1, D_MODEL)),
        w1=w((L, D_MODEL, D_FF)), b1=zeros((L, 1, D_FF)),
        w2=w((L, D_FF, D_MODEL)), b2=zeros((L, 1, D_MODEL)),
        ln2_g=ones((L, 1, D_MODEL)), ln2_b=zeros((L, 1, D_MODEL)),
    )

    # classifier final weight lane-padded to CLS_PAD columns (zeros elsewhere)
    cls_w2_real = w((H_CLS, N_CLASSES))
    cls_w2 = jnp.zeros((H_CLS, CLS_PAD), jnp.bfloat16).at[:, :N_CLASSES].set(cls_w2_real)

    return dict(
        word_emb=w((VOCAB, D_MODEL), jnp.float32),
        pos_emb=w((MAX_POS, D_MODEL), jnp.float32),
        type_emb=w((TYPE_VOCAB, D_MODEL), jnp.float32),
        emb_ln_g=ones((1, D_MODEL)), emb_ln_b=zeros((1, D_MODEL)),
        layers=layers,
        cls_w1=w((D_MODEL, H_CLS)), cls_b1=zeros((1, H_CLS)),
        cls_w2=cls_w2, cls_b2=zeros((1, CLS_PAD)),
    )


def bert_forward(params, ids, mask, token_type_ids):
    Bq, Sq = ids.shape
    # --- embeddings (gathers are XLA glue; LayerNorm runs inside the fused
    # kernel's first grid step) ---
    we = params["word_emb"][ids]                         # (B,S,D)
    pe = params["pos_emb"][jnp.arange(Sq)]               # (S,D)
    te = params["type_emb"][token_type_ids]              # (B,S,D)
    emb2d = (we + pe[None, :, :] + te).astype(jnp.float32).reshape(Bq * Sq, D_MODEL)

    # additive attention mask over key positions: 0 keep, -10000 pad  (B,1,S)
    amask = ((1.0 - mask.astype(jnp.float32)) * -10000.0).reshape(Bq, 1, Sq)

    logits_pad = bert_call(emb2d, amask, params["emb_ln_g"], params["emb_ln_b"],
                           params["layers"],
                           params["cls_w1"], params["cls_b1"],
                           params["cls_w2"], params["cls_b2"])
    return logits_pad[:, :N_CLASSES]                     # wrapper-side slice


if __name__ == "__main__":
    root = jax.random.PRNGKey(0)
    k_params, k_ids = jax.random.split(root)

    params = init_params(k_params)

    ids = jax.random.randint(k_ids, (B, S), 0, VOCAB, dtype=jnp.int32)
    mask = jnp.ones((B, S), jnp.int32).at[1, S - 2:].set(0)        # some padding
    token_type_ids = jnp.zeros((B, S), jnp.int32).at[:, S // 2:].set(1)

    logits = bert_forward(params, ids, mask, token_type_ids)
    jax.block_until_ready(logits)
    assert logits.shape == (B, N_CLASSES) and logits.dtype == jnp.float32
    print("KERNEL_OK")
</pallas_src>

<mosaic_0001>
module attributes {stable_mosaic.version = 11 : i64} {
  func.func @bert_kernel(%arg0: i32, %arg1: memref<16x128xf32, #tpu.memory_space<vmem>>, %arg2: memref<2x1x8xf32, #tpu.memory_space<vmem>>, %arg3: memref<1x128xf32, #tpu.memory_space<vmem>>, %arg4: memref<1x128xf32, #tpu.memory_space<vmem>>, %arg5: memref<1x128x384xbf16, #tpu.memory_space<vmem>>, %arg6: memref<1x1x384xf32, #tpu.memory_space<vmem>>, %arg7: memref<1x128x128xbf16, #tpu.memory_space<vmem>>, %arg8: memref<1x1x128xf32, #tpu.memory_space<vmem>>, %arg9: memref<1x1x128xf32, #tpu.memory_space<vmem>>, %arg10: memref<1x1x128xf32, #tpu.memory_space<vmem>>, %arg11: memref<1x128x256xbf16, #tpu.memory_space<vmem>>, %arg12: memref<1x1x256xf32, #tpu.memory_space<vmem>>, %arg13: memref<1x256x128xbf16, #tpu.memory_space<vmem>>, %arg14: memref<1x1x128xf32, #tpu.memory_space<vmem>>, %arg15: memref<1x1x128xf32, #tpu.memory_space<vmem>>, %arg16: memref<1x1x128xf32, #tpu.memory_space<vmem>>, %arg17: memref<128x128xbf16, #tpu.memory_space<vmem>>, %arg18: memref<1x128xf32, #tpu.memory_space<vmem>>, %arg19: memref<128x128xbf16, #tpu.memory_space<vmem>>, %arg20: memref<1x128xf32, #tpu.memory_space<vmem>>, %arg21: memref<2x128xf32, #tpu.memory_space<vmem>>, %arg22: memref<16x128xf32, #tpu.memory_space<vmem>>) attributes {dimension_semantics = [#tpu.dimension_semantics<arbitrary>], iteration_bounds = array<i64: 2>, scalar_prefetch = 0 : i64, scratch_operands = 1 : i64, tpu.core_type = #tpu.core_type<tc>, window_params = [{pipeline_mode = #tpu.pipeline_mode<synchronous>, transform_indices = @transform_0, window_bounds = array<i64: 16, 128>}, {pipeline_mode = #tpu.pipeline_mode<synchronous>, transform_indices = @transform_1, window_bounds = array<i64: 2, 1, 8>}, {pipeline_mode = #tpu.pipeline_mode<synchronous>, transform_indices = @transform_2, window_bounds = array<i64: 1, 128>}, {pipeline_mode = #tpu.pipeline_mode<synchronous>, transform_indices = @transform_3, window_bounds = array<i64: 1, 128>}, {transform_indices = @transform_4, window_bounds = array<i64: 1, 128, 384>}, {transform_indices = @transform_5, window_bounds = array<i64: 1, 1, 384>}, {transform_indices = @transform_6, window_bounds = array<i64: 1, 128, 128>}, {transform_indices = @transform_7, window_bounds = array<i64: 1, 1, 128>}, {transform_indices = @transform_8, window_bounds = array<i64: 1, 1, 128>}, {transform_indices = @transform_9, window_bounds = array<i64: 1, 1, 128>}, {transform_indices = @transform_10, window_bounds = array<i64: 1, 128, 256>}, {transform_indices = @transform_11, window_bounds = array<i64: 1, 1, 256>}, {transform_indices = @transform_12, window_bounds = array<i64: 1, 256, 128>}, {transform_indices = @transform_13, window_bounds = array<i64: 1, 1, 128>}, {transform_indices = @transform_14, window_bounds = array<i64: 1, 1, 128>}, {transform_indices = @transform_15, window_bounds = array<i64: 1, 1, 128>}, {pipeline_mode = #tpu.pipeline_mode<synchronous>, transform_indices = @transform_16, window_bounds = array<i64: 128, 128>}, {pipeline_mode = #tpu.pipeline_mode<synchronous>, transform_indices = @transform_17, window_bounds = array<i64: 1, 128>}, {pipeline_mode = #tpu.pipeline_mode<synchronous>, transform_indices = @transform_18, window_bounds = array<i64: 128, 128>}, {pipeline_mode = #tpu.pipeline_mode<synchronous>, transform_indices = @transform_19, window_bounds = array<i64: 1, 128>}, {pipeline_mode = #tpu.pipeline_mode<synchronous>, transform_indices = @transform_20, window_bounds = array<i64: 2, 128>}]} {
    %c0_i32 = arith.constant 0 : i32
    %0 = arith.cmpi eq, %arg0, %c0_i32 : i32
    %1 = arith.extui %0 : i1 to i32
    %c0_i32_0 = arith.constant 0 : i32
    %2 = arith.cmpi ne, %1, %c0_i32_0 : i32
    scf.if %2 {
      %c0_78 = arith.constant 0 : index
      %c0_79 = arith.constant 0 : index
      %200 = vector.load %arg1[%c0_78, %c0_79] : memref<16x128xf32, #tpu.memory_space<vmem>>, vector<16x128xf32>
      %c0_80 = arith.constant 0 : index
      %c0_81 = arith.constant 0 : index
      %201 = vector.load %arg3[%c0_80, %c0_81] : memref<1x128xf32, #tpu.memory_space<vmem>>, vector<1x128xf32>
      %c0_82 = arith.constant 0 : index
      %c0_83 = arith.constant 0 : index
      %202 = vector.load %arg4[%c0_82, %c0_83] : memref<1x128xf32, #tpu.memory_space<vmem>>, vector<1x128xf32>
      %cst_84 = arith.constant dense<0.000000e+00> : vector<16xf32>
      %203 = vector.multi_reduction <add>, %200, %cst_84 [1] : vector<16x128xf32> to vector<16xf32>
      %204 = vector.shape_cast %203 : vector<16xf32> to vector<16x1xf32>
      %cst_85 = arith.constant 1.280000e+02 : f32
      %205 = vector.broadcast %cst_85 : f32 to vector<16x1xf32>
      %206 = arith.divf %204, %205 : vector<16x1xf32>
      %207 = vector.broadcast %206 : vector<16x1xf32> to vector<16x128xf32>
      %208 = arith.subf %200, %207 : vector<16x128xf32>
      %209 = arith.mulf %208, %208 : vector<16x128xf32>
      %cst_86 = arith.constant dense<0.000000e+00> : vector<16xf32>
      %210 = vector.multi_reduction <add>, %209, %cst_86 [1] : vector<16x128xf32> to vector<16xf32>
      %211 = vector.shape_cast %210 : vector<16xf32> to vector<16x1xf32>
      %cst_87 = arith.constant 1.280000e+02 : f32
      %212 = vector.broadcast %cst_87 : f32 to vector<16x1xf32>
      %213 = arith.divf %211, %212 : vector<16x1xf32>
      %214 = vector.broadcast %206 : vector<16x1xf32> to vector<16x128xf32>
      %215 = arith.subf %200, %214 : vector<16x128xf32>
      %cst_88 = arith.constant 9.99999996E-13 : f32
      %216 = vector.broadcast %cst_88 : f32 to vector<16x1xf32>
      %217 = arith.addf %213, %216 : vector<16x1xf32>
      %218 = math.rsqrt %217 : vector<16x1xf32>
      %219 = vector.broadcast %218 : vector<16x1xf32> to vector<16x128xf32>
      %220 = arith.mulf %215, %219 : vector<16x128xf32>
      %221 = vector.broadcast %201 : vector<1x128xf32> to vector<16x128xf32>
      %222 = arith.mulf %220, %221 : vector<16x128xf32>
      %223 = vector.broadcast %202 : vector<1x128xf32> to vector<16x128xf32>
      %224 = arith.addf %222, %223 : vector<16x128xf32>
      %c0_89 = arith.constant 0 : index
      %c0_90 = arith.constant 0 : index
      %225 = vector.load %arg22[%c0_89, %c0_90] : memref<16x128xf32, #tpu.memory_space<vmem>>, vector<16x128xf32>
      tpu.vector_store %arg22[%c0_89, %c0_90], %224 {strides = array<i32>} : memref<16x128xf32, #tpu.memory_space<vmem>>, vector<16x128xf32>,
      %cst_91 = arith.constant 0.000000e+00 : f32
      %226 = vector.broadcast %cst_91 : f32 to vector<2x128xf32>
      %c0_92 = arith.constant 0 : index
      %c0_93 = arith.constant 0 : index
      %227 = vector.load %arg21[%c0_92, %c0_93] : memref<2x128xf32, #tpu.memory_space<vmem>>, vector<2x128xf32>
      tpu.vector_store %arg21[%c0_92, %c0_93], %226 {strides = array<i32>} : memref<2x128xf32, #tpu.memory_space<vmem>>, vector<2x128xf32>,
    } else {
    }
    %c0 = arith.constant 0 : index
    %c0_1 = arith.constant 0 : index
    %3 = vector.load %arg22[%c0, %c0_1] : memref<16x128xf32, #tpu.memory_space<vmem>>, vector<16x128xf32>
    %4 = arith.truncf %3 : vector<16x128xf32> to vector<16x128xbf16>
    %c0_2 = arith.constant 0 : index
    %c0_3 = arith.constant 0 : index
    %c0_4 = arith.constant 0 : index
    %5 = vector.load %arg5[%c0_2, %c0_3, %c0_4] : memref<1x128x384xbf16, #tpu.memory_space<vmem>>, vector<1x128x384xbf16>
    %6 = vector.shape_cast %5 : vector<1x128x384xbf16> to vector<128x384xbf16>
    %cst = arith.constant dense<0.000000e+00> : vector<16x384xf32>
    %7 = tpu.matmul %4, %6, %cst {dimension_numbers = #tpu.dot_dimension_numbers<[1], [0], [0], [1], [0, 0, 1, 1], [], []>} : vector<16x128xbf16>, vector<128x384xbf16>, vector<16x384xf32> -> vector<16x384xf32>
    %c0_5 = arith.constant 0 : index
    %c0_6 = arith.constant 0 : index
    %c0_7 = arith.constant 0 : index
    %8 = vector.load %arg6[%c0_5, %c0_6, %c0_7] : memref<1x1x384xf32, #tpu.memory_space<vmem>>, vector<1x1x384xf32>
    %9 = vector.shape_cast %8 : vector<1x1x384xf32> to vector<1x384xf32>
    %10 = vector.broadcast %9 : vector<1x384xf32> to vector<16x384xf32>
    %11 = arith.addf %7, %10 : vector<16x384xf32>
    %12 = vector.extract_strided_slice %11 {offsets = [0, 0], sizes = [16, 128], strides = [1, 1]} : vector<16x384xf32> to vector<16x128xf32>
    %cst_8 = arith.constant 0.176776692 : f32
    %13 = vector.broadcast %cst_8 : f32 to vector<16x128xf32>
    %14 = arith.mulf %12, %13 : vector<16x128xf32>
    %15 = vector.extract_strided_slice %11 {offsets = [0, 128], sizes = [16, 128], strides = [1, 1]} : vector<16x384xf32> to vector<16x128xf32>
    %16 = vector.extract_strided_slice %11 {offsets = [0, 256], sizes = [16, 128], strides = [1, 1]} : vector<16x384xf32> to vector<16x128xf32>
    %17 = vector.shape_cast %14 : vector<16x128xf32> to vector<2x8x128xf32>
    %18 = vector.shape_cast %15 : vector<16x128xf32> to vector<2x8x128xf32>
    %19 = vector.shape_cast %16 : vector<16x128xf32> to vector<2x8x128xf32>
    %c0_9 = arith.constant 0 : index
    %c0_10 = arith.constant 0 : index
    %c0_11 = arith.constant 0 : index
    %20 = vector.load %arg2[%c0_9, %c0_10, %c0_11] : memref<2x1x8xf32, #tpu.memory_space<vmem>>, vector<2x1x8xf32>
    %21 = vector.shape_cast %20 : vector<2x1x8xf32> to vector<2x1x8xf32>
    %22 = vector.broadcast %21 : vector<2x1x8xf32> to vector<2x8x8xf32>
    %23 = vector.extract_strided_slice %17 {offsets = [0, 0, 0], sizes = [2, 8, 32], strides = [1, 1, 1]} : vector<2x8x128xf32> to vector<2x8x32xf32>
    %24 = arith.truncf %23 : vector<2x8x32xf32> to vector<2x8x32xbf16>
    %25 = vector.extract_strided_slice %18 {offsets = [0, 0, 0], sizes = [2, 8, 32], strides = [1, 1, 1]} : vector<2x8x128xf32> to vector<2x8x32xf32>
    %26 = arith.truncf %25 : vector<2x8x32xf32> to vector<2x8x32xbf16>
    %27 = vector.extract_strided_slice %19 {offsets = [0, 0, 0], sizes = [2, 8, 32], strides = [1, 1, 1]} : vector<2x8x128xf32> to vector<2x8x32xf32>
    %28 = arith.truncf %27 : vector<2x8x32xf32> to vector<2x8x32xbf16>
    "tpu.trace_start"() <{level = 10 : i32, message = "bqd,bkd->bqk"}> : () -> ()
    %cst_12 = arith.constant dense<0.000000e+00> : vector<2x8x8xf32>
    %29 = tpu.matmul %24, %26, %cst_12 {dimension_numbers = #tpu.dot_dimension_numbers<[2], [2], [1], [1], [0, 0, 0, 1, 1, 1], [0], [0]>} : vector<2x8x32xbf16>, vector<2x8x32xbf16>, vector<2x8x8xf32> -> vector<2x8x8xf32>
    "tpu.trace_stop"() : () -> ()
    %30 = arith.addf %29, %22 : vector<2x8x8xf32>
    %cst_13 = arith.constant dense<0xFF800000> : vector<2x8xf32>
    %31 = vector.multi_reduction <maximumf>, %30, %cst_13 [2] : vector<2x8x8xf32> to vector<2x8xf32>
    %32 = vector.shape_cast %31 : vector<2x8xf32> to vector<2x8x1xf32>
    %33 = vector.broadcast %32 : vector<2x8x1xf32> to vector<2x8x8xf32>
    %34 = arith.subf %30, %33 : vector<2x8x8xf32>
    %35 = math.exp %34 : vector<2x8x8xf32>
    %cst_14 = arith.constant dense<0.000000e+00> : vector<2x8xf32>
    %36 = vector.multi_reduction <add>, %35, %cst_14 [2] : vector<2x8x8xf32> to vector<2x8xf32>
    %37 = vector.shape_cast %36 : vector<2x8xf32> to vector<2x8x1xf32>
    %38 = tpu.reciprocal %37 {approx = true} : vector<2x8x1xf32> -> vector<2x8x1xf32>
    %39 = vector.broadcast %38 : vector<2x8x1xf32> to vector<2x8x8xf32>
    %40 = arith.mulf %35, %39 : vector<2x8x8xf32>
    %41 = arith.truncf %40 : vector<2x8x8xf32> to vector<2x8x8xbf16>
    "tpu.trace_start"() <{level = 10 : i32, message = "bqk,bkd->bqd"}> : () -> ()
    %cst_15 = arith.constant dense<0.000000e+00> : vector<2x8x32xf32>
    %42 = tpu.matmul %41, %28, %cst_15 {dimension_numbers = #tpu.dot_dimension_numbers<[2], [1], [1], [2], [0, 0, 0, 1, 1, 2], [0], [0]>} : vector<2x8x8xbf16>, vector<2x8x32xbf16>, vector<2x8x32xf32> -> vector<2x8x32xf32>
    "tpu.trace_stop"() : () -> ()
    %43 = vector.extract_strided_slice %17 {offsets = [0, 0, 32], sizes = [2, 8, 32], strides = [1, 1, 1]} : vector<2x8x128xf32> to vector<2x8x32xf32>
    %44 = arith.truncf %43 : vector<2x8x32xf32> to vector<2x8x32xbf16>
    %45 = vector.extract_strided_slice %18 {offsets = [0, 0, 32], sizes = [2, 8, 32], strides = [1, 1, 1]} : vector<2x8x128xf32> to vector<2x8x32xf32>
    %46 = arith.truncf %45 : vector<2x8x32xf32> to vector<2x8x32xbf16>
    %47 = vector.extract_strided_slice %19 {offsets = [0, 0, 32], sizes = [2, 8, 32], strides = [1, 1, 1]} : vector<2x8x128xf32> to vector<2x8x32xf32>
    %48 = arith.truncf %47 : vector<2x8x32xf32> to vector<2x8x32xbf16>
    "tpu.trace_start"() <{level = 10 : i32, message = "bqd,bkd->bqk"}> : () -> ()
    %cst_16 = arith.constant dense<0.000000e+00> : vector<2x8x8xf32>
    %49 = tpu.matmul %44, %46, %cst_16 {dimension_numbers = #tpu.dot_dimension_numbers<[2], [2], [1], [1], [0, 0, 0, 1, 1, 1], [0], [0]>} : vector<2x8x32xbf16>, vector<2x8x32xbf16>, vector<2x8x8xf32> -> vector<2x8x8xf32>
    "tpu.trace_stop"() : () -> ()
    %50 = arith.addf %49, %22 : vector<2x8x8xf32>
    %cst_17 = arith.constant dense<0xFF800000> : vector<2x8xf32>
    %51 = vector.multi_reduction <maximumf>, %50, %cst_17 [2] : vector<2x8x8xf32> to vector<2x8xf32>
    %52 = vector.shape_cast %51 : vector<2x8xf32> to vector<2x8x1xf32>
    %53 = vector.broadcast %52 : vector<2x8x1xf32> to vector<2x8x8xf32>
    %54 = arith.subf %50, %53 : vector<2x8x8xf32>
    %55 = math.exp %54 : vector<2x8x8xf32>
    %cst_18 = arith.constant dense<0.000000e+00> : vector<2x8xf32>
    %56 = vector.multi_reduction <add>, %55, %cst_18 [2] : vector<2x8x8xf32> to vector<2x8xf32>
    %57 = vector.shape_cast %56 : vector<2x8xf32> to vector<2x8x1xf32>
    %58 = tpu.reciprocal %57 {approx = true} : vector<2x8x1xf32> -> vector<2x8x1xf32>
    %59 = vector.broadcast %58 : vector<2x8x1xf32> to vector<2x8x8xf32>
    %60 = arith.mulf %55, %59 : vector<2x8x8xf32>
    %61 = arith.truncf %60 : vector<2x8x8xf32> to vector<2x8x8xbf16>
    "tpu.trace_start"() <{level = 10 : i32, message = "bqk,bkd->bqd"}> : () -> ()
    %cst_19 = arith.constant dense<0.000000e+00> : vector<2x8x32xf32>
    %62 = tpu.matmul %61, %48, %cst_19 {dimension_numbers = #tpu.dot_dimension_numbers<[2], [1], [1], [2], [0, 0, 0, 1, 1, 2], [0], [0]>} : vector<2x8x8xbf16>, vector<2x8x32xbf16>, vector<2x8x32xf32> -> vector<2x8x32xf32>
    "tpu.trace_stop"() : () -> ()
    %63 = vector.extract_strided_slice %17 {offsets = [0, 0, 64], sizes = [2, 8, 32], strides = [1, 1, 1]} : vector<2x8x128xf32> to vector<2x8x32xf32>
    %64 = arith.truncf %63 : vector<2x8x32xf32> to vector<2x8x32xbf16>
    %65 = vector.extract_strided_slice %18 {offsets = [0, 0, 64], sizes = [2, 8, 32], strides = [1, 1, 1]} : vector<2x8x128xf32> to vector<2x8x32xf32>
    %66 = arith.truncf %65 : vector<2x8x32xf32> to vector<2x8x32xbf16>
    %67 = vector.extract_strided_slice %19 {offsets = [0, 0, 64], sizes = [2, 8, 32], strides = [1, 1, 1]} : vector<2x8x128xf32> to vector<2x8x32xf32>
    %68 = arith.truncf %67 : vector<2x8x32xf32> to vector<2x8x32xbf16>
    "tpu.trace_start"() <{level = 10 : i32, message = "bqd,bkd->bqk"}> : () -> ()
    %cst_20 = arith.constant dense<0.000000e+00> : vector<2x8x8xf32>
    %69 = tpu.matmul %64, %66, %cst_20 {dimension_numbers = #tpu.dot_dimension_numbers<[2], [2], [1], [1], [0, 0, 0, 1, 1, 1], [0], [0]>} : vector<2x8x32xbf16>, vector<2x8x32xbf16>, vector<2x8x8xf32> -> vector<2x8x8xf32>
    "tpu.trace_stop"() : () -> ()
    %70 = arith.addf %69, %22 : vector<2x8x8xf32>
    %cst_21 = arith.constant dense<0xFF800000> : vector<2x8xf32>
    %71 = vector.multi_reduction <maximumf>, %70, %cst_21 [2] : vector<2x8x8xf32> to vector<2x8xf32>
    %72 = vector.shape_cast %71 : vector<2x8xf32> to vector<2x8x1xf32>
    %73 = vector.broadcast %72 : vector<2x8x1xf32> to vector<2x8x8xf32>
    %74 = arith.subf %70, %73 : vector<2x8x8xf32>
    %75 = math.exp %74 : vector<2x8x8xf32>
    %cst_22 = arith.constant dense<0.000000e+00> : vector<2x8xf32>
    %76 = vector.multi_reduction <add>, %75, %cst_22 [2] : vector<2x8x8xf32> to vector<2x8xf32>
    %77 = vector.shape_cast %76 : vector<2x8xf32> to vector<2x8x1xf32>
    %78 = tpu.reciprocal %77 {approx = true} : vector<2x8x1xf32> -> vector<2x8x1xf32>
    %79 = vector.broadcast %78 : vector<2x8x1xf32> to vector<2x8x8xf32>
    %80 = arith.mulf %75, %79 : vector<2x8x8xf32>
    %81 = arith.truncf %80 : vector<2x8x8xf32> to vector<2x8x8xbf16>
    "tpu.trace_start"() <{level = 10 : i32, message = "bqk,bkd->bqd"}> : () -> ()
    %cst_23 = arith.constant dense<0.000000e+00> : vector<2x8x32xf32>
    %82 = tpu.matmul %81, %68, %cst_23 {dimension_numbers = #tpu.dot_dimension_numbers<[2], [1], [1], [2], [0, 0, 0, 1, 1, 2], [0], [0]>} : vector<2x8x8xbf16>, vector<2x8x32xbf16>, vector<2x8x32xf32> -> vector<2x8x32xf32>
    "tpu.trace_stop"() : () -> ()
    %83 = vector.extract_strided_slice %17 {offsets = [0, 0, 96], sizes = [2, 8, 32], strides = [1, 1, 1]} : vector<2x8x128xf32> to vector<2x8x32xf32>
    %84 = arith.truncf %83 : vector<2x8x32xf32> to vector<2x8x32xbf16>
    %85 = vector.extract_strided_slice %18 {offsets = [0, 0, 96], sizes = [2, 8, 32], strides = [1, 1, 1]} : vector<2x8x128xf32> to vector<2x8x32xf32>
    %86 = arith.truncf %85 : vector<2x8x32xf32> to vector<2x8x32xbf16>
    %87 = vector.extract_strided_slice %19 {offsets = [0, 0, 96], sizes = [2, 8, 32], strides = [1, 1, 1]} : vector<2x8x128xf32> to vector<2x8x32xf32>
    %88 = arith.truncf %87 : vector<2x8x32xf32> to vector<2x8x32xbf16>
    "tpu.trace_start"() <{level = 10 : i32, message = "bqd,bkd->bqk"}> : () -> ()
    %cst_24 = arith.constant dense<0.000000e+00> : vector<2x8x8xf32>
    %89 = tpu.matmul %84, %86, %cst_24 {dimension_numbers = #tpu.dot_dimension_numbers<[2], [2], [1], [1], [0, 0, 0, 1, 1, 1], [0], [0]>} : vector<2x8x32xbf16>, vector<2x8x32xbf16>, vector<2x8x8xf32> -> vector<2x8x8xf32>
    "tpu.trace_stop"() : () -> ()
    %90 = arith.addf %89, %22 : vector<2x8x8xf32>
    %cst_25 = arith.constant dense<0xFF800000> : vector<2x8xf32>
    %91 = vector.multi_reduction <maximumf>, %90, %cst_25 [2] : vector<2x8x8xf32> to vector<2x8xf32>
    %92 = vector.shape_cast %91 : vector<2x8xf32> to vector<2x8x1xf32>
    %93 = vector.broadcast %92 : vector<2x8x1xf32> to vector<2x8x8xf32>
    %94 = arith.subf %90, %93 : vector<2x8x8xf32>
    %95 = math.exp %94 : vector<2x8x8xf32>
    %cst_26 = arith.constant dense<0.000000e+00> : vector<2x8xf32>
    %96 = vector.multi_reduction <add>, %95, %cst_26 [2] : vector<2x8x8xf32> to vector<2x8xf32>
    %97 = vector.shape_cast %96 : vector<2x8xf32> to vector<2x8x1xf32>
    %98 = tpu.reciprocal %97 {approx = true} : vector<2x8x1xf32> -> vector<2x8x1xf32>
    %99 = vector.broadcast %98 : vector<2x8x1xf32> to vector<2x8x8xf32>
    %100 = arith.mulf %95, %99 : vector<2x8x8xf32>
    %101 = arith.truncf %100 : vector<2x8x8xf32> to vector<2x8x8xbf16>
    "tpu.trace_start"() <{level = 10 : i32, message = "bqk,bkd->bqd"}> : () -> ()
    %cst_27 = arith.constant dense<0.000000e+00> : vector<2x8x32xf32>
    %102 = tpu.matmul %101, %88, %cst_27 {dimension_numbers = #tpu.dot_dimension_numbers<[2], [1], [1], [2], [0, 0, 0, 1, 1, 2], [0], [0]>} : vector<2x8x8xbf16>, vector<2x8x32xbf16>, vector<2x8x32xf32> -> vector<2x8x32xf32>
    "tpu.trace_stop"() : () -> ()
    %103 = tpu.concatenate %42, %62, %82, %102 in 2 : vector<2x8x32xf32>, vector<2x8x32xf32>, vector<2x8x32xf32>, vector<2x8x32xf32> -> vector<2x8x128xf32>
    %104 = vector.shape_cast %103 : vector<2x8x128xf32> to vector<16x128xf32>
    %105 = arith.truncf %104 : vector<16x128xf32> to vector<16x128xbf16>
    %c0_28 = arith.constant 0 : index
    %c0_29 = arith.constant 0 : index
    %c0_30 = arith.constant 0 : index
    %106 = vector.load %arg7[%c0_28, %c0_29, %c0_30] : memref<1x128x128xbf16, #tpu.memory_space<vmem>>, vector<1x128x128xbf16>
    %107 = vector.shape_cast %106 : vector<1x128x128xbf16> to vector<128x128xbf16>
    %cst_31 = arith.constant dense<0.000000e+00> : vector<16x128xf32>
    %108 = tpu.matmul %105, %107, %cst_31 {dimension_numbers = #tpu.dot_dimension_numbers<[1], [0], [0], [1], [0, 0, 1, 1], [], []>} : vector<16x128xbf16>, vector<128x128xbf16>, vector<16x128xf32> -> vector<16x128xf32>
    %c0_32 = arith.constant 0 : index
    %c0_33 = arith.constant 0 : index
    %c0_34 = arith.constant 0 : index
    %109 = vector.load %arg8[%c0_32, %c0_33, %c0_34] : memref<1x1x128xf32, #tpu.memory_space<vmem>>, vector<1x1x128xf32>
    %110 = vector.shape_cast %109 : vector<1x1x128xf32> to vector<1x128xf32>
    %111 = vector.broadcast %110 : vector<1x128xf32> to vector<16x128xf32>
    %112 = arith.addf %108, %111 : vector<16x128xf32>
    %113 = arith.addf %3, %112 : vector<16x128xf32>
    %c0_35 = arith.constant 0 : index
    %c0_36 = arith.constant 0 : index
    %c0_37 = arith.constant 0 : index
    %114 = vector.load %arg9[%c0_35, %c0_36, %c0_37] : memref<1x1x128xf32, #tpu.memory_space<vmem>>, vector<1x1x128xf32>
    %115 = vector.shape_cast %114 : vector<1x1x128xf32> to vector<1x128xf32>
    %c0_38 = arith.constant 0 : index
    %c0_39 = arith.constant 0 : index
    %c0_40 = arith.constant 0 : index
    %116 = vector.load %arg10[%c0_38, %c0_39, %c0_40] : memref<1x1x128xf32, #tpu.memory_space<vmem>>, vector<1x1x128xf32>
    %117 = vector.shape_cast %116 : vector<1x1x128xf32> to vector<1x128xf32>
    %cst_41 = arith.constant dense<0.000000e+00> : vector<16xf32>
    %118 = vector.multi_reduction <add>, %113, %cst_41 [1] : vector<16x128xf32> to vector<16xf32>
    %119 = vector.shape_cast %118 : vector<16xf32> to vector<16x1xf32>
    %cst_42 = arith.constant 1.280000e+02 : f32
    %120 = vector.broadcast %cst_42 : f32 to vector<16x1xf32>
    %121 = arith.divf %119, %120 : vector<16x1xf32>
    %122 = vector.broadcast %121 : vector<16x1xf32> to vector<16x128xf32>
    %123 = arith.subf %113, %122 : vector<16x128xf32>
    %124 = arith.mulf %123, %123 : vector<16x128xf32>
    %cst_43 = arith.constant dense<0.000000e+00> : vector<16xf32>
    %125 = vector.multi_reduction <add>, %124, %cst_43 [1] : vector<16x128xf32> to vector<16xf32>
    %126 = vector.shape_cast %125 : vector<16xf32> to vector<16x1xf32>
    %cst_44 = arith.constant 1.280000e+02 : f32
    %127 = vector.broadcast %cst_44 : f32 to vector<16x1xf32>
    %128 = arith.divf %126, %127 : vector<16x1xf32>
    %129 = vector.broadcast %121 : vector<16x1xf32> to vector<16x128xf32>
    %130 = arith.subf %113, %129 : vector<16x128xf32>
    %cst_45 = arith.constant 9.99999996E-13 : f32
    %131 = vector.broadcast %cst_45 : f32 to vector<16x1xf32>
    %132 = arith.addf %128, %131 : vector<16x1xf32>
    %133 = math.rsqrt %132 : vector<16x1xf32>
    %134 = vector.broadcast %133 : vector<16x1xf32> to vector<16x128xf32>
    %135 = arith.mulf %130, %134 : vector<16x128xf32>
    %136 = vector.broadcast %115 : vector<1x128xf32> to vector<16x128xf32>
    %137 = arith.mulf %135, %136 : vector<16x128xf32>
    %138 = vector.broadcast %117 : vector<1x128xf32> to vector<16x128xf32>
    %139 = arith.addf %137, %138 : vector<16x128xf32>
    %140 = arith.truncf %139 : vector<16x128xf32> to vector<16x128xbf16>
    %c0_46 = arith.constant 0 : index
    %c0_47 = arith.constant 0 : index
    %c0_48 = arith.constant 0 : index
    %141 = vector.load %arg11[%c0_46, %c0_47, %c0_48] : memref<1x128x256xbf16, #tpu.memory_space<vmem>>, vector<1x128x256xbf16>
    %142 = vector.shape_cast %141 : vector<1x128x256xbf16> to vector<128x256xbf16>
    %cst_49 = arith.constant dense<0.000000e+00> : vector<16x256xf32>
    %143 = tpu.matmul %140, %142, %cst_49 {dimension_numbers = #tpu.dot_dimension_numbers<[1], [0], [0], [1], [0, 0, 1, 1], [], []>} : vector<16x128xbf16>, vector<128x256xbf16>, vector<16x256xf32> -> vector<16x256xf32>
    %c0_50 = arith.constant 0 : index
    %c0_51 = arith.constant 0 : index
    %c0_52 = arith.constant 0 : index
    %144 = vector.load %arg12[%c0_50, %c0_51, %c0_52] : memref<1x1x256xf32, #tpu.memory_space<vmem>>, vector<1x1x256xf32>
    %145 = vector.shape_cast %144 : vector<1x1x256xf32> to vector<1x256xf32>
    %146 = vector.broadcast %145 : vector<1x256xf32> to vector<16x256xf32>
    %147 = arith.addf %143, %146 : vector<16x256xf32>
    %148 = arith.mulf %147, %147 : vector<16x256xf32>
    %149 = arith.mulf %147, %148 : vector<16x256xf32>
    %cst_53 = arith.constant 4.471500e-02 : f32
    %150 = vector.broadcast %cst_53 : f32 to vector<16x256xf32>
    %151 = arith.mulf %150, %149 : vector<16x256xf32>
    %152 = arith.addf %147, %151 : vector<16x256xf32>
    %cst_54 = arith.constant 0.797884583 : f32
    %153 = vector.broadcast %cst_54 : f32 to vector<16x256xf32>
    %154 = arith.mulf %153, %152 : vector<16x256xf32>
    %155 = math.tanh %154 : vector<16x256xf32>
    %cst_55 = arith.constant 1.000000e+00 : f32
    %156 = vector.broadcast %cst_55 : f32 to vector<16x256xf32>
    %157 = arith.addf %156, %155 : vector<16x256xf32>
    %cst_56 = arith.constant 5.000000e-01 : f32
    %158 = vector.broadcast %cst_56 : f32 to vector<16x256xf32>
    %159 = arith.mulf %158, %157 : vector<16x256xf32>
    %160 = arith.mulf %147, %159 : vector<16x256xf32>
    %161 = arith.truncf %160 : vector<16x256xf32> to vector<16x256xbf16>
    %c0_57 = arith.constant 0 : index
    %c0_58 = arith.constant 0 : index
    %c0_59 = arith.constant 0 : index
    %162 = vector.load %arg13[%c0_57, %c0_58, %c0_59] : memref<1x256x128xbf16, #tpu.memory_space<vmem>>, vector<1x256x128xbf16>
    %163 = vector.shape_cast %162 : vector<1x256x128xbf16> to vector<256x128xbf16>
    %cst_60 = arith.constant dense<0.000000e+00> : vector<16x128xf32>
    %164 = tpu.matmul %161, %163, %cst_60 {dimension_numbers = #tpu.dot_dimension_numbers<[1], [0], [0], [1], [0, 0, 1, 1], [], []>} : vector<16x256xbf16>, vector<256x128xbf16>, vector<16x128xf32> -> vector<16x128xf32>
    %c0_61 = arith.constant 0 : index
    %c0_62 = arith.constant 0 : index
    %c0_63 = arith.constant 0 : index
    %165 = vector.load %arg14[%c0_61, %c0_62, %c0_63] : memref<1x1x128xf32, #tpu.memory_space<vmem>>, vector<1x1x128xf32>
    %166 = vector.shape_cast %165 : vector<1x1x128xf32> to vector<1x128xf32>
    %167 = vector.broadcast %166 : vector<1x128xf32> to vector<16x128xf32>
    %168 = arith.addf %164, %167 : vector<16x128xf32>
    %169 = arith.addf %139, %168 : vector<16x128xf32>
    %c0_64 = arith.constant 0 : index
    %c0_65 = arith.constant 0 : index
    %c0_66 = arith.constant 0 : index
    %170 = vector.load %arg15[%c0_64, %c0_65, %c0_66] : memref<1x1x128xf32, #tpu.memory_space<vmem>>, vector<1x1x128xf32>
    %171 = vector.shape_cast %170 : vector<1x1x128xf32> to vector<1x128xf32>
    %c0_67 = arith.constant 0 : index
    %c0_68 = arith.constant 0 : index
    %c0_69 = arith.constant 0 : index
    %172 = vector.load %arg16[%c0_67, %c0_68, %c0_69] : memref<1x1x128xf32, #tpu.memory_space<vmem>>, vector<1x1x128xf32>
    %173 = vector.shape_cast %172 : vector<1x1x128xf32> to vector<1x128xf32>
    %cst_70 = arith.constant dense<0.000000e+00> : vector<16xf32>
    %174 = vector.multi_reduction <add>, %169, %cst_70 [1] : vector<16x128xf32> to vector<16xf32>
    %175 = vector.shape_cast %174 : vector<16xf32> to vector<16x1xf32>
    %cst_71 = arith.constant 1.280000e+02 : f32
    %176 = vector.broadcast %cst_71 : f32 to vector<16x1xf32>
    %177 = arith.divf %175, %176 : vector<16x1xf32>
    %178 = vector.broadcast %177 : vector<16x1xf32> to vector<16x128xf32>
    %179 = arith.subf %169, %178 : vector<16x128xf32>
    %180 = arith.mulf %179, %179 : vector<16x128xf32>
    %cst_72 = arith.constant dense<0.000000e+00> : vector<16xf32>
    %181 = vector.multi_reduction <add>, %180, %cst_72 [1] : vector<16x128xf32> to vector<16xf32>
    %182 = vector.shape_cast %181 : vector<16xf32> to vector<16x1xf32>
    %cst_73 = arith.constant 1.280000e+02 : f32
    %183 = vector.broadcast %cst_73 : f32 to vector<16x1xf32>
    %184 = arith.divf %182, %183 : vector<16x1xf32>
    %185 = vector.broadcast %177 : vector<16x1xf32> to vector<16x128xf32>
    %186 = arith.subf %169, %185 : vector<16x128xf32>
    %cst_74 = arith.constant 9.99999996E-13 : f32
    %187 = vector.broadcast %cst_74 : f32 to vector<16x1xf32>
    %188 = arith.addf %184, %187 : vector<16x1xf32>
    %189 = math.rsqrt %188 : vector<16x1xf32>
    %190 = vector.broadcast %189 : vector<16x1xf32> to vector<16x128xf32>
    %191 = arith.mulf %186, %190 : vector<16x128xf32>
    %192 = vector.broadcast %171 : vector<1x128xf32> to vector<16x128xf32>
    %193 = arith.mulf %191, %192 : vector<16x128xf32>
    %194 = vector.broadcast %173 : vector<1x128xf32> to vector<16x128xf32>
    %195 = arith.addf %193, %194 : vector<16x128xf32>
    %c0_75 = arith.constant 0 : index
    %c0_76 = arith.constant 0 : index
    %196 = vector.load %arg22[%c0_75, %c0_76] : memref<16x128xf32, #tpu.memory_space<vmem>>, vector<16x128xf32>
    tpu.vector_store %arg22[%c0_75, %c0_76], %195 {strides = array<i32>} : memref<16x128xf32, #tpu.memory_space<vmem>>, vector<16x128xf32>,
    %c1_i32 = arith.constant 1 : i32
    %197 = arith.cmpi eq, %arg0, %c1_i32 : i32
    %198 = arith.extui %197 : i1 to i32
    %c0_i32_77 = arith.constant 0 : i32
    %199 = arith.cmpi ne, %198, %c0_i32_77 : i32
    scf.if %199 {
      %200 = vector.shape_cast %195 : vector<16x128xf32> to vector<2x8x128xf32>
      %201 = vector.extract_strided_slice %200 {offsets = [0, 0, 0], sizes = [2, 1, 128], strides = [1, 1, 1]} : vector<2x8x128xf32> to vector<2x1x128xf32>
      %202 = vector.shape_cast %201 : vector<2x1x128xf32> to vector<2x128xf32>
      %203 = arith.truncf %202 : vector<2x128xf32> to vector<2x128xbf16>
      %c0_78 = arith.constant 0 : index
      %c0_79 = arith.constant 0 : index
      %204 = vector.load %arg17[%c0_78, %c0_79] : memref<128x128xbf16, #tpu.memory_space<vmem>>, vector<128x128xbf16>
      %cst_80 = arith.constant dense<0.000000e+00> : vector<2x128xf32>
      %205 = tpu.matmul %203, %204, %cst_80 {dimension_numbers = #tpu.dot_dimension_numbers<[1], [0], [0], [1], [0, 0, 1, 1], [], []>} : vector<2x128xbf16>, vector<128x128xbf16>, vector<2x128xf32> -> vector<2x128xf32>
      %c0_81 = arith.constant 0 : index
      %c0_82 = arith.constant 0 : index
      %206 = vector.load %arg18[%c0_81, %c0_82] : memref<1x128xf32, #tpu.memory_space<vmem>>, vector<1x128xf32>
      %207 = vector.broadcast %206 : vector<1x128xf32> to vector<2x128xf32>
      %208 = arith.addf %205, %207 : vector<2x128xf32>
      %cst_83 = arith.constant 0.000000e+00 : f32
      %209 = vector.broadcast %cst_83 : f32 to vector<2x128xf32>
      %210 = arith.maximumf %208, %209 : vector<2x128xf32>
      %211 = arith.truncf %210 : vector<2x128xf32> to vector<2x128xbf16>
      %c0_84 = arith.constant 0 : index
      %c0_85 = arith.constant 0 : index
      %212 = vector.load %arg19[%c0_84, %c0_85] : memref<128x128xbf16, #tpu.memory_space<vmem>>, vector<128x128xbf16>
      %cst_86 = arith.constant dense<0.000000e+00> : vector<2x128xf32>
      %213 = tpu.matmul %211, %212, %cst_86 {dimension_numbers = #tpu.dot_dimension_numbers<[1], [0], [0], [1], [0, 0, 1, 1], [], []>} : vector<2x128xbf16>, vector<128x128xbf16>, vector<2x128xf32> -> vector<2x128xf32>
      %c0_87 = arith.constant 0 : index
      %c0_88 = arith.constant 0 : index
      %214 = vector.load %arg20[%c0_87, %c0_88] : memref<1x128xf32, #tpu.memory_space<vmem>>, vector<1x128xf32>
      %215 = vector.broadcast %214 : vector<1x128xf32> to vector<2x128xf32>
      %216 = arith.addf %213, %215 : vector<2x128xf32>
      %c0_89 = arith.constant 0 : index
      %c0_90 = arith.constant 0 : index
      %217 = vector.load %arg21[%c0_89, %c0_90] : memref<2x128xf32, #tpu.memory_space<vmem>>, vector<2x128xf32>
      tpu.vector_store %arg21[%c0_89, %c0_90], %216 {strides = array<i32>} : memref<2x128xf32, #tpu.memory_space<vmem>>, vector<2x128xf32>,
    } else {
    }
    return
  }
  func.func @transform_0(%arg0: i32) -> (i32, i32) {
    %c0_i32 = arith.constant 0 : i32
    %c0_i32_0 = arith.constant 0 : i32
    %c0_i32_1 = arith.constant 0 : i32
    return %c0_i32, %c0_i32_0 : i32, i32
  }
  func.func @transform_1(%arg0: i32) -> (i32, i32, i32) {
    %c0_i32 = arith.constant 0 : i32
    %c0_i32_0 = arith.constant 0 : i32
    %c0_i32_1 = arith.constant 0 : i32
    %c0_i32_2 = arith.constant 0 : i32
    return %c0_i32, %c0_i32_0, %c0_i32_1 : i32, i32, i32
  }
  func.func @transform_2(%arg0: i32) -> (i32, i32) {
    %c0_i32 = arith.constant 0 : i32
    %c0_i32_0 = arith.constant 0 : i32
    %c0_i32_1 = arith.constant 0 : i32
    return %c0_i32, %c0_i32_0 : i32, i32
  }
  func.func @transform_3(%arg0: i32) -> (i32, i32) {
    %c0_i32 = arith.constant 0 : i32
    %c0_i32_0 = arith.constant 0 : i32
    %c0_i32_1 = arith.constant 0 : i32
    return %c0_i32, %c0_i32_0 : i32, i32
  }
  func.func @transform_4(%arg0: i32) -> (i32, i32, i32) {
    %c0_i32 = arith.constant 0 : i32
    %c0_i32_0 = arith.constant 0 : i32
    %c0_i32_1 = arith.constant 0 : i32
    return %arg0, %c0_i32, %c0_i32_0 : i32, i32, i32
  }
  func.func @transform_5(%arg0: i32) -> (i32, i32, i32) {
    %c0_i32 = arith.constant 0 : i32
    %c0_i32_0 = arith.constant 0 : i32
    %c0_i32_1 = arith.constant 0 : i32
    return %arg0, %c0_i32, %c0_i32_0 : i32, i32, i32
  }
  func.func @transform_6(%arg0: i32) -> (i32, i32, i32) {
    %c0_i32 = arith.constant 0 : i32
    %c0_i32_0 = arith.constant 0 : i32
    %c0_i32_1 = arith.constant 0 : i32
    return %arg0, %c0_i32, %c0_i32_0 : i32, i32, i32
  }
  func.func @transform_7(%arg0: i32) -> (i32, i32, i32) {
    %c0_i32 = arith.constant 0 : i32
    %c0_i32_0 = arith.constant 0 : i32
    %c0_i32_1 = arith.constant 0 : i32
    return %arg0, %c0_i32, %c0_i32_0 : i32, i32, i32
  }
  func.func @transform_8(%arg0: i32) -> (i32, i32, i32) {
    %c0_i32 = arith.constant 0 : i32
    %c0_i32_0 = arith.constant 0 : i32
    %c0_i32_1 = arith.constant 0 : i32
    return %arg0, %c0_i32, %c0_i32_0 : i32, i32, i32
  }
  func.func @transform_9(%arg0: i32) -> (i32, i32, i32) {
    %c0_i32 = arith.constant 0 : i32
    %c0_i32_0 = arith.constant 0 : i32
    %c0_i32_1 = arith.constant 0 : i32
    return %arg0, %c0_i32, %c0_i32_0 : i32, i32, i32
  }
  func.func @transform_10(%arg0: i32) -> (i32, i32, i32) {
    %c0_i32 = arith.constant 0 : i32
    %c0_i32_0 = arith.constant 0 : i32
    %c0_i32_1 = arith.constant 0 : i32
    return %arg0, %c0_i32, %c0_i32_0 : i32, i32, i32
  }
  func.func @transform_11(%arg0: i32) -> (i32, i32, i32) {
    %c0_i32 = arith.constant 0 : i32
    %c0_i32_0 = arith.constant 0 : i32
    %c0_i32_1 = arith.constant 0 : i32
    return %arg0, %c0_i32, %c0_i32_0 : i32, i32, i32
  }
  func.func @transform_12(%arg0: i32) -> (i32, i32, i32) {
    %c0_i32 = arith.constant 0 : i32
    %c0_i32_0 = arith.constant 0 : i32
    %c0_i32_1 = arith.constant 0 : i32
    return %arg0, %c0_i32, %c0_i32_0 : i32, i32, i32
  }
  func.func @transform_13(%arg0: i32) -> (i32, i32, i32) {
    %c0_i32 = arith.constant 0 : i32
    %c0_i32_0 = arith.constant 0 : i32
    %c0_i32_1 = arith.constant 0 : i32
    return %arg0, %c0_i32, %c0_i32_0 : i32, i32, i32
  }
  func.func @transform_14(%arg0: i32) -> (i32, i32, i32) {
    %c0_i32 = arith.constant 0 : i32
    %c0_i32_0 = arith.constant 0 : i32
    %c0_i32_1 = arith.constant 0 : i32
    return %arg0, %c0_i32, %c0_i32_0 : i32, i32, i32
  }
  func.func @transform_15(%arg0: i32) -> (i32, i32, i32) {
    %c0_i32 = arith.constant 0 : i32
    %c0_i32_0 = arith.constant 0 : i32
    %c0_i32_1 = arith.constant 0 : i32
    return %arg0, %c0_i32, %c0_i32_0 : i32, i32, i32
  }
  func.func @transform_16(%arg0: i32) -> (i32, i32) {
    %c0_i32 = arith.constant 0 : i32
    %c0_i32_0 = arith.constant 0 : i32
    %c0_i32_1 = arith.constant 0 : i32
    return %c0_i32, %c0_i32_0 : i32, i32
  }
  func.func @transform_17(%arg0: i32) -> (i32, i32) {
    %c0_i32 = arith.constant 0 : i32
    %c0_i32_0 = arith.constant 0 : i32
    %c0_i32_1 = arith.constant 0 : i32
    return %c0_i32, %c0_i32_0 : i32, i32
  }
  func.func @transform_18(%arg0: i32) -> (i32, i32) {
    %c0_i32 = arith.constant 0 : i32
    %c0_i32_0 = arith.constant 0 : i32
    %c0_i32_1 = arith.constant 0 : i32
    return %c0_i32, %c0_i32_0 : i32, i32
  }
  func.func @transform_19(%arg0: i32) -> (i32, i32) {
    %c0_i32 = arith.constant 0 : i32
    %c0_i32_0 = arith.constant 0 : i32
    %c0_i32_1 = arith.constant 0 : i32
    return %c0_i32, %c0_i32_0 : i32, i32
  }
  func.func @transform_20(%arg0: i32) -> (i32, i32) {
    %c0_i32 = arith.constant 0 : i32
    %c0_i32_0 = arith.constant 0 : i32
    %c0_i32_1 = arith.constant 0 : i32
    return %c0_i32, %c0_i32_0 : i32, i32
  }
}

</mosaic_0001>

<llo_original>
// kernel: tpu_custom_call.1
$region0: #{tpu_custom_call.1}
  #allocation0 [shape = 'u32[]', space=smem, size = 0x4, offset = 0x4, fixed_abs, tag = 'smem constant byte address 0x4 - core index']
  #allocation1 [shape = 'u32[144,128]{1,0:T(1,128)}', space=vmem, size = 0x12000, scoped, tag = 'internal scratch']
  #allocation2 [shape = 'f32[16,128]{1,0:T(8,128)}', space=vmem, size = 0x2000, scoped, tag = 'scratch operand']
  %s0 = inlined_call_operand.hbm [shape: f32[16,128], index: 0, kind: input, shape index: {}]
  %s1 = inlined_call_operand.hbm [shape: f32[2,1,8], index: 1, kind: input, shape index: {}]
  %s2 = inlined_call_operand.hbm [shape: f32[1,128], index: 2, kind: input, shape index: {}]
  %s3 = inlined_call_operand.hbm [shape: f32[1,128], index: 3, kind: input, shape index: {}]
  %s4 = inlined_call_operand.hbm [shape: bf16[2,128,384], index: 4, kind: input, shape index: {}]
  %s5 = inlined_call_operand.vmem [shape: f32[2,1,384], index: 5, kind: input, shape index: {}]
  %s6 = inlined_call_operand.hbm [shape: bf16[2,128,128], index: 6, kind: input, shape index: {}]
  %s7 = inlined_call_operand.vmem [shape: f32[2,1,128], index: 7, kind: input, shape index: {}]
  %s8 = inlined_call_operand.vmem [shape: f32[2,1,128], index: 8, kind: input, shape index: {}]
  %s9 = inlined_call_operand.vmem [shape: f32[2,1,128], index: 9, kind: input, shape index: {}]
  %s10 = inlined_call_operand.hbm [shape: bf16[2,128,256], index: 10, kind: input, shape index: {}]
  %s11 = inlined_call_operand.vmem [shape: f32[2,1,256], index: 11, kind: input, shape index: {}]
  %s12 = inlined_call_operand.hbm [shape: bf16[2,256,128], index: 12, kind: input, shape index: {}]
  %s13 = inlined_call_operand.vmem [shape: f32[2,1,128], index: 13, kind: input, shape index: {}]
  %s14 = inlined_call_operand.vmem [shape: f32[2,1,128], index: 14, kind: input, shape index: {}]
  %s15 = inlined_call_operand.vmem [shape: f32[2,1,128], index: 15, kind: input, shape index: {}]
  %s16 = inlined_call_operand.hbm [shape: bf16[128,128], index: 16, kind: input, shape index: {}]
  %s17 = inlined_call_operand.vmem [shape: f32[1,128], index: 17, kind: input, shape index: {}]
  %s18 = inlined_call_operand.hbm [shape: bf16[128,128], index: 18, kind: input, shape index: {}]
  %s19 = inlined_call_operand.vmem [shape: f32[1,128], index: 19, kind: input, shape index: {}]
  %s20 = inlined_call_operand.hbm [shape: f32[2,128], index: 20, kind: output, shape index: {}]
  %s21 = sld [smem:[#allocation0]]
  $region161: #{tpu_custom_call.1} parent=0
    _
  %s23 = ssub.s32 1, %s21
  %s24 = scalar_select 0, %s23, %s21
  $region1: #{tpu_custom_call.1} parent=0
    #allocation3 [shape = 'u8[8192]{0}', space=vmem, size = 0x2000, scoped, tag = 'input window, operand 0, single buffered']
    #allocation4 [shape = 's32[2]{0}', space=sflag, size = 0x8, scoped, tag = 'scoped memory for tpu_custom_call.1']
    #allocation5 [shape = 's32[2]{0}', space=sflag, size = 0x8, scoped, tag = 'scoped memory for tpu_custom_call.1']
    #allocation6 [shape = 'u8[1024]{0}', space=vmem, size = 0x400, scoped, tag = 'input window, operand 1, single buffered']
    #allocation7 [shape = 's32[1]{0}', space=sflag, size = 0x4, scoped, tag = 'scoped memory for tpu_custom_call.1']
    #allocation8 [shape = 'u8[512]{0}', space=vmem, size = 0x400, scoped, tag = 'input window, operand 2, single buffered']
    #allocation9 [shape = 'u8[512]{0}', space=vmem, size = 0x400, scoped, tag = 'input window, operand 3, single buffered']
    #allocation10 [shape = 's32[1]{0}', space=sflag, size = 0x4, scoped, tag = 'scoped memory for tpu_custom_call.1']
    #allocation11 [shape = 'u8[196608]{0}', space=vmem, size = 0x30000, scoped, tag = 'input window, operand 4']
    #allocation12 [shape = 'u8[65536]{0}', space=vmem, size = 0x10000, scoped, tag = 'input window, operand 6']
    #allocation13 [shape = 'u8[131072]{0}', space=vmem, size = 0x20000, scoped, tag = 'input window, operand 10']
    #allocation14 [shape = 'u8[131072]{0}', space=vmem, size = 0x20000, scoped, tag = 'input window, operand 12']
    #allocation15 [shape = 'u8[32768]{0}', space=vmem, size = 0x8000, scoped, tag = 'input window, operand 16, single buffered']
    #allocation16 [shape = 'u8[32768]{0}', space=vmem, size = 0x8000, scoped, tag = 'input window, operand 18, single buffered']
    #allocation17 [shape = 'u8[1024]{0}', space=vmem, size = 0x400, scoped, tag = 'output window, operand 0, single buffered']
    %25 = vsyncpa [#allocation4], 0
    %26 = vsyncpa [#allocation7], 0
    %27 = vsyncpa [#allocation10], 0
    %28 = vsyncpa [#allocation5], 0
    loop: start=0, step=1, limit=4
    $region2: #{tpu_custom_call.1} parent=1 // loop_pre_header
      _
    $region3: #{tpu_custom_call.1} parent=1 // loop_header
      %s30 = sphi 0, %s34
      %p31 = scmp.ge.s32.totalorder %s30, 4
      %s38 = sphi 0, %s38
      %s40 = sphi 0, %s38
      %s41 = sphi 0, %s40
      %s55 = sphi 0, %s41
      %s59 = sphi 0, %s59
      %s61 = sphi 0, %s59
      %s62 = sphi 0, %s61
      %s76 = sphi 0, %s62
      %s80 = sphi 0, %s80
      %s82 = sphi 0, %s80
      %s83 = sphi 0, %s82
      %s97 = sphi 0, %s83
      %s101 = sphi 0, %s101
      %s103 = sphi 0, %s101
      %s104 = sphi 0, %s103
      %s118 = sphi 0, %s104
      %s124 = sphi 0, %s126
      %s127 = sphi 0, %s124
      %s128 = sphi 0, %s127
      %s144 = sphi 0, %s128
      %s150 = sphi 0, %s152
      %s153 = sphi 0, %s150
      %s154 = sphi 0, %s153
      %s170 = sphi 0, %s154
      %s176 = sphi 0, %s178
      %s179 = sphi 0, %s176
      %s180 = sphi 0, %s179
      %s196 = sphi 0, %s180
      %s202 = sphi 0, %s204
      %s205 = sphi 0, %s202
      %s206 = sphi 0, %s205
      %s222 = sphi 0, %s206
      %s228 = sphi 0, %s230
      %s231 = sphi 0, %s228
      %s232 = sphi 0, %s231
      %s248 = sphi 0, %s232
      %s254 = sphi 0, %s256
      %s257 = sphi 0, %s254
      %s258 = sphi 0, %s257
      %s274 = sphi 0, %s258
      %s280 = sphi 0, %s282
      %s283 = sphi 0, %s280
      %s284 = sphi 0, %s283
      %s300 = sphi 0, %s284
      %s306 = sphi 0, %s308
      %s309 = sphi 0, %s306
      %s310 = sphi 0, %s309
      %s326 = sphi 0, %s310
      %s332 = sphi 0, %s334
      %s335 = sphi 0, %s332
      %s336 = sphi 0, %s335
      %s352 = sphi 0, %s336
      %s358 = sphi 0, %s360
      %s361 = sphi 0, %s358
      %s362 = sphi 0, %s361
      %s378 = sphi 0, %s362
      %s384 = sphi 0, %s386
      %s387 = sphi 0, %s384
      %s388 = sphi 0, %s387
      %s404 = sphi 0, %s388
      %s410 = sphi 0, %s412
      %s413 = sphi 0, %s410
      %s414 = sphi 0, %s413
      %s430 = sphi 0, %s414
      %s434 = sphi 0, %s434
      %s436 = sphi 0, %s434
      %s437 = sphi 0, %s436
      %s451 = sphi 0, %s437
      %s455 = sphi 0, %s455
      %s457 = sphi 0, %s455
      %s458 = sphi 0, %s457
      %s472 = sphi 0, %s458
      %s476 = sphi 0, %s476
      %s478 = sphi 0, %s476
      %s479 = sphi 0, %s478
      %s493 = sphi 0, %s479
      %s497 = sphi 0, %s497
      %s499 = sphi 0, %s497
      %s500 = sphi 0, %s499
      %s514 = sphi 0, %s500
      %s518 = sphi 0, %s518
      %s520 = sphi 0, %s518
      %s521 = sphi 0, %s520
      %s535 = sphi 0, %s521
    $region4: #{tpu_custom_call.1} parent=1 // loop_header_branch
      %33 = sbr.rel (%p31) target = $region8
    $region5: #{tpu_custom_call.1} parent=1 // loop_body
      %s35 = ssub.s32 %s30, 1
      %s36 = ssub.s32 %s30, 2
      %s37 = sadd.s32 %s30, 1
      %s39 = sadd.s32 %s38, 1
      %p42 = scmp.eq.s32.totalorder %s30, 1
      %p43 = scmp.ne.s32.totalorder %s38, %s40
      %p44 = scmp.eq.s32.totalorder %s30, 0
      %p45 = por %p43, %p44
      %p46 = scmp.ne.s32.totalorder %s38, %s40
      %p47 = scmp.eq.s32.totalorder %s35, 1
      %p48 = por %p46, %p47
      %p49 = scmp.ne.s32.totalorder %s40, %s41
      %p50 = scmp.eq.s32.totalorder %s35, 0
      %p51 = por %p49, %p50
      %p52 = scmp.ne.s32.totalorder %s40, %s41
      %p53 = scmp.eq.s32.totalorder %s36, 1
      %p54 = por %p52, %p53
      %p56 = scmp.ne.s32.totalorder %s41, %s55
      %p57 = scmp.eq.s32.totalorder %s36, 0
      %p58 = por %p56, %p57
      %s60 = sadd.s32 %s59, 1
      %p63 = scmp.eq.s32.totalorder %s30, 1
      %p64 = scmp.ne.s32.totalorder %s59, %s61
      %p65 = scmp.eq.s32.totalorder %s30, 0
      %p66 = por %p64, %p65
      %p67 = scmp.ne.s32.totalorder %s59, %s61
      %p68 = scmp.eq.s32.totalorder %s35, 1
      %p69 = por %p67, %p68
      %p70 = scmp.ne.s32.totalorder %s61, %s62
      %p71 = scmp.eq.s32.totalorder %s35, 0
      %p72 = por %p70, %p71
      %p73 = scmp.ne.s32.totalorder %s61, %s62
      %p74 = scmp.eq.s32.totalorder %s36, 1
      %p75 = por %p73, %p74
      %p77 = scmp.ne.s32.totalorder %s62, %s76
      %p78 = scmp.eq.s32.totalorder %s36, 0
      %p79 = por %p77, %p78
      %s81 = sadd.s32 %s80, 1
      %p84 = scmp.eq.s32.totalorder %s30, 1
      %p85 = scmp.ne.s32.totalorder %s80, %s82
      %p86 = scmp.eq.s32.totalorder %s30, 0
      %p87 = por %p85, %p86
      %p88 = scmp.ne.s32.totalorder %s80, %s82
      %p89 = scmp.eq.s32.totalorder %s35, 1
      %p90 = por %p88, %p89
      %p91 = scmp.ne.s32.totalorder %s82, %s83
      %p92 = scmp.eq.s32.totalorder %s35, 0
      %p93 = por %p91, %p92
      %p94 = scmp.ne.s32.totalorder %s82, %s83
      %p95 = scmp.eq.s32.totalorder %s36, 1
      %p96 = por %p94, %p95
      %p98 = scmp.ne.s32.totalorder %s83, %s97
      %p99 = scmp.eq.s32.totalorder %s36, 0
      %p100 = por %p98, %p99
      %s102 = sadd.s32 %s101, 1
      %p105 = scmp.eq.s32.totalorder %s30, 1
      %p106 = scmp.ne.s32.totalorder %s101, %s103
      %p107 = scmp.eq.s32.totalorder %s30, 0
      %p108 = por %p106, %p107
      %p109 = scmp.ne.s32.totalorder %s101, %s103
      %p110 = scmp.eq.s32.totalorder %s35, 1
      %p111 = por %p109, %p110
      %p112 = scmp.ne.s32.totalorder %s103, %s104
      %p113 = scmp.eq.s32.totalorder %s35, 0
      %p114 = por %p112, %p113
      %p115 = scmp.ne.s32.totalorder %s103, %s104
      %p116 = scmp.eq.s32.totalorder %s36, 1
      %p117 = por %p115, %p116
      %p119 = scmp.ne.s32.totalorder %s104, %s118
      %p120 = scmp.eq.s32.totalorder %s36, 0
      %p121 = por %p119, %p120
      %s122 = ssub.s32 %s30, %s37
      %p123 = scmp.eq.s32.totalorder %s122, 0
      %s125 = sadd.s32 %s124, 1
      %s126 = scalar_select %p123, %s124, %s125
      %p129 = pneg %p123
      %p130 = scmp.eq.s32.totalorder %s30, 1
      %p131 = por %p129, %p130
      %p132 = scmp.ne.s32.totalorder %s124, %s127
      %p133 = scmp.eq.s32.totalorder %s30, 0
      %p134 = por %p132, %p133
      %p135 = scmp.ne.s32.totalorder %s124, %s127
      %p136 = scmp.eq.s32.totalorder %s35, 1
      %p137 = por %p135, %p136
      %p138 = scmp.ne.s32.totalorder %s127, %s128
      %p139 = scmp.eq.s32.totalorder %s35, 0
      %p140 = por %p138, %p139
      %p141 = scmp.ne.s32.totalorder %s127, %s128
      %p142 = scmp.eq.s32.totalorder %s36, 1
      %p143 = por %p141, %p142
      %p145 = scmp.ne.s32.totalorder %s128, %s144
      %p146 = scmp.eq.s32.totalorder %s36, 0
      %p147 = por %p145, %p146
      %s148 = ssub.s32 %s30, %s37
      %p149 = scmp.eq.s32.totalorder %s148, 0
      %s151 = sadd.s32 %s150, 1
      %s152 = scalar_select %p149, %s150, %s151
      %p155 = pneg %p149
      %p156 = scmp.eq.s32.totalorder %s30, 1
      %p157 = por %p155, %p156
      %p158 = scmp.ne.s32.totalorder %s150, %s153
      %p159 = scmp.eq.s32.totalorder %s30, 0
      %p160 = por %p158, %p159
      %p161 = scmp.ne.s32.totalorder %s150, %s153
      %p162 = scmp.eq.s32.totalorder %s35, 1
      %p163 = por %p161, %p162
      %p164 = scmp.ne.s32.totalorder %s153, %s154
      %p165 = scmp.eq.s32.totalorder %s35, 0
      %p166 = por %p164, %p165
      %p167 = scmp.ne.s32.totalorder %s153, %s154
      %p168 = scmp.eq.s32.totalorder %s36, 1
      %p169 = por %p167, %p168
      %p171 = scmp.ne.s32.totalorder %s154, %s170
      %p172 = scmp.eq.s32.totalorder %s36, 0
      %p173 = por %p171, %p172
      %s174 = ssub.s32 %s30, %s37
      %p175 = scmp.eq.s32.totalorder %s174, 0
      %s177 = sadd.s32 %s176, 1
      %s178 = scalar_select %p175, %s176, %s177
      %p181 = pneg %p175
      %p182 = scmp.eq.s32.totalorder %s30, 1
      %p183 = por %p181, %p182
      %p184 = scmp.ne.s32.totalorder %s176, %s179
      %p185 = scmp.eq.s32.totalorder %s30, 0
      %p186 = por %p184, %p185
      %p187 = scmp.ne.s32.totalorder %s176, %s179
      %p188 = scmp.eq.s32.totalorder %s35, 1
      %p189 = por %p187, %p188
      %p190 = scmp.ne.s32.totalorder %s179, %s180
      %p191 = scmp.eq.s32.totalorder %s35, 0
      %p192 = por %p190, %p191
      %p193 = scmp.ne.s32.totalorder %s179, %s180
      %p194 = scmp.eq.s32.totalorder %s36, 1
      %p195 = por %p193, %p194
      %p197 = scmp.ne.s32.totalorder %s180, %s196
      %p198 = scmp.eq.s32.totalorder %s36, 0
      %p199 = por %p197, %p198
      %s200 = ssub.s32 %s30, %s37
      %p201 = scmp.eq.s32.totalorder %s200, 0
      %s203 = sadd.s32 %s202, 1
      %s204 = scalar_select %p201, %s202, %s203
      %p207 = pneg %p201
      %p208 = scmp.eq.s32.totalorder %s30, 1
      %p209 = por %p207, %p208
      %p210 = scmp.ne.s32.totalorder %s202, %s205
      %p211 = scmp.eq.s32.totalorder %s30, 0
      %p212 = por %p210, %p211
      %p213 = scmp.ne.s32.totalorder %s202, %s205
      %p214 = scmp.eq.s32.totalorder %s35, 1
      %p215 = por %p213, %p214
      %p216 = scmp.ne.s32.totalorder %s205, %s206
      %p217 = scmp.eq.s32.totalorder %s35, 0
      %p218 = por %p216, %p217
      %p219 = scmp.ne.s32.totalorder %s205, %s206
      %p220 = scmp.eq.s32.totalorder %s36, 1
      %p221 = por %p219, %p220
      %p223 = scmp.ne.s32.totalorder %s206, %s222
      %p224 = scmp.eq.s32.totalorder %s36, 0
      %p225 = por %p223, %p224
      %s226 = ssub.s32 %s30, %s37
      %p227 = scmp.eq.s32.totalorder %s226, 0
      %s229 = sadd.s32 %s228, 1
      %s230 = scalar_select %p227, %s228, %s229
      %p233 = pneg %p227
      %p234 = scmp.eq.s32.totalorder %s30, 1
      %p235 = por %p233, %p234
      %p236 = scmp.ne.s32.totalorder %s228, %s231
      %p237 = scmp.eq.s32.totalorder %s30, 0
      %p238 = por %p236, %p237
      %p239 = scmp.ne.s32.totalorder %s228, %s231
      %p240 = scmp.eq.s32.totalorder %s35, 1
      %p241 = por %p239, %p240
      %p242 = scmp.ne.s32.totalorder %s231, %s232
      %p243 = scmp.eq.s32.totalorder %s35, 0
      %p244 = por %p242, %p243
      %p245 = scmp.ne.s32.totalorder %s231, %s232
      %p246 = scmp.eq.s32.totalorder %s36, 1
      %p247 = por %p245, %p246
      %p249 = scmp.ne.s32.totalorder %s232, %s248
      %p250 = scmp.eq.s32.totalorder %s36, 0
      %p251 = por %p249, %p250
      %s252 = ssub.s32 %s30, %s37
      %p253 = scmp.eq.s32.totalorder %s252, 0
      %s255 = sadd.s32 %s254, 1
      %s256 = scalar_select %p253, %s254, %s255
      %p259 = pneg %p253
      %p260 = scmp.eq.s32.totalorder %s30, 1
      %p261 = por %p259, %p260
      %p262 = scmp.ne.s32.totalorder %s254, %s257
      %p263 = scmp.eq.s32.totalorder %s30, 0
      %p264 = por %p262, %p263
      %p265 = scmp.ne.s32.totalorder %s254, %s257
      %p266 = scmp.eq.s32.totalorder %s35, 1
      %p267 = por %p265, %p266
      %p268 = scmp.ne.s32.totalorder %s257, %s258
      %p269 = scmp.eq.s32.totalorder %s35, 0
      %p270 = por %p268, %p269
      %p271 = scmp.ne.s32.totalorder %s257, %s258
      %p272 = scmp.eq.s32.totalorder %s36, 1
      %p273 = por %p271, %p272
      %p275 = scmp.ne.s32.totalorder %s258, %s274
      %p276 = scmp.eq.s32.totalorder %s36, 0
      %p277 = por %p275, %p276
      %s278 = ssub.s32 %s30, %s37
      %p279 = scmp.eq.s32.totalorder %s278, 0
      %s281 = sadd.s32 %s280, 1
      %s282 = scalar_select %p279, %s280, %s281
      %p285 = pneg %p279
      %p286 = scmp.eq.s32.totalorder %s30, 1
      %p287 = por %p285, %p286
      %p288 = scmp.ne.s32.totalorder %s280, %s283
      %p289 = scmp.eq.s32.totalorder %s30, 0
      %p290 = por %p288, %p289
      %p291 = scmp.ne.s32.totalorder %s280, %s283
      %p292 = scmp.eq.s32.totalorder %s35, 1
      %p293 = por %p291, %p292
      %p294 = scmp.ne.s32.totalorder %s283, %s284
      %p295 = scmp.eq.s32.totalorder %s35, 0
      %p296 = por %p294, %p295
      %p297 = scmp.ne.s32.totalorder %s283, %s284
      %p298 = scmp.eq.s32.totalorder %s36, 1
      %p299 = por %p297, %p298
      %p301 = scmp.ne.s32.totalorder %s284, %s300
      %p302 = scmp.eq.s32.totalorder %s36, 0
      %p303 = por %p301, %p302
      %s304 = ssub.s32 %s30, %s37
      %p305 = scmp.eq.s32.totalorder %s304, 0
      %s307 = sadd.s32 %s306, 1
      %s308 = scalar_select %p305, %s306, %s307
      %p311 = pneg %p305
      %p312 = scmp.eq.s32.totalorder %s30, 1
      %p313 = por %p311, %p312
      %p314 = scmp.ne.s32.totalorder %s306, %s309
      %p315 = scmp.eq.s32.totalorder %s30, 0
      %p316 = por %p314, %p315
      %p317 = scmp.ne.s32.totalorder %s306, %s309
      %p318 = scmp.eq.s32.totalorder %s35, 1
      %p319 = por %p317, %p318
      %p320 = scmp.ne.s32.totalorder %s309, %s310
      %p321 = scmp.eq.s32.totalorder %s35, 0
      %p322 = por %p320, %p321
      %p323 = scmp.ne.s32.totalorder %s309, %s310
      %p324 = scmp.eq.s32.totalorder %s36, 1
      %p325 = por %p323, %p324
      %p327 = scmp.ne.s32.totalorder %s310, %s326
      %p328 = scmp.eq.s32.totalorder %s36, 0
      %p329 = por %p327, %p328
      %s330 = ssub.s32 %s30, %s37
      %p331 = scmp.eq.s32.totalorder %s330, 0
      %s333 = sadd.s32 %s332, 1
      %s334 = scalar_select %p331, %s332, %s333
      %p337 = pneg %p331
      %p338 = scmp.eq.s32.totalorder %s30, 1
      %p339 = por %p337, %p338
      %p340 = scmp.ne.s32.totalorder %s332, %s335
      %p341 = scmp.eq.s32.totalorder %s30, 0
      %p342 = por %p340, %p341
      %p343 = scmp.ne.s32.totalorder %s332, %s335
      %p344 = scmp.eq.s32.totalorder %s35, 1
      %p345 = por %p343, %p344
      %p346 = scmp.ne.s32.totalorder %s335, %s336
      %p347 = scmp.eq.s32.totalorder %s35, 0
      %p348 = por %p346, %p347
      %p349 = scmp.ne.s32.totalorder %s335, %s336
      %p350 = scmp.eq.s32.totalorder %s36, 1
      %p351 = por %p349, %p350
      %p353 = scmp.ne.s32.totalorder %s336, %s352
      %p354 = scmp.eq.s32.totalorder %s36, 0
      %p355 = por %p353, %p354
      %s356 = ssub.s32 %s30, %s37
      %p357 = scmp.eq.s32.totalorder %s356, 0
      %s359 = sadd.s32 %s358, 1
      %s360 = scalar_select %p357, %s358, %s359
      %p363 = pneg %p357
      %p364 = scmp.eq.s32.totalorder %s30, 1
      %p365 = por %p363, %p364
      %p366 = scmp.ne.s32.totalorder %s358, %s361
      %p367 = scmp.eq.s32.totalorder %s30, 0
      %p368 = por %p366, %p367
      %p369 = scmp.ne.s32.totalorder %s358, %s361
      %p370 = scmp.eq.s32.totalorder %s35, 1
      %p371 = por %p369, %p370
      %p372 = scmp.ne.s32.totalorder %s361, %s362
      %p373 = scmp.eq.s32.totalorder %s35, 0
      %p374 = por %p372, %p373
      %p375 = scmp.ne.s32.totalorder %s361, %s362
      %p376 = scmp.eq.s32.totalorder %s36, 1
      %p377 = por %p375, %p376
      %p379 = scmp.ne.s32.totalorder %s362, %s378
      %p380 = scmp.eq.s32.totalorder %s36, 0
      %p381 = por %p379, %p380
      %s382 = ssub.s32 %s30, %s37
      %p383 = scmp.eq.s32.totalorder %s382, 0
      %s385 = sadd.s32 %s384, 1
      %s386 = scalar_select %p383, %s384, %s385
      %p389 = pneg %p383
      %p390 = scmp.eq.s32.totalorder %s30, 1
      %p391 = por %p389, %p390
      %p392 = scmp.ne.s32.totalorder %s384, %s387
      %p393 = scmp.eq.s32.totalorder %s30, 0
      %p394 = por %p392, %p393
      %p395 = scmp.ne.s32.totalorder %s384, %s387
      %p396 = scmp.eq.s32.totalorder %s35, 1
      %p397 = por %p395, %p396
      %p398 = scmp.ne.s32.totalorder %s387, %s388
      %p399 = scmp.eq.s32.totalorder %s35, 0
      %p400 = por %p398, %p399
      %p401 = scmp.ne.s32.totalorder %s387, %s388
      %p402 = scmp.eq.s32.totalorder %s36, 1
      %p403 = por %p401, %p402
      %p405 = scmp.ne.s32.totalorder %s388, %s404
      %p406 = scmp.eq.s32.totalorder %s36, 0
      %p407 = por %p405, %p406
      %s408 = ssub.s32 %s30, %s37
      %p409 = scmp.eq.s32.totalorder %s408, 0
      %s411 = sadd.s32 %s410, 1
      %s412 = scalar_select %p409, %s410, %s411
      %p415 = pneg %p409
      %p416 = scmp.eq.s32.totalorder %s30, 1
      %p417 = por %p415, %p416
      %p418 = scmp.ne.s32.totalorder %s410, %s413
      %p419 = scmp.eq.s32.totalorder %s30, 0
      %p420 = por %p418, %p419
      %p421 = scmp.ne.s32.totalorder %s410, %s413
      %p422 = scmp.eq.s32.totalorder %s35, 1
      %p423 = por %p421, %p422
      %p424 = scmp.ne.s32.totalorder %s413, %s414
      %p425 = scmp.eq.s32.totalorder %s35, 0
      %p426 = por %p424, %p425
      %p427 = scmp.ne.s32.totalorder %s413, %s414
      %p428 = scmp.eq.s32.totalorder %s36, 1
      %p429 = por %p427, %p428
      %p431 = scmp.ne.s32.totalorder %s414, %s430
      %p432 = scmp.eq.s32.totalorder %s36, 0
      %p433 = por %p431, %p432
      %s435 = sadd.s32 %s434, 1
      %p438 = scmp.eq.s32.totalorder %s30, 1
      %p439 = scmp.ne.s32.totalorder %s434, %s436
      %p440 = scmp.eq.s32.totalorder %s30, 0
      %p441 = por %p439, %p440
      %p442 = scmp.ne.s32.totalorder %s434, %s436
      %p443 = scmp.eq.s32.totalorder %s35, 1
      %p444 = por %p442, %p443
      %p445 = scmp.ne.s32.totalorder %s436, %s437
      %p446 = scmp.eq.s32.totalorder %s35, 0
      %p447 = por %p445, %p446
      %p448 = scmp.ne.s32.totalorder %s436, %s437
      %p449 = scmp.eq.s32.totalorder %s36, 1
      %p450 = por %p448, %p449
      %p452 = scmp.ne.s32.totalorder %s437, %s451
      %p453 = scmp.eq.s32.totalorder %s36, 0
      %p454 = por %p452, %p453
      %s456 = sadd.s32 %s455, 1
      %p459 = scmp.eq.s32.totalorder %s30, 1
      %p460 = scmp.ne.s32.totalorder %s455, %s457
      %p461 = scmp.eq.s32.totalorder %s30, 0
      %p462 = por %p460, %p461
      %p463 = scmp.ne.s32.totalorder %s455, %s457
      %p464 = scmp.eq.s32.totalorder %s35, 1
      %p465 = por %p463, %p464
      %p466 = scmp.ne.s32.totalorder %s457, %s458
      %p467 = scmp.eq.s32.totalorder %s35, 0
      %p468 = por %p466, %p467
      %p469 = scmp.ne.s32.totalorder %s457, %s458
      %p470 = scmp.eq.s32.totalorder %s36, 1
      %p471 = por %p469, %p470
      %p473 = scmp.ne.s32.totalorder %s458, %s472
      %p474 = scmp.eq.s32.totalorder %s36, 0
      %p475 = por %p473, %p474
      %s477 = sadd.s32 %s476, 1
      %p480 = scmp.eq.s32.totalorder %s30, 1
      %p481 = scmp.ne.s32.totalorder %s476, %s478
      %p482 = scmp.eq.s32.totalorder %s30, 0
      %p483 = por %p481, %p482
      %p484 = scmp.ne.s32.totalorder %s476, %s478
      %p485 = scmp.eq.s32.totalorder %s35, 1
      %p486 = por %p484, %p485
      %p487 = scmp.ne.s32.totalorder %s478, %s479
      %p488 = scmp.eq.s32.totalorder %s35, 0
      %p489 = por %p487, %p488
      %p490 = scmp.ne.s32.totalorder %s478, %s479
      %p491 = scmp.eq.s32.totalorder %s36, 1
      %p492 = por %p490, %p491
      %p494 = scmp.ne.s32.totalorder %s479, %s493
      %p495 = scmp.eq.s32.totalorder %s36, 0
      %p496 = por %p494, %p495
      %s498 = sadd.s32 %s497, 1
      %p501 = scmp.eq.s32.totalorder %s30, 1
      %p502 = scmp.ne.s32.totalorder %s497, %s499
      %p503 = scmp.eq.s32.totalorder %s30, 0
      %p504 = por %p502, %p503
      %p505 = scmp.ne.s32.totalorder %s497, %s499
      %p506 = scmp.eq.s32.totalorder %s35, 1
      %p507 = por %p505, %p506
      %p508 = scmp.ne.s32.totalorder %s499, %s500
      %p509 = scmp.eq.s32.totalorder %s35, 0
      %p510 = por %p508, %p509
      %p511 = scmp.ne.s32.totalorder %s499, %s500
      %p512 = scmp.eq.s32.totalorder %s36, 1
      %p513 = por %p511, %p512
      %p515 = scmp.ne.s32.totalorder %s500, %s514
      %p516 = scmp.eq.s32.totalorder %s36, 0
      %p517 = por %p515, %p516
      %s519 = sadd.s32 %s518, 1
      %p522 = scmp.eq.s32.totalorder %s30, 1
      %p523 = scmp.ne.s32.totalorder %s518, %s520
      %p524 = scmp.eq.s32.totalorder %s30, 0
      %p525 = por %p523, %p524
      %p526 = scmp.ne.s32.totalorder %s518, %s520
      %p527 = scmp.eq.s32.totalorder %s35, 1
      %p528 = por %p526, %p527
      %p529 = scmp.ne.s32.totalorder %s520, %s521
      %p530 = scmp.eq.s32.totalorder %s35, 0
      %p531 = por %p529, %p530
      %p532 = scmp.ne.s32.totalorder %s520, %s521
      %p533 = scmp.eq.s32.totalorder %s36, 1
      %p534 = por %p532, %p533
      %p536 = scmp.ne.s32.totalorder %s521, %s535
      %p537 = scmp.eq.s32.totalorder %s36, 0
      %p538 = por %p536, %p537
      %p539 = scmp.le.s32.totalorder 1, %s30
      %p540 = scmp.lt.s32.totalorder %s30, 3
      %p541 = pnand %p539, %p540
      %p542 = pneg %p541
      // Predicated region
      $region9: #{tpu_custom_call.1} parent=5 // pred_check
        _
      $region10: #{tpu_custom_call.1} parent=5 // pred_check_branch
        %544 = sbr.rel (%p541) target = $region12
      $region11: #{tpu_custom_call.1} parent=5 // pred_region
        %s545 = ssub.s32 %s30, 1
        // Predicated region
        $region13: #{tpu_custom_call.1} parent=11 // pred_check
          %p546 = pneg %p51
        $region14: #{tpu_custom_call.1} parent=11 // pred_check_branch
          %548 = sbr.rel (%p546) target = $region16
        $region15: #{tpu_custom_call.1} parent=11 // pred_region
          %s550 = ssub.s32 256, 256
          %551 = vsyncadd [#allocation4], %s550
          %s552 = sshll.u32 [#allocation3], 4
          %s553 = int_to_ptr.vmem [resolvable:$true] %s552
          %558 = dma.hbm_to_vmem [thread:$0]  %s0, 256, %s553, [#allocation4], 128, 128, 8
        $region16: #{tpu_custom_call.1} parent=11 // pred_fallthru
          _
        // Predicated region
        $region17: #{tpu_custom_call.1} parent=11 // pred_check
          %p559 = pneg %p72
        $region18: #{tpu_custom_call.1} parent=11 // pred_check_branch
          %561 = sbr.rel (%p559) target = $region20
        $region19: #{tpu_custom_call.1} parent=11 // pred_region
          %s563 = ssub.s32 32, 32
          %564 = vsyncadd [#allocation7], %s563
          %s565 = sshll.u32 [#allocation6], 4
          %s566 = int_to_ptr.vmem [resolvable:$true] %s565
          %571 = dma.hbm_to_vmem [thread:$0]  %s1, 32, %s566, [#allocation7], 16, 16, 1
        $region20: #{tpu_custom_call.1} parent=11 // pred_fallthru
          _
        // Predicated region
        $region21: #{tpu_custom_call.1} parent=11 // pred_check
          %p572 = pneg %p93
        $region22: #{tpu_custom_call.1} parent=11 // pred_check_branch
          %574 = sbr.rel (%p572) target = $region24
        $region23: #{tpu_custom_call.1} parent=11 // pred_region
          %s576 = ssub.s32 16, 16
          %577 = vsyncadd [#allocation7], %s576
          %s579 = sshll.u32 [#allocation8], 4
          %s580 = int_to_ptr.vmem [resolvable:$true] %s579
          %582 = dma.hbm_to_vmem [thread:$0]  %s2, 16, %s580, [#allocation7]
        $region24: #{tpu_custom_call.1} parent=11 // pred_fallthru
          _
        // Predicated region
        $region25: #{tpu_custom_call.1} parent=11 // pred_check
          %p583 = pneg %p114
        $region26: #{tpu_custom_call.1} parent=11 // pred_check_branch
          %585 = sbr.rel (%p583) target = $region28
        $region27: #{tpu_custom_call.1} parent=11 // pred_region
          %s587 = ssub.s32 16, 16
          %588 = vsyncadd [#allocation10], %s587
          %s590 = sshll.u32 [#allocation9], 4
          %s591 = int_to_ptr.vmem [resolvable:$true] %s590
          %593 = dma.hbm_to_vmem [thread:$0]  %s3, 16, %s591, [#allocation10]
        $region28: #{tpu_custom_call.1} parent=11 // pred_fallthru
          _
        // Predicated region
        $region29: #{tpu_custom_call.1} parent=11 // pred_check
          %p594 = pneg %p447
        $region30: #{tpu_custom_call.1} parent=11 // pred_check_branch
          %596 = sbr.rel (%p594) target = $region32
        $region31: #{tpu_custom_call.1} parent=11 // pred_region
          %s598 = ssub.s32 1024, 1024
          %599 = vsyncadd [#allocation7], %s598
          %s600 = sshll.u32 [#allocation15], 4
          %s601 = int_to_ptr.vmem [resolvable:$true] %s600
          %606 = dma.hbm_to_vmem [thread:$0]  %s16, 1024, %s601, [#allocation7], 64, 64, 4
        $region32: #{tpu_custom_call.1} parent=11 // pred_fallthru
          _
        // Predicated region
        $region33: #{tpu_custom_call.1} parent=11 // pred_check
          %p607 = pneg %p468
        $region34: #{tpu_custom_call.1} parent=11 // pred_check_branch
          %609 = sbr.rel (%p607) target = $region36
        $region35: #{tpu_custom_call.1} parent=11 // pred_region
          _
        $region36: #{tpu_custom_call.1} parent=11 // pred_fallthru
          _
        // Predicated region
        $region37: #{tpu_custom_call.1} parent=11 // pred_check
          %p610 = pneg %p489
        $region38: #{tpu_custom_call.1} parent=11 // pred_check_branch
          %612 = sbr.rel (%p610) target = $region40
        $region39: #{tpu_custom_call.1} parent=11 // pred_region
          %s614 = ssub.s32 1024, 1024
          %615 = vsyncadd [#allocation10], %s614
          %s616 = sshll.u32 [#allocation16], 4
          %s617 = int_to_ptr.vmem [resolvable:$true] %s616
          %622 = dma.hbm_to_vmem [thread:$0]  %s18, 1024, %s617, [#allocation10], 64, 64, 4
        $region40: #{tpu_custom_call.1} parent=11 // pred_fallthru
          _
        // Predicated region
        $region41: #{tpu_custom_call.1} parent=11 // pred_check
          %p623 = pneg %p510
        $region42: #{tpu_custom_call.1} parent=11 // pred_check_branch
          %625 = sbr.rel (%p623) target = $region44
        $region43: #{tpu_custom_call.1} parent=11 // pred_region
          _
        $region44: #{tpu_custom_call.1} parent=11 // pred_fallthru
          _
      $region12: #{tpu_custom_call.1} parent=5 // pred_fallthru
        _
      %p626 = scmp.lt.s32.totalorder %s30, 2
      // Predicated region
      $region45: #{tpu_custom_call.1} parent=5 // pred_check
        %p627 = pneg %p626
      $region46: #{tpu_custom_call.1} parent=5 // pred_check_branch
        %629 = sbr.rel (%p627) target = $region48
      $region47: #{tpu_custom_call.1} parent=5 // pred_region
        // Predicated region
        $region49: #{tpu_custom_call.1} parent=47 // pred_check
          %p630 = pneg %p134
        $region50: #{tpu_custom_call.1} parent=47 // pred_check_branch
          %632 = sbr.rel (%p630) target = $region52
        $region51: #{tpu_custom_call.1} parent=47 // pred_region
          %s633 = sand.u32 %s30, 1
          %s634 = scalar_lea.sflag [#allocation4], %s633
          %s635 = sand.u32 %s124, 1
          %s636 = smul.addr %s635, 192
          %s637 = scalar_lea.vmem [#allocation11], %s636
          %s639 = ssub.s32 3072, 3072
          %640 = vsyncadd %s634, %s639
          %s641 = smul.addr %s30, 48
          %s642 = smul.addr %s641, 64
          %s643 = scalar_lea.hbm %s4, %s642
          %s644 = sshll.u32 %s637, 4
          %s645 = int_to_ptr.vmem [resolvable:$true] %s644
          %650 = dma.hbm_to_vmem [thread:$0]  %s643, 3072, %s645, %s634, 192, 192, 12
        $region52: #{tpu_custom_call.1} parent=47 // pred_fallthru
          _
        // Predicated region
        $region53: #{tpu_custom_call.1} parent=47 // pred_check
          %p651 = pneg %p160
        $region54: #{tpu_custom_call.1} parent=47 // pred_check_branch
          %653 = sbr.rel (%p651) target = $region56
        $region55: #{tpu_custom_call.1} parent=47 // pred_region
          %p654 = scmp.lt.s32.totalorder %s30, 1
          %s655 = scalar_select %p654, %s30, 1
          %s656 = smul.addr %s655, 3
          %s657 = scalar_lea.vmem %s5, %s656
        $region56: #{tpu_custom_call.1} parent=47 // pred_fallthru
          _
        // Predicated region
        $region57: #{tpu_custom_call.1} parent=47 // pred_check
          %p658 = pneg %p186
        $region58: #{tpu_custom_call.1} parent=47 // pred_check_branch
          %660 = sbr.rel (%p658) target = $region60
        $region59: #{tpu_custom_call.1} parent=47 // pred_region
          %s661 = sand.u32 %s30, 1
          %s662 = scalar_lea.sflag [#allocation4], %s661
          %s663 = sand.u32 %s176, 1
          %s664 = smul.addr %s663, 64
          %s665 = scalar_lea.vmem [#allocation12], %s664
          %s667 = ssub.s32 1024, 1024
          %668 = vsyncadd %s662, %s667
          %s669 = smul.addr %s30, 16
          %s670 = smul.addr %s669, 64
          %s671 = scalar_lea.hbm %s6, %s670
          %s672 = sshll.u32 %s665, 4
          %s673 = int_to_ptr.vmem [resolvable:$true] %s672
          %678 = dma.hbm_to_vmem [thread:$0]  %s671, 1024, %s673, %s662, 64, 64, 4
        $region60: #{tpu_custom_call.1} parent=47 // pred_fallthru
          _
        // Predicated region
        $region61: #{tpu_custom_call.1} parent=47 // pred_check
          %p679 = pneg %p212
        $region62: #{tpu_custom_call.1} parent=47 // pred_check_branch
          %681 = sbr.rel (%p679) target = $region64
        $region63: #{tpu_custom_call.1} parent=47 // pred_region
          %p682 = scmp.lt.s32.totalorder %s30, 1
          %s683 = scalar_select %p682, %s30, 1
          %s684 = scalar_lea.vmem %s7, %s683
        $region64: #{tpu_custom_call.1} parent=47 // pred_fallthru
          _
        // Predicated region
        $region65: #{tpu_custom_call.1} parent=47 // pred_check
          %p685 = pneg %p238
        $region66: #{tpu_custom_call.1} parent=47 // pred_check_branch
          %687 = sbr.rel (%p685) target = $region68
        $region67: #{tpu_custom_call.1} parent=47 // pred_region
          %p688 = scmp.lt.s32.totalorder %s30, 1
          %s689 = scalar_select %p688, %s30, 1
          %s690 = scalar_lea.vmem %s8, %s689
        $region68: #{tpu_custom_call.1} parent=47 // pred_fallthru
          _
        // Predicated region
        $region69: #{tpu_custom_call.1} parent=47 // pred_check
          %p691 = pneg %p264
        $region70: #{tpu_custom_call.1} parent=47 // pred_check_branch
          %693 = sbr.rel (%p691) target = $region72
        $region71: #{tpu_custom_call.1} parent=47 // pred_region
          %p694 = scmp.lt.s32.totalorder %s30, 1
          %s695 = scalar_select %p694, %s30, 1
          %s696 = scalar_lea.vmem %s9, %s695
        $region72: #{tpu_custom_call.1} parent=47 // pred_fallthru
          _
        // Predicated region
        $region73: #{tpu_custom_call.1} parent=47 // pred_check
          %p697 = pneg %p290
        $region74: #{tpu_custom_call.1} parent=47 // pred_check_branch
          %699 = sbr.rel (%p697) target = $region76
        $region75: #{tpu_custom_call.1} parent=47 // pred_region
          %s700 = sand.u32 %s30, 1
          %s701 = scalar_lea.sflag [#allocation4], %s700
          %s702 = sand.u32 %s280, 1
          %s703 = smul.addr %s702, 128
          %s704 = scalar_lea.vmem [#allocation13], %s703
          %s706 = ssub.s32 2048, 2048
          %707 = vsyncadd %s701, %s706
          %s708 = smul.addr %s30, 32
          %s709 = smul.addr %s708, 64
          %s710 = scalar_lea.hbm %s10, %s709
          %s711 = sshll.u32 %s704, 4
          %s712 = int_to_ptr.vmem [resolvable:$true] %s711
          %717 = dma.hbm_to_vmem [thread:$0]  %s710, 2048, %s712, %s701, 128, 128, 8
        $region76: #{tpu_custom_call.1} parent=47 // pred_fallthru
          _
        // Predicated region
        $region77: #{tpu_custom_call.1} parent=47 // pred_check
          %p718 = pneg %p316
        $region78: #{tpu_custom_call.1} parent=47 // pred_check_branch
          %720 = sbr.rel (%p718) target = $region80
        $region79: #{tpu_custom_call.1} parent=47 // pred_region
          %p721 = scmp.lt.s32.totalorder %s30, 1
          %s722 = scalar_select %p721, %s30, 1
          %s723 = smul.addr %s722, 2
          %s724 = scalar_lea.vmem %s11, %s723
        $region80: #{tpu_custom_call.1} parent=47 // pred_fallthru
          _
        // Predicated region
        $region81: #{tpu_custom_call.1} parent=47 // pred_check
          %p725 = pneg %p342
        $region82: #{tpu_custom_call.1} parent=47 // pred_check_branch
          %727 = sbr.rel (%p725) target = $region84
        $region83: #{tpu_custom_call.1} parent=47 // pred_region
          %s728 = sand.u32 %s30, 1
          %s729 = scalar_lea.sflag [#allocation4], %s728
          %s730 = sand.u32 %s332, 1
          %s731 = smul.addr %s730, 128
          %s732 = scalar_lea.vmem [#allocation14], %s731
          %s734 = ssub.s32 2048, 2048
          %735 = vsyncadd %s729, %s734
          %s736 = smul.addr %s30, 32
          %s737 = smul.addr %s736, 64
          %s738 = scalar_lea.hbm %s12, %s737
          %s739 = sshll.u32 %s732, 4
          %s740 = int_to_ptr.vmem [resolvable:$true] %s739
          %745 = dma.hbm_to_vmem [thread:$0]  %s738, 2048, %s740, %s729, 64, 64, 4
        $region84: #{tpu_custom_call.1} parent=47 // pred_fallthru
          _
        // Predicated region
        $region85: #{tpu_custom_call.1} parent=47 // pred_check
          %p746 = pneg %p368
        $region86: #{tpu_custom_call.1} parent=47 // pred_check_branch
          %748 = sbr.rel (%p746) target = $region88
        $region87: #{tpu_custom_call.1} parent=47 // pred_region
          %p749 = scmp.lt.s32.totalorder %s30, 1
          %s750 = scalar_select %p749, %s30, 1
          %s751 = scalar_lea.vmem %s13, %s750
        $region88: #{tpu_custom_call.1} parent=47 // pred_fallthru
          _
        // Predicated region
        $region89: #{tpu_custom_call.1} parent=47 // pred_check
          %p752 = pneg %p394
        $region90: #{tpu_custom_call.1} parent=47 // pred_check_branch
          %754 = sbr.rel (%p752) target = $region92
        $region91: #{tpu_custom_call.1} parent=47 // pred_region
          %p755 = scmp.lt.s32.totalorder %s30, 1
          %s756 = scalar_select %p755, %s30, 1
          %s757 = scalar_lea.vmem %s14, %s756
        $region92: #{tpu_custom_call.1} parent=47 // pred_fallthru
          _
        // Predicated region
        $region93: #{tpu_custom_call.1} parent=47 // pred_check
          %p758 = pneg %p420
        $region94: #{tpu_custom_call.1} parent=47 // pred_check_branch
          %760 = sbr.rel (%p758) target = $region96
        $region95: #{tpu_custom_call.1} parent=47 // pred_region
          %p761 = scmp.lt.s32.totalorder %s30, 1
          %s762 = scalar_select %p761, %s30, 1
          %s763 = scalar_lea.vmem %s15, %s762
        $region96: #{tpu_custom_call.1} parent=47 // pred_fallthru
          _
      $region48: #{tpu_custom_call.1} parent=5 // pred_fallthru
        _
      %p764 = scmp.le.s32.totalorder 1, %s30
      %p765 = scmp.lt.s32.totalorder %s30, 3
      %p766 = pnand %p764, %p765
      %p767 = pneg %p766
      // Predicated region
      $region97: #{tpu_custom_call.1} parent=5 // pred_check
        _
      $region98: #{tpu_custom_call.1} parent=5 // pred_check_branch
        %769 = sbr.rel (%p766) target = $region100
      $region99: #{tpu_custom_call.1} parent=5 // pred_region
        %s770 = ssub.s32 %s30, 1
        // Predicated region
        $region101: #{tpu_custom_call.1} parent=99 // pred_check
          %p771 = pneg %p51
        $region102: #{tpu_custom_call.1} parent=99 // pred_check_branch
          %773 = sbr.rel (%p771) target = $region104
        $region103: #{tpu_custom_call.1} parent=99 // pred_region
          %774 = dma.done [#allocation4], 256
        $region104: #{tpu_custom_call.1} parent=99 // pred_fallthru
          _
        // Predicated region
        $region105: #{tpu_custom_call.1} parent=99 // pred_check
          %p775 = pneg %p72
        $region106: #{tpu_custom_call.1} parent=99 // pred_check_branch
          %777 = sbr.rel (%p775) target = $region108
        $region107: #{tpu_custom_call.1} parent=99 // pred_region
          %778 = dma.done [#allocation7], 32
        $region108: #{tpu_custom_call.1} parent=99 // pred_fallthru
          _
        // Predicated region
        $region109: #{tpu_custom_call.1} parent=99 // pred_check
          %p779 = pneg %p93
        $region110: #{tpu_custom_call.1} parent=99 // pred_check_branch
          %781 = sbr.rel (%p779) target = $region112
        $region111: #{tpu_custom_call.1} parent=99 // pred_region
          %782 = dma.done [#allocation7], 16
        $region112: #{tpu_custom_call.1} parent=99 // pred_fallthru
          _
        // Predicated region
        $region113: #{tpu_custom_call.1} parent=99 // pred_check
          %p783 = pneg %p114
        $region114: #{tpu_custom_call.1} parent=99 // pred_check_branch
          %785 = sbr.rel (%p783) target = $region116
        $region115: #{tpu_custom_call.1} parent=99 // pred_region
          %786 = dma.done [#allocation10], 16
        $region116: #{tpu_custom_call.1} parent=99 // pred_fallthru
          _
        %s787 = sand.u32 %s35, 1
        %s788 = scalar_lea.sflag [#allocation4], %s787
        %s789 = sand.u32 %s127, 1
        %s790 = smul.addr %s789, 192
        %s791 = scalar_lea.vmem [#allocation11], %s790
        // Predicated region
        $region117: #{tpu_custom_call.1} parent=99 // pred_check
          %p792 = pneg %p140
        $region118: #{tpu_custom_call.1} parent=99 // pred_check_branch
          %794 = sbr.rel (%p792) target = $region120
        $region119: #{tpu_custom_call.1} parent=99 // pred_region
          %795 = dma.done %s788, 3072
        $region120: #{tpu_custom_call.1} parent=99 // pred_fallthru
          _
        %s796 = sand.u32 %s35, 1
        %s797 = scalar_lea.sflag [#allocation4], %s796
        %s798 = sand.u32 %s179, 1
        %s799 = smul.addr %s798, 64
        %s800 = scalar_lea.vmem [#allocation12], %s799
        // Predicated region
        $region121: #{tpu_custom_call.1} parent=99 // pred_check
          %p801 = pneg %p192
        $region122: #{tpu_custom_call.1} parent=99 // pred_check_branch
          %803 = sbr.rel (%p801) target = $region124
        $region123: #{tpu_custom_call.1} parent=99 // pred_region
          %804 = dma.done %s797, 1024
        $region124: #{tpu_custom_call.1} parent=99 // pred_fallthru
          _
        %s805 = sand.u32 %s35, 1
        %s806 = scalar_lea.sflag [#allocation4], %s805
        %s807 = sand.u32 %s283, 1
        %s808 = smul.addr %s807, 128
        %s809 = scalar_lea.vmem [#allocation13], %s808
        // Predicated region
        $region125: #{tpu_custom_call.1} parent=99 // pred_check
          %p810 = pneg %p296
        $region126: #{tpu_custom_call.1} parent=99 // pred_check_branch
          %812 = sbr.rel (%p810) target = $region128
        $region127: #{tpu_custom_call.1} parent=99 // pred_region
          %813 = dma.done %s806, 2048
        $region128: #{tpu_custom_call.1} parent=99 // pred_fallthru
          _
        %s814 = sand.u32 %s35, 1
        %s815 = scalar_lea.sflag [#allocation4], %s814
        %s816 = sand.u32 %s335, 1
        %s817 = smul.addr %s816, 128
        %s818 = scalar_lea.vmem [#allocation14], %s817
        // Predicated region
        $region129: #{tpu_custom_call.1} parent=99 // pred_check
          %p819 = pneg %p348
        $region130: #{tpu_custom_call.1} parent=99 // pred_check_branch
          %821 = sbr.rel (%p819) target = $region132
        $region131: #{tpu_custom_call.1} parent=99 // pred_region
          %822 = dma.done %s815, 2048
        $region132: #{tpu_custom_call.1} parent=99 // pred_fallthru
          _
        // Predicated region
        $region133: #{tpu_custom_call.1} parent=99 // pred_check
          %p823 = pneg %p447
        $region134: #{tpu_custom_call.1} parent=99 // pred_check_branch
          %825 = sbr.rel (%p823) target = $region136
        $region135: #{tpu_custom_call.1} parent=99 // pred_region
          %826 = dma.done [#allocation7], 1024
        $region136: #{tpu_custom_call.1} parent=99 // pred_fallthru
          _
        // Predicated region
        $region137: #{tpu_custom_call.1} parent=99 // pred_check
          %p827 = pneg %p489
        $region138: #{tpu_custom_call.1} parent=99 // pred_check_branch
          %829 = sbr.rel (%p827) target = $region140
        $region139: #{tpu_custom_call.1} parent=99 // pred_region
          %830 = dma.done [#allocation10], 1024
        $region140: #{tpu_custom_call.1} parent=99 // pred_fallthru
          _
        %p831 = pneg %p51
        %p832 = pneg %p48
        %p833 = pneg %p72
        %p834 = pneg %p69
        %p835 = pneg %p93
        %p836 = pneg %p90
        %p837 = pneg %p114
        %p838 = pneg %p111
        %s839 = sand.u32 %s35, 1
        %s840 = scalar_lea.sflag [#allocation4], %s839
        %s841 = sand.u32 %s127, 1
        %s842 = smul.addr %s841, 192
        %s843 = scalar_lea.vmem [#allocation11], %s842
        %p844 = pneg %p140
        %p845 = pneg %p137
        %p846 = scmp.lt.s32.totalorder %s35, 1
        %s847 = scalar_select %p846, %s35, 1
        %s848 = smul.addr %s847, 3
        %s849 = scalar_lea.vmem %s5, %s848
        %p850 = pneg %p166
        %p851 = pneg %p163
        %s852 = sand.u32 %s35, 1
        %s853 = scalar_lea.sflag [#allocation4], %s852
        %s854 = sand.u32 %s179, 1
        %s855 = smul.addr %s854, 64
        %s856 = scalar_lea.vmem [#allocation12], %s855
        %p857 = pneg %p192
        %p858 = pneg %p189
        %p859 = scmp.lt.s32.totalorder %s35, 1
        %s860 = scalar_select %p859, %s35, 1
        %s861 = scalar_lea.vmem %s7, %s860
        %p862 = pneg %p218
        %p863 = pneg %p215
        %p864 = scmp.lt.s32.totalorder %s35, 1
        %s865 = scalar_select %p864, %s35, 1
        %s866 = scalar_lea.vmem %s8, %s865
        %p867 = pneg %p244
        %p868 = pneg %p241
        %p869 = scmp.lt.s32.totalorder %s35, 1
        %s870 = scalar_select %p869, %s35, 1
        %s871 = scalar_lea.vmem %s9, %s870
        %p872 = pneg %p270
        %p873 = pneg %p267
        %s874 = sand.u32 %s35, 1
        %s875 = scalar_lea.sflag [#allocation4], %s874
        %s876 = sand.u32 %s283, 1
        %s877 = smul.addr %s876, 128
        %s878 = scalar_lea.vmem [#allocation13], %s877
        %p879 = pneg %p296
        %p880 = pneg %p293
        %p881 = scmp.lt.s32.totalorder %s35, 1
        %s882 = scalar_select %p881, %s35, 1
        %s883 = smul.addr %s882, 2
        %s884 = scalar_lea.vmem %s11, %s883
        %p885 = pneg %p322
        %p886 = pneg %p319
        %s887 = sand.u32 %s35, 1
        %s888 = scalar_lea.sflag [#allocation4], %s887
        %s889 = sand.u32 %s335, 1
        %s890 = smul.addr %s889, 128
        %s891 = scalar_lea.vmem [#allocation14], %s890
        %p892 = pneg %p348
        %p893 = pneg %p345
        %p894 = scmp.lt.s32.totalorder %s35, 1
        %s895 = scalar_select %p894, %s35, 1
        %s896 = scalar_lea.vmem %s13, %s895
        %p897 = pneg %p374
        %p898 = pneg %p371
        %p899 = scmp.lt.s32.totalorder %s35, 1
        %s900 = scalar_select %p899, %s35, 1
        %s901 = scalar_lea.vmem %s14, %s900
        %p902 = pneg %p400
        %p903 = pneg %p397
        %p904 = scmp.lt.s32.totalorder %s35, 1
        %s905 = scalar_select %p904, %s35, 1
        %s906 = scalar_lea.vmem %s15, %s905
        %p907 = pneg %p426
        %p908 = pneg %p423
        %p909 = pneg %p447
        %p910 = pneg %p444
        %p911 = pneg %p468
        %p912 = pneg %p465
        %p913 = pneg %p489
        %p914 = pneg %p486
        %p915 = pneg %p510
        %p916 = pneg %p507
        %p917 = pneg %p531
        %p918 = pneg %p528
        %p919 = scmp.lt.s32.totalorder %s35, 1
        %s920 = scalar_select %p919, %s35, 1
        %s921 = smul.addr %s920, 3
        %s922 = scalar_lea.vmem %s5, %s921
        %p923 = scmp.lt.s32.totalorder %s35, 1
        %s924 = scalar_select %p923, %s35, 1
        %s925 = scalar_lea.vmem %s7, %s924
        %p926 = scmp.lt.s32.totalorder %s35, 1
        %s927 = scalar_select %p926, %s35, 1
        %s928 = scalar_lea.vmem %s8, %s927
        %p929 = scmp.lt.s32.totalorder %s35, 1
        %s930 = scalar_select %p929, %s35, 1
        %s931 = scalar_lea.vmem %s9, %s930
        %p932 = scmp.lt.s32.totalorder %s35, 1
        %s933 = scalar_select %p932, %s35, 1
        %s934 = smul.addr %s933, 2
        %s935 = scalar_lea.vmem %s11, %s934
        %p936 = scmp.lt.s32.totalorder %s35, 1
        %s937 = scalar_select %p936, %s35, 1
        %s938 = scalar_lea.vmem %s13, %s937
        %p939 = scmp.lt.s32.totalorder %s35, 1
        %s940 = scalar_select %p939, %s35, 1
        %s941 = scalar_lea.vmem %s14, %s940
        %p942 = scmp.lt.s32.totalorder %s35, 1
        %s943 = scalar_select %p942, %s35, 1
        %s944 = scalar_lea.vmem %s15, %s943
        %p946 = scmp.eq.s32.totalorder %s35, 0
        // Predicated region
        $region141: #{tpu_custom_call.1} parent=99 // pred_check
          %p947 = pneg %p946
        $region142: #{tpu_custom_call.1} parent=99 // pred_check_branch
          %949 = sbr.rel (%p947) target = $region144
        $region143: #{tpu_custom_call.1} parent=99 // pred_region
          %v950 = vld [vmem:[#allocation3] sm:$0xff]
          %v951 = vld [vmem:[#allocation3 + $0x8] sm:$0xff]
          %v952 = vld [vmem:[#allocation8] sm:$0x1]
          %v953 = vld [vmem:[#allocation9] sm:$0x1]
          %954 = vadd.xlane.f32.xlu0 %v950
          %v955 = vpop.xlane.xlu0 %954
          %956 = vadd.xlane.f32.xlu0 %v951
          %v957 = vpop.xlane.xlu0 %956
          %v958 = vrcp.pop 128.0
          %v959 = vmul.f32 %v955, %v958
          %v960 = vmul.f32 %v957, %v958
          %v961 = vsub.f32 %v950, %v959
          %v962 = vsub.f32 %v951, %v960
          %v963 = vmul.f32 %v961, %v961
          %v964 = vmul.f32 %v962, %v962
          %965 = vadd.xlane.f32.xlu0 %v963
          %v966 = vpop.xlane.xlu0 %965
          %967 = vadd.xlane.f32.xlu0 %v964
          %v968 = vpop.xlane.xlu0 %967
          %v969 = vmul.f32 %v966, %v958
          %v970 = vmul.f32 %v968, %v958
          %v971 = vadd.f32 %v969, 1e-12
          %v972 = vadd.f32 %v970, 1e-12
          %v973 = vrsqrt.pop %v971
          %v974 = vrsqrt.pop %v972
          %v975 = vmul.f32 %v961, %v973
          %v976 = vmul.f32 %v962, %v974
          %v978 = vlaneseq
          %v979 = vshrl.u32 %v978, 7
          %v980 = vsub.s32 0, %v979
          %v981 = vrot.slane %v952, %v980
          %v983 = vmul.f32 %v975, %v981
          %v984 = vmul.f32 %v976, %v981
          %v986 = vlaneseq
          %v987 = vshrl.u32 %v986, 7
          %v988 = vsub.s32 0, %v987
          %v989 = vrot.slane %v953, %v988
          %v991 = vadd.f32 %v983, %v989
          %v992 = vadd.f32 %v984, %v989
          %993 = vst [vmem:[#allocation2] sm:$0xff] %v991
          %994 = vst [vmem:[#allocation2 + $0x8] sm:$0xff] %v992
          %995 = vst [vmem:[#allocation17] sm:$0x3] 0.0
        $region144: #{tpu_custom_call.1} parent=99 // pred_fallthru
          _
        %v996 = vld [vmem:[#allocation2] sm:$0xff]
        %v997 = vld [vmem:[#allocation2 + $0x8] sm:$0xff]
        %v998 = vpack.c.bf16 %v997, %v996
        %v999 = vld [vmem:[%s791] sm:$0xff]
        %v1000 = vld [vmem:[%s791 + $0x8] sm:$0xf]
        %v1001 = vld [vmem:[%s791 + $0xc] sm:$0xff]
        %v1002 = vld [vmem:[%s791 + $0x14] sm:$0xf]
        %v1003 = vld [vmem:[%s791 + $0x18] sm:$0xff]
        %v1004 = vld [vmem:[%s791 + $0x20] sm:$0xf]
        %v1005 = vld [vmem:[%s791 + $0x24] sm:$0xff]
        %v1006 = vld [vmem:[%s791 + $0x2c] sm:$0xf]
        %v1007 = vld [vmem:[%s791 + $0x30] sm:$0xff]
        %v1008 = vld [vmem:[%s791 + $0x38] sm:$0xf]
        %v1009 = vld [vmem:[%s791 + $0x3c] sm:$0xff]
        %v1010 = vld [vmem:[%s791 + $0x44] sm:$0xf]
        %v1011 = vld [vmem:[%s791 + $0x48] sm:$0xff]
        %v1012 = vld [vmem:[%s791 + $0x50] sm:$0xf]
        %v1013 = vld [vmem:[%s791 + $0x54] sm:$0xff]
        %v1014 = vld [vmem:[%s791 + $0x5c] sm:$0xf]
        %v1015 = vld [vmem:[%s791 + $0x60] sm:$0xff]
        %v1016 = vld [vmem:[%s791 + $0x68] sm:$0xf]
        %v1017 = vld [vmem:[%s791 + $0x6c] sm:$0xff]
        %v1018 = vld [vmem:[%s791 + $0x74] sm:$0xf]
        %v1019 = vld [vmem:[%s791 + $0x78] sm:$0xff]
        %v1020 = vld [vmem:[%s791 + $0x80] sm:$0xf]
        %v1021 = vld [vmem:[%s791 + $0x84] sm:$0xff]
        %v1022 = vld [vmem:[%s791 + $0x8c] sm:$0xf]
        %v1023 = vld [vmem:[%s791 + $0x90] sm:$0xff]
        %v1024 = vld [vmem:[%s791 + $0x98] sm:$0xf]
        %v1025 = vld [vmem:[%s791 + $0x9c] sm:$0xff]
        %v1026 = vld [vmem:[%s791 + $0xa4] sm:$0xf]
        %v1027 = vld [vmem:[%s791 + $0xa8] sm:$0xff]
        %v1028 = vld [vmem:[%s791 + $0xb0] sm:$0xf]
        %v1029 = vld [vmem:[%s791 + $0xb4] sm:$0xff]
        %v1030 = vld [vmem:[%s791 + $0xbc] sm:$0xf]
        %v1031 = vld [vmem:[%s922] sm:$0x7]
        %v1033 = vlaneseq
        %v1034 = vshrl.u32 %v1033, 7
        %v1035 = vsub.s32 0, %v1034
        %v1036 = vrot.slane %v1031, %v1035
        %v1037 = vlaneseq
        %v1038 = vshrl.u32 %v1037, 7
        %v1039 = vsub.s32 1, %v1038
        %v1040 = vrot.slane %v1031, %v1039
        %v1041 = vlaneseq
        %v1042 = vshrl.u32 %v1041, 7
        %v1043 = vsub.s32 2, %v1042
        %v1044 = vrot.slane %v1031, %v1043
        %v1080 = vunpack.c.l.b16 %v999
        %v1081 = vunpack.c.h.b16 %v999
        %v1082 = vunpack.c.l.b16 %v1000
        %v1083 = vunpack.c.l.b16 %v1001
        %v1084 = vunpack.c.h.b16 %v1001
        %v1085 = vunpack.c.l.b16 %v1002
        %v1086 = vunpack.c.l.b16 %v1003
        %v1087 = vunpack.c.h.b16 %v1003
        %v1088 = vunpack.c.l.b16 %v1004
        %v1089 = vunpack.c.l.b16 %v1005
        %v1090 = vunpack.c.h.b16 %v1005
        %v1091 = vunpack.c.l.b16 %v1006
        %v1092 = vunpack.c.l.b16 %v1007
        %v1093 = vunpack.c.h.b16 %v1007
        %v1094 = vunpack.c.l.b16 %v1008
        %v1095 = vunpack.c.l.b16 %v1009
        %v1096 = vunpack.c.h.b16 %v1009
        %v1097 = vunpack.c.l.b16 %v1010
        %v1098 = vunpack.c.l.b16 %v1011
        %v1099 = vunpack.c.h.b16 %v1011
        %v1100 = vunpack.c.l.b16 %v1012
        %v1101 = vunpack.c.l.b16 %v1013
        %v1102 = vunpack.c.h.b16 %v1013
        %v1103 = vunpack.c.l.b16 %v1014
        %v1104 = vunpack.c.l.b16 %v1015
        %v1105 = vunpack.c.h.b16 %v1015
        %v1106 = vunpack.c.l.b16 %v1016
        %v1107 = vunpack.c.l.b16 %v1017
        %v1108 = vunpack.c.h.b16 %v1017
        %v1109 = vunpack.c.l.b16 %v1018
        %v1110 = vunpack.c.l.b16 %v1019
        %v1111 = vunpack.c.h.b16 %v1019
        %v1112 = vunpack.c.l.b16 %v1020
        %v1113 = vunpack.c.l.b16 %v1021
        %v1114 = vunpack.c.h.b16 %v1021
        %v1115 = vunpack.c.l.b16 %v1022
        %v1116 = vunpack.c.l.b16 %v1023
        %v1117 = vunpack.c.h.b16 %v1023
        %v1118 = vunpack.c.l.b16 %v1024
        %v1119 = vunpack.c.l.b16 %v1025
        %v1120 = vunpack.c.h.b16 %v1025
        %v1121 = vunpack.c.l.b16 %v1026
        %v1122 = vunpack.c.l.b16 %v1027
        %v1123 = vunpack.c.h.b16 %v1027
        %v1124 = vunpack.c.l.b16 %v1028
        %v1125 = vunpack.c.l.b16 %v1029
        %v1126 = vunpack.c.h.b16 %v1029
        %v1127 = vunpack.c.l.b16 %v1030
        %v1128 = vpack.c.b16 %v1083, %v1080
        %v1129 = vpack.c.b16 %v1084, %v1081
        %v1130 = vpack.c.b16 %v1085, %v1082
        %v1131 = vpack.c.b16 %v1089, %v1086
        %v1132 = vpack.c.b16 %v1090, %v1087
        %v1133 = vpack.c.b16 %v1091, %v1088
        %v1134 = vpack.c.b16 %v1095, %v1092
        %v1135 = vpack.c.b16 %v1096, %v1093
        %v1136 = vpack.c.b16 %v1097, %v1094
        %v1137 = vpack.c.b16 %v1101, %v1098
        %v1138 = vpack.c.b16 %v1102, %v1099
        %v1139 = vpack.c.b16 %v1103, %v1100
        %v1140 = vpack.c.b16 %v1107, %v1104
        %v1141 = vpack.c.b16 %v1108, %v1105
        %v1142 = vpack.c.b16 %v1109, %v1106
        %v1143 = vpack.c.b16 %v1113, %v1110
        %v1144 = vpack.c.b16 %v1114, %v1111
        %v1145 = vpack.c.b16 %v1115, %v1112
        %v1146 = vpack.c.b16 %v1119, %v1116
        %v1147 = vpack.c.b16 %v1120, %v1117
        %v1148 = vpack.c.b16 %v1121, %v1118
        %v1149 = vpack.c.b16 %v1125, %v1122
        %v1150 = vpack.c.b16 %v1126, %v1123
        %v1151 = vpack.c.b16 %v1127, %v1124
        %1176 = vmatprep.subr.bf16.mxu0 %v1150
        %1177 = vmatpush1.bf16.msra.mxu0 %v1149
        %1178 = vmatprep.subr.bf16.mxu0 %v1147
        %1179 = vmatpush1.bf16.msra.mxu0 %v1146
        %1180 = vmatprep.subr.bf16.mxu0 %v1144
        %1181 = vmatpush1.bf16.msra.mxu0 %v1143
        %1182 = vmatprep.subr.bf16.mxu0 %v1141
        %1183 = vmatpush1.bf16.msra.mxu0 %v1140
        %1184 = vmatprep.subr.bf16.mxu0 %v1138
        %1185 = vmatpush1.bf16.msra.mxu0 %v1137
        %1186 = vmatprep.subr.bf16.mxu0 %v1135
        %1187 = vmatpush1.bf16.msra.mxu0 %v1134
        %1188 = vmatprep.subr.bf16.mxu0 %v1132
        %1189 = vmatpush1.bf16.msra.mxu0 %v1131
        %1190 = vmatprep.subr.bf16.mxu0 %v1129
        %1191 = vmatpush1.bf16.msra.mxu0 %v1128
        %1192 = vmatprep.subr.bf16.mxu0 0
        %1193 = vmatpush2.bf16.msra.mxu0 0
        %1194 = vmatprep.subr.bf16.mxu0 0
        %1195 = vmatpush2.bf16.msra.mxu0 0
        %1196 = vmatprep.subr.bf16.mxu0 0
        %1197 = vmatpush2.bf16.msra.mxu0 0
        %1198 = vmatprep.subr.bf16.mxu0 0
        %1199 = vmatpush2.bf16.msra.mxu0 0
        %1200 = vmatprep.subr.bf16.mxu0 0
        %1201 = vmatpush2.bf16.msra.mxu0 0
        %1202 = vmatprep.subr.bf16.mxu0 0
        %1203 = vmatpush2.bf16.msra.mxu0 0
        %1204 = vmatprep.subr.bf16.mxu0 0
        %1205 = vmatpush2.bf16.msra.mxu0 0
        %1206 = vmatprep.subr.bf16.mxu0 0
        %1207 = vmatpush2.bf16.msra.mxu0 0
        %1208 = vmatprep.mubr.bf16.mxu0 0
        %1209 = vmatmul.mubr.bf16.gmra.mxu0 %v998
        %v1210 = vpop.f32.mrf.mxu0
        %v1211 = vadd.f32 %v1036, %v1210
        %v1212 = vpop.f32.mrf.mxu0
        %v1213 = vadd.f32 %v1040, %v1212
        %v1214 = vpop.f32.mrf.mxu0
        %v1215 = vadd.f32 %v1036, %v1214
        %v1216 = vpop.f32.mrf.mxu0
        %v1217 = vadd.f32 %v1040, %v1216
        %1218 = vdwg.mxu0
        %1219 = vmatprep.subr.bf16.mxu0 0
        %1220 = vmatpush1.bf16.msra.mxu0 %v1151
        %1221 = vmatprep.subr.bf16.mxu0 0
        %1222 = vmatpush1.bf16.msra.mxu0 %v1148
        %1223 = vmatprep.subr.bf16.mxu0 0
        %1224 = vmatpush1.bf16.msra.mxu0 %v1145
        %1225 = vmatprep.subr.bf16.mxu0 0
        %1226 = vmatpush1.bf16.msra.mxu0 %v1142
        %1227 = vmatprep.subr.bf16.mxu0 0
        %1228 = vmatpush1.bf16.msra.mxu0 %v1139
        %1229 = vmatprep.subr.bf16.mxu0 0
        %1230 = vmatpush1.bf16.msra.mxu0 %v1136
        %1231 = vmatprep.subr.bf16.mxu0 0
        %1232 = vmatpush1.bf16.msra.mxu0 %v1133
        %1233 = vmatprep.subr.bf16.mxu0 0
        %1234 = vmatpush1.bf16.msra.mxu0 %v1130
        %1235 = vmatprep.subr.bf16.mxu0 0
        %1236 = vmatpush2.bf16.msra.mxu0 0
        %1237 = vmatprep.subr.bf16.mxu0 0
        %1238 = vmatpush2.bf16.msra.mxu0 0
        %1239 = vmatprep.subr.bf16.mxu0 0
        %1240 = vmatpush2.bf16.msra.mxu0 0
        %1241 = vmatprep.subr.bf16.mxu0 0
        %1242 = vmatpush2.bf16.msra.mxu0 0
        %1243 = vmatprep.subr.bf16.mxu0 0
        %1244 = vmatpush2.bf16.msra.mxu0 0
        %1245 = vmatprep.subr.bf16.mxu0 0
        %1246 = vmatpush2.bf16.msra.mxu0 0
        %1247 = vmatprep.subr.bf16.mxu0 0
        %1248 = vmatpush2.bf16.msra.mxu0 0
        %1249 = vmatprep.subr.bf16.mxu0 0
        %1250 = vmatpush2.bf16.msra.mxu0 0
        %1251 = vmatprep.mubr.bf16.mxu0 0
        %1252 = vmatmul.mubr.bf16.gmra.mxu0 %v998
        %v1253 = vpop.f32.mrf.mxu0
        %v1254 = vadd.f32 %v1044, %v1253
        %v1255 = vpop.f32.mrf.mxu0
        %v1256 = vpop.f32.mrf.mxu0
        %v1257 = vadd.f32 %v1044, %v1256
        %v1258 = vpop.f32.mrf.mxu0
        %1259 = vdwg.mxu0
        %v1260 = vmul.f32 %v1211, 0.17677669
        %v1261 = vmul.f32 %v1215, 0.17677669
        %v1262 = vld [vmem:[#allocation6] sm:$0x1]
        %v1263 = vld [vmem:[#allocation6 + $0x1] sm:$0x1]
        %v1266 = vlaneseq
        %v1267 = vshrl.u32 %v1266, 7
        %v1268 = vsub.s32 0, %v1267
        %v1269 = vrot.slane %v1262, %v1268
        %v1270 = vlaneseq
        %v1271 = vshrl.u32 %v1270, 7
        %v1272 = vsub.s32 0, %v1271
        %v1273 = vrot.slane %v1263, %v1272
        %v1276 = vpack.c.bf16 %v1260, %v1260
        %v1277 = vpack.c.bf16 %v1261, %v1261
        %v1278 = vpack.c.bf16 %v1213, %v1213
        %v1279 = vpack.c.bf16 %v1217, %v1217
        %v1280 = vpack.c.bf16 %v1254, %v1254
        %v1281 = vpack.c.bf16 %v1257, %v1257
        %vm1282 = vcmask 261120
        %v1284 = vsel %vm1282, %v1276, 0
        %v1287 = vsel %vm1282, %v1278, 0
        %1289 = vmatprep.subr.bf16.mxu0 0
        %1290 = vmatpush1.bf16.xpose.msra.mxu0 0
        %1291 = vmatprep.subr.bf16.mxu0 0
        %1292 = vmatpush1.bf16.xpose.msra.mxu0 0
        %1293 = vmatprep.subr.bf16.mxu0 0
        %1294 = vmatpush1.bf16.xpose.msra.mxu0 0
        %1295 = vmatprep.subr.bf16.mxu0 0
        %1296 = vmatpush1.bf16.xpose.msra.mxu0 0
        %1297 = vmatprep.subr.bf16.mxu0 0
        %1298 = vmatpush1.bf16.xpose.msra.mxu0 0
        %1299 = vmatprep.subr.bf16.mxu0 0
        %1300 = vmatpush1.bf16.xpose.msra.mxu0 0
        %1301 = vmatprep.subr.bf16.mxu0 0
        %1302 = vmatpush1.bf16.xpose.msra.mxu0 0
        %1303 = vmatprep.subr.bf16.mxu0 0
        %1304 = vmatpush1.bf16.xpose.msra.mxu0 %v1287
        %1305 = vmatprep.subr.bf16.mxu0 0
        %1306 = vmatpush2.bf16.xpose.msra.mxu0 0
        %1307 = vmatprep.subr.bf16.mxu0 0
        %1308 = vmatpush2.bf16.xpose.msra.mxu0 0
        %1309 = vmatprep.subr.bf16.mxu0 0
        %1310 = vmatpush2.bf16.xpose.msra.mxu0 0
        %1311 = vmatprep.subr.bf16.mxu0 0
        %1312 = vmatpush2.bf16.xpose.msra.mxu0 0
        %1313 = vmatprep.subr.bf16.mxu0 0
        %1314 = vmatpush2.bf16.xpose.msra.mxu0 0
        %1315 = vmatprep.subr.bf16.mxu0 0
        %1316 = vmatpush2.bf16.xpose.msra.mxu0 0
        %1317 = vmatprep.subr.bf16.mxu0 0
        %1318 = vmatpush2.bf16.xpose.msra.mxu0 0
        %1319 = vmatprep.subr.bf16.mxu0 0
        %1320 = vmatpush2.bf16.xpose.msra.mxu0 0
        %1321 = vmatprep.mubr.bf16.mxu0 0
        %1322 = vmatmul.mubr.bf16.gmra.mxu0 %v1284
        %v1323 = vpop.f32.mrf.mxu0
        %v1324 = vadd.f32 %v1269, %v1323
        %v1325 = vpop.f32.mrf.mxu0
        %v1326 = vpop.f32.mrf.mxu0
        %v1327 = vpop.f32.mrf.mxu0
        %1328 = vdwg.mxu0
        %v1330 = vsel %vm1282, %v1277, 0
        %v1333 = vsel %vm1282, %v1279, 0
        %1335 = vmatprep.subr.bf16.mxu0 0
        %1336 = vmatpush1.bf16.xpose.msra.mxu0 0
        %1337 = vmatprep.subr.bf16.mxu0 0
        %1338 = vmatpush1.bf16.xpose.msra.mxu0 0
        %1339 = vmatprep.subr.bf16.mxu0 0
        %1340 = vmatpush1.bf16.xpose.msra.mxu0 0
        %1341 = vmatprep.subr.bf16.mxu0 0
        %1342 = vmatpush1.bf16.xpose.msra.mxu0 0
        %1343 = vmatprep.subr.bf16.mxu0 0
        %1344 = vmatpush1.bf16.xpose.msra.mxu0 0
        %1345 = vmatprep.subr.bf16.mxu0 0
        %1346 = vmatpush1.bf16.xpose.msra.mxu0 0
        %1347 = vmatprep.subr.bf16.mxu0 0
        %1348 = vmatpush1.bf16.xpose.msra.mxu0 0
        %1349 = vmatprep.subr.bf16.mxu0 0
        %1350 = vmatpush1.bf16.xpose.msra.mxu0 %v1333
        %1351 = vmatprep.subr.bf16.mxu0 0
        %1352 = vmatpush2.bf16.xpose.msra.mxu0 0
        %1353 = vmatprep.subr.bf16.mxu0 0
        %1354 = vmatpush2.bf16.xpose.msra.mxu0 0
        %1355 = vmatprep.subr.bf16.mxu0 0
        %1356 = vmatpush2.bf16.xpose.msra.mxu0 0
        %1357 = vmatprep.subr.bf16.mxu0 0
        %1358 = vmatpush2.bf16.xpose.msra.mxu0 0
        %1359 = vmatprep.subr.bf16.mxu0 0
        %1360 = vmatpush2.bf16.xpose.msra.mxu0 0
        %1361 = vmatprep.subr.bf16.mxu0 0
        %1362 = vmatpush2.bf16.xpose.msra.mxu0 0
        %1363 = vmatprep.subr.bf16.mxu0 0
        %1364 = vmatpush2.bf16.xpose.msra.mxu0 0
        %1365 = vmatprep.subr.bf16.mxu0 0
        %1366 = vmatpush2.bf16.xpose.msra.mxu0 0
        %1367 = vmatprep.mubr.bf16.mxu0 0
        %1368 = vmatmul.mubr.bf16.gmra.mxu0 %v1330
        %v1369 = vpop.f32.mrf.mxu0
        %v1370 = vadd.f32 %v1273, %v1369
        %v1371 = vpop.f32.mrf.mxu0
        %v1372 = vpop.f32.mrf.mxu0
        %v1373 = vpop.f32.mrf.mxu0
        %1374 = vdwg.mxu0
        %vm1375 = vcmask 64512
        %v1376 = vsel %vm1375, %v1324, -inf
        %1377 = vmax.xlane.f32.xlu0 %v1376
        %v1378 = vpop.xlane.xlu0 %1377
        %v1379 = vsel %vm1375, %v1370, -inf
        %1380 = vmax.xlane.f32.xlu0 %v1379
        %v1381 = vpop.xlane.xlu0 %1380
        %v1382 = vsub.f32 %v1324, %v1378
        %v1383 = vsub.f32 %v1370, %v1381
        %v1384 = vmul.f32 %v1382, 1.442695
        %v1385 = vpow.pop %v1384
        %v1386 = vmul.f32 %v1383, 1.442695
        %v1387 = vpow.pop %v1386
        %v1388 = vsel %vm1375, %v1385, 0.0
        %1389 = vadd.xlane.f32.xlu0 %v1388
        %v1390 = vpop.xlane.xlu0 %1389
        %v1391 = vsel %vm1375, %v1387, 0.0
        %1392 = vadd.xlane.f32.xlu0 %v1391
        %v1393 = vpop.xlane.xlu0 %1392
        %v1394 = vrcp.pop %v1390
        %v1395 = vrcp.pop %v1393
        %v1396 = vmul.f32 %v1385, %v1394
        %v1397 = vmul.f32 %v1387, %v1395
        %v1398 = vpack.c.bf16 %v1396, %v1396
        %v1399 = vpack.c.bf16 %v1397, %v1397
        %v1401 = vsel %vm1375, %v1398, 0
        %vm1403 = vcmask 1043456
        %v1405 = vsel %vm1403, %v1280, 0
        %1407 = vmatprep.subr.bf16.mxu0 0
        %1408 = vmatpush1.bf16.msra.mxu0 0
        %1409 = vmatprep.subr.bf16.mxu0 0
        %1410 = vmatpush1.bf16.msra.mxu0 0
        %1411 = vmatprep.subr.bf16.mxu0 0
        %1412 = vmatpush1.bf16.msra.mxu0 0
        %1413 = vmatprep.subr.bf16.mxu0 0
        %1414 = vmatpush1.bf16.msra.mxu0 0
        %1415 = vmatprep.subr.bf16.mxu0 0
        %1416 = vmatpush1.bf16.msra.mxu0 0
        %1417 = vmatprep.subr.bf16.mxu0 0
        %1418 = vmatpush1.bf16.msra.mxu0 0
        %1419 = vmatprep.subr.bf16.mxu0 0
        %1420 = vmatpush1.bf16.msra.mxu0 0
        %1421 = vmatprep.subr.bf16.mxu0 0
        %1422 = vmatpush1.bf16.msra.mxu0 %v1405
        %1423 = vmatprep.subr.bf16.mxu0 0
        %1424 = vmatpush2.bf16.msra.mxu0 0
        %1425 = vmatprep.subr.bf16.mxu0 0
        %1426 = vmatpush2.bf16.msra.mxu0 0
        %1427 = vmatprep.subr.bf16.mxu0 0
        %1428 = vmatpush2.bf16.msra.mxu0 0
        %1429 = vmatprep.subr.bf16.mxu0 0
        %1430 = vmatpush2.bf16.msra.mxu0 0
        %1431 = vmatprep.subr.bf16.mxu0 0
        %1432 = vmatpush2.bf16.msra.mxu0 0
        %1433 = vmatprep.subr.bf16.mxu0 0
        %1434 = vmatpush2.bf16.msra.mxu0 0
        %1435 = vmatprep.subr.bf16.mxu0 0
        %1436 = vmatpush2.bf16.msra.mxu0 0
        %1437 = vmatprep.subr.bf16.mxu0 0
        %1438 = vmatpush2.bf16.msra.mxu0 0
        %1439 = vmatprep.mubr.bf16.mxu0 0
        %1440 = vmatmul.mubr.bf16.gmra.mxu0 %v1401
        %v1441 = vpop.f32.mrf.mxu0
        %v1442 = vadd.f32 0.0, %v1441
        %v1443 = vpop.f32.mrf.mxu0
        %v1444 = vpop.f32.mrf.mxu0
        %v1445 = vpop.f32.mrf.mxu0
        %1446 = vdwg.mxu0
        %v1448 = vsel %vm1375, %v1399, 0
        %v1451 = vsel %vm1403, %v1281, 0
        %1453 = vmatprep.subr.bf16.mxu0 0
        %1454 = vmatpush1.bf16.msra.mxu0 0
        %1455 = vmatprep.subr.bf16.mxu0 0
        %1456 = vmatpush1.bf16.msra.mxu0 0
        %1457 = vmatprep.subr.bf16.mxu0 0
        %1458 = vmatpush1.bf16.msra.mxu0 0
        %1459 = vmatprep.subr.bf16.mxu0 0
        %1460 = vmatpush1.bf16.msra.mxu0 0
        %1461 = vmatprep.subr.bf16.mxu0 0
        %1462 = vmatpush1.bf16.msra.mxu0 0
        %1463 = vmatprep.subr.bf16.mxu0 0
        %1464 = vmatpush1.bf16.msra.mxu0 0
        %1465 = vmatprep.subr.bf16.mxu0 0
        %1466 = vmatpush1.bf16.msra.mxu0 0
        %1467 = vmatprep.subr.bf16.mxu0 0
        %1468 = vmatpush1.bf16.msra.mxu0 %v1451
        %1469 = vmatprep.subr.bf16.mxu0 0
        %1470 = vmatpush2.bf16.msra.mxu0 0
        %1471 = vmatprep.subr.bf16.mxu0 0
        %1472 = vmatpush2.bf16.msra.mxu0 0
        %1473 = vmatprep.subr.bf16.mxu0 0
        %1474 = vmatpush2.bf16.msra.mxu0 0
        %1475 = vmatprep.subr.bf16.mxu0 0
        %1476 = vmatpush2.bf16.msra.mxu0 0
        %1477 = vmatprep.subr.bf16.mxu0 0
        %1478 = vmatpush2.bf16.msra.mxu0 0
        %1479 = vmatprep.subr.bf16.mxu0 0
        %1480 = vmatpush2.bf16.msra.mxu0 0
        %1481 = vmatprep.subr.bf16.mxu0 0
        %1482 = vmatpush2.bf16.msra.mxu0 0
        %1483 = vmatprep.subr.bf16.mxu0 0
        %1484 = vmatpush2.bf16.msra.mxu0 0
        %1485 = vmatprep.mubr.bf16.mxu0 0
        %1486 = vmatmul.mubr.bf16.gmra.mxu0 %v1448
        %v1487 = vpop.f32.mrf.mxu0
        %v1488 = vadd.f32 0.0, %v1487
        %v1489 = vpop.f32.mrf.mxu0
        %v1490 = vpop.f32.mrf.mxu0
        %v1491 = vpop.f32.mrf.mxu0
        %1492 = vdwg.mxu0
        %1494 = vrot.lane.b32.xlu0 %v1276, 96
        %v1495 = vpop.permute.xlu0 %1494
        %1497 = vrot.lane.b32.xlu0 %v1278, 96
        %v1498 = vpop.permute.xlu0 %1497
        %v1500 = vsel %vm1282, %v1495, 0
        %v1503 = vsel %vm1282, %v1498, 0
        %1505 = vmatprep.subr.bf16.mxu0 0
        %1506 = vmatpush1.bf16.xpose.msra.mxu0 0
        %1507 = vmatprep.subr.bf16.mxu0 0
        %1508 = vmatpush1.bf16.xpose.msra.mxu0 0
        %1509 = vmatprep.subr.bf16.mxu0 0
        %1510 = vmatpush1.bf16.xpose.msra.mxu0 0
        %1511 = vmatprep.subr.bf16.mxu0 0
        %1512 = vmatpush1.bf16.xpose.msra.mxu0 0
        %1513 = vmatprep.subr.bf16.mxu0 0
        %1514 = vmatpush1.bf16.xpose.msra.mxu0 0
        %1515 = vmatprep.subr.bf16.mxu0 0
        %1516 = vmatpush1.bf16.xpose.msra.mxu0 0
        %1517 = vmatprep.subr.bf16.mxu0 0
        %1518 = vmatpush1.bf16.xpose.msra.mxu0 0
        %1519 = vmatprep.subr.bf16.mxu0 0
        %1520 = vmatpush1.bf16.xpose.msra.mxu0 %v1503
        %1521 = vmatprep.subr.bf16.mxu0 0
        %1522 = vmatpush2.bf16.xpose.msra.mxu0 0
        %1523 = vmatprep.subr.bf16.mxu0 0
        %1524 = vmatpush2.bf16.xpose.msra.mxu0 0
        %1525 = vmatprep.subr.bf16.mxu0 0
        %1526 = vmatpush2.bf16.xpose.msra.mxu0 0
        %1527 = vmatprep.subr.bf16.mxu0 0
        %1528 = vmatpush2.bf16.xpose.msra.mxu0 0
        %1529 = vmatprep.subr.bf16.mxu0 0
        %1530 = vmatpush2.bf16.xpose.msra.mxu0 0
        %1531 = vmatprep.subr.bf16.mxu0 0
        %1532 = vmatpush2.bf16.xpose.msra.mxu0 0
        %1533 = vmatprep.subr.bf16.mxu0 0
        %1534 = vmatpush2.bf16.xpose.msra.mxu0 0
        %1535 = vmatprep.subr.bf16.mxu0 0
        %1536 = vmatpush2.bf16.xpose.msra.mxu0 0
        %1537 = vmatprep.mubr.bf16.mxu0 0
        %1538 = vmatmul.mubr.bf16.gmra.mxu0 %v1500
        %v1539 = vpop.f32.mrf.mxu0
        %v1540 = vadd.f32 %v1269, %v1539
        %v1541 = vpop.f32.mrf.mxu0
        %v1542 = vpop.f32.mrf.mxu0
        %v1543 = vpop.f32.mrf.mxu0
        %1544 = vdwg.mxu0
        %1546 = vrot.lane.b32.xlu0 %v1277, 96
        %v1547 = vpop.permute.xlu0 %1546
        %1549 = vrot.lane.b32.xlu0 %v1279, 96
        %v1550 = vpop.permute.xlu0 %1549
        %v1552 = vsel %vm1282, %v1547, 0
        %v1555 = vsel %vm1282, %v1550, 0
        %1557 = vmatprep.subr.bf16.mxu0 0
        %1558 = vmatpush1.bf16.xpose.msra.mxu0 0
        %1559 = vmatprep.subr.bf16.mxu0 0
        %1560 = vmatpush1.bf16.xpose.msra.mxu0 0
        %1561 = vmatprep.subr.bf16.mxu0 0
        %1562 = vmatpush1.bf16.xpose.msra.mxu0 0
        %1563 = vmatprep.subr.bf16.mxu0 0
        %1564 = vmatpush1.bf16.xpose.msra.mxu0 0
        %1565 = vmatprep.subr.bf16.mxu0 0
        %1566 = vmatpush1.bf16.xpose.msra.mxu0 0
        %1567 = vmatprep.subr.bf16.mxu0 0
        %1568 = vmatpush1.bf16.xpose.msra.mxu0 0
        %1569 = vmatprep.subr.bf16.mxu0 0
        %1570 = vmatpush1.bf16.xpose.msra.mxu0 0
        %1571 = vmatprep.subr.bf16.mxu0 0
        %1572 = vmatpush1.bf16.xpose.msra.mxu0 %v1555
        %1573 = vmatprep.subr.bf16.mxu0 0
        %1574 = vmatpush2.bf16.xpose.msra.mxu0 0
        %1575 = vmatprep.subr.bf16.mxu0 0
        %1576 = vmatpush2.bf16.xpose.msra.mxu0 0
        %1577 = vmatprep.subr.bf16.mxu0 0
        %1578 = vmatpush2.bf16.xpose.msra.mxu0 0
        %1579 = vmatprep.subr.bf16.mxu0 0
        %1580 = vmatpush2.bf16.xpose.msra.mxu0 0
        %1581 = vmatprep.subr.bf16.mxu0 0
        %1582 = vmatpush2.bf16.xpose.msra.mxu0 0
        %1583 = vmatprep.subr.bf16.mxu0 0
        %1584 = vmatpush2.bf16.xpose.msra.mxu0 0
        %1585 = vmatprep.subr.bf16.mxu0 0
        %1586 = vmatpush2.bf16.xpose.msra.mxu0 0
        %1587 = vmatprep.subr.bf16.mxu0 0
        %1588 = vmatpush2.bf16.xpose.msra.mxu0 0
        %1589 = vmatprep.mubr.bf16.mxu0 0
        %1590 = vmatmul.mubr.bf16.gmra.mxu0 %v1552
        %v1591 = vpop.f32.mrf.mxu0
        %v1592 = vadd.f32 %v1273, %v1591
        %v1593 = vpop.f32.mrf.mxu0
        %v1594 = vpop.f32.mrf.mxu0
        %v1595 = vpop.f32.mrf.mxu0
        %1596 = vdwg.mxu0
        %v1597 = vsel %vm1375, %v1540, -inf
        %1598 = vmax.xlane.f32.xlu0 %v1597
        %v1599 = vpop.xlane.xlu0 %1598
        %v1600 = vsel %vm1375, %v1592, -inf
        %1601 = vmax.xlane.f32.xlu0 %v1600
        %v1602 = vpop.xlane.xlu0 %1601
        %v1603 = vsub.f32 %v1540, %v1599
        %v1604 = vsub.f32 %v1592, %v1602
        %v1605 = vmul.f32 %v1603, 1.442695
        %v1606 = vpow.pop %v1605
        %v1607 = vmul.f32 %v1604, 1.442695
        %v1608 = vpow.pop %v1607
        %v1609 = vsel %vm1375, %v1606, 0.0
        %1610 = vadd.xlane.f32.xlu0 %v1609
        %v1611 = vpop.xlane.xlu0 %1610
        %v1612 = vsel %vm1375, %v1608, 0.0
        %1613 = vadd.xlane.f32.xlu0 %v1612
        %v1614 = vpop.xlane.xlu0 %1613
        %v1615 = vrcp.pop %v1611
        %v1616 = vrcp.pop %v1614
        %v1617 = vmul.f32 %v1606, %v1615
        %v1618 = vmul.f32 %v1608, %v1616
        %v1619 = vpack.c.bf16 %v1617, %v1617
        %v1620 = vpack.c.bf16 %v1618, %v1618
        %1622 = vrot.lane.b32.xlu0 %v1280, 96
        %v1623 = vpop.permute.xlu0 %1622
        %v1625 = vsel %vm1375, %v1619, 0
        %v1628 = vsel %vm1403, %v1623, 0
        %1630 = vmatprep.subr.bf16.mxu0 0
        %1631 = vmatpush1.bf16.msra.mxu0 0
        %1632 = vmatprep.subr.bf16.mxu0 0
        %1633 = vmatpush1.bf16.msra.mxu0 0
        %1634 = vmatprep.subr.bf16.mxu0 0
        %1635 = vmatpush1.bf16.msra.mxu0 0
        %1636 = vmatprep.subr.bf16.mxu0 0
        %1637 = vmatpush1.bf16.msra.mxu0 0
        %1638 = vmatprep.subr.bf16.mxu0 0
        %1639 = vmatpush1.bf16.msra.mxu0 0
        %1640 = vmatprep.subr.bf16.mxu0 0
        %1641 = vmatpush1.bf16.msra.mxu0 0
        %1642 = vmatprep.subr.bf16.mxu0 0
        %1643 = vmatpush1.bf16.msra.mxu0 0
        %1644 = vmatprep.subr.bf16.mxu0 0
        %1645 = vmatpush1.bf16.msra.mxu0 %v1628
        %1646 = vmatprep.subr.bf16.mxu0 0
        %1647 = vmatpush2.bf16.msra.mxu0 0
        %1648 = vmatprep.subr.bf16.mxu0 0
        %1649 = vmatpush2.bf16.msra.mxu0 0
        %1650 = vmatprep.subr.bf16.mxu0 0
        %1651 = vmatpush2.bf16.msra.mxu0 0
        %1652 = vmatprep.subr.bf16.mxu0 0
        %1653 = vmatpush2.bf16.msra.mxu0 0
        %1654 = vmatprep.subr.bf16.mxu0 0
        %1655 = vmatpush2.bf16.msra.mxu0 0
        %1656 = vmatprep.subr.bf16.mxu0 0
        %1657 = vmatpush2.bf16.msra.mxu0 0
        %1658 = vmatprep.subr.bf16.mxu0 0
        %1659 = vmatpush2.bf16.msra.mxu0 0
        %1660 = vmatprep.subr.bf16.mxu0 0
        %1661 = vmatpush2.bf16.msra.mxu0 0
        %1662 = vmatprep.mubr.bf16.mxu0 0
        %1663 = vmatmul.mubr.bf16.gmra.mxu0 %v1625
        %v1664 = vpop.f32.mrf.mxu0
        %v1665 = vadd.f32 0.0, %v1664
        %v1666 = vpop.f32.mrf.mxu0
        %v1667 = vpop.f32.mrf.mxu0
        %v1668 = vpop.f32.mrf.mxu0
        %1669 = vdwg.mxu0
        %1671 = vrot.lane.b32.xlu0 %v1281, 96
        %v1672 = vpop.permute.xlu0 %1671
        %v1674 = vsel %vm1375, %v1620, 0
        %v1677 = vsel %vm1403, %v1672, 0
        %1679 = vmatprep.subr.bf16.mxu0 0
        %1680 = vmatpush1.bf16.msra.mxu0 0
        %1681 = vmatprep.subr.bf16.mxu0 0
        %1682 = vmatpush1.bf16.msra.mxu0 0
        %1683 = vmatprep.subr.bf16.mxu0 0
        %1684 = vmatpush1.bf16.msra.mxu0 0
        %1685 = vmatprep.subr.bf16.mxu0 0
        %1686 = vmatpush1.bf16.msra.mxu0 0
        %1687 = vmatprep.subr.bf16.mxu0 0
        %1688 = vmatpush1.bf16.msra.mxu0 0
        %1689 = vmatprep.subr.bf16.mxu0 0
        %1690 = vmatpush1.bf16.msra.mxu0 0
        %1691 = vmatprep.subr.bf16.mxu0 0
        %1692 = vmatpush1.bf16.msra.mxu0 0
        %1693 = vmatprep.subr.bf16.mxu0 0
        %1694 = vmatpush1.bf16.msra.mxu0 %v1677
        %1695 = vmatprep.subr.bf16.mxu0 0
        %1696 = vmatpush2.bf16.msra.mxu0 0
        %1697 = vmatprep.subr.bf16.mxu0 0
        %1698 = vmatpush2.bf16.msra.mxu0 0
        %1699 = vmatprep.subr.bf16.mxu0 0
        %1700 = vmatpush2.bf16.msra.mxu0 0
        %1701 = vmatprep.subr.bf16.mxu0 0
        %1702 = vmatpush2.bf16.msra.mxu0 0
        %1703 = vmatprep.subr.bf16.mxu0 0
        %1704 = vmatpush2.bf16.msra.mxu0 0
        %1705 = vmatprep.subr.bf16.mxu0 0
        %1706 = vmatpush2.bf16.msra.mxu0 0
        %1707 = vmatprep.subr.bf16.mxu0 0
        %1708 = vmatpush2.bf16.msra.mxu0 0
        %1709 = vmatprep.subr.bf16.mxu0 0
        %1710 = vmatpush2.bf16.msra.mxu0 0
        %1711 = vmatprep.mubr.bf16.mxu0 0
        %1712 = vmatmul.mubr.bf16.gmra.mxu0 %v1674
        %v1713 = vpop.f32.mrf.mxu0
        %v1714 = vadd.f32 0.0, %v1713
        %v1715 = vpop.f32.mrf.mxu0
        %v1716 = vpop.f32.mrf.mxu0
        %v1717 = vpop.f32.mrf.mxu0
        %1718 = vdwg.mxu0
        %1719 = vrot.lane.b32.xlu0 %v1276, 64
        %v1720 = vpop.permute.xlu0 %1719
        %1721 = vrot.lane.b32.xlu0 %v1278, 64
        %v1722 = vpop.permute.xlu0 %1721
        %v1724 = vsel %vm1282, %v1720, 0
        %v1727 = vsel %vm1282, %v1722, 0
        %1729 = vmatprep.subr.bf16.mxu0 0
        %1730 = vmatpush1.bf16.xpose.msra.mxu0 0
        %1731 = vmatprep.subr.bf16.mxu0 0
        %1732 = vmatpush1.bf16.xpose.msra.mxu0 0
        %1733 = vmatprep.subr.bf16.mxu0 0
        %1734 = vmatpush1.bf16.xpose.msra.mxu0 0
        %1735 = vmatprep.subr.bf16.mxu0 0
        %1736 = vmatpush1.bf16.xpose.msra.mxu0 0
        %1737 = vmatprep.subr.bf16.mxu0 0
        %1738 = vmatpush1.bf16.xpose.msra.mxu0 0
        %1739 = vmatprep.subr.bf16.mxu0 0
        %1740 = vmatpush1.bf16.xpose.msra.mxu0 0
        %1741 = vmatprep.subr.bf16.mxu0 0
        %1742 = vmatpush1.bf16.xpose.msra.mxu0 0
        %1743 = vmatprep.subr.bf16.mxu0 0
        %1744 = vmatpush1.bf16.xpose.msra.mxu0 %v1727
        %1745 = vmatprep.subr.bf16.mxu0 0
        %1746 = vmatpush2.bf16.xpose.msra.mxu0 0
        %1747 = vmatprep.subr.bf16.mxu0 0
        %1748 = vmatpush2.bf16.xpose.msra.mxu0 0
        %1749 = vmatprep.subr.bf16.mxu0 0
        %1750 = vmatpush2.bf16.xpose.msra.mxu0 0
        %1751 = vmatprep.subr.bf16.mxu0 0
        %1752 = vmatpush2.bf16.xpose.msra.mxu0 0
        %1753 = vmatprep.subr.bf16.mxu0 0
        %1754 = vmatpush2.bf16.xpose.msra.mxu0 0
        %1755 = vmatprep.subr.bf16.mxu0 0
        %1756 = vmatpush2.bf16.xpose.msra.mxu0 0
        %1757 = vmatprep.subr.bf16.mxu0 0
        %1758 = vmatpush2.bf16.xpose.msra.mxu0 0
        %1759 = vmatprep.subr.bf16.mxu0 0
        %1760 = vmatpush2.bf16.xpose.msra.mxu0 0
        %1761 = vmatprep.mubr.bf16.mxu0 0
        %1762 = vmatmul.mubr.bf16.gmra.mxu0 %v1724
        %v1763 = vpop.f32.mrf.mxu0
        %v1764 = vadd.f32 %v1269, %v1763
        %v1765 = vpop.f32.mrf.mxu0
        %v1766 = vpop.f32.mrf.mxu0
        %v1767 = vpop.f32.mrf.mxu0
        %1768 = vdwg.mxu0
        %1769 = vrot.lane.b32.xlu0 %v1277, 64
        %v1770 = vpop.permute.xlu0 %1769
        %1771 = vrot.lane.b32.xlu0 %v1279, 64
        %v1772 = vpop.permute.xlu0 %1771
        %v1774 = vsel %vm1282, %v1770, 0
        %v1777 = vsel %vm1282, %v1772, 0
        %1779 = vmatprep.subr.bf16.mxu0 0
        %1780 = vmatpush1.bf16.xpose.msra.mxu0 0
        %1781 = vmatprep.subr.bf16.mxu0 0
        %1782 = vmatpush1.bf16.xpose.msra.mxu0 0
        %1783 = vmatprep.subr.bf16.mxu0 0
        %1784 = vmatpush1.bf16.xpose.msra.mxu0 0
        %1785 = vmatprep.subr.bf16.mxu0 0
        %1786 = vmatpush1.bf16.xpose.msra.mxu0 0
        %1787 = vmatprep.subr.bf16.mxu0 0
        %1788 = vmatpush1.bf16.xpose.msra.mxu0 0
        %1789 = vmatprep.subr.bf16.mxu0 0
        %1790 = vmatpush1.bf16.xpose.msra.mxu0 0
        %1791 = vmatprep.subr.bf16.mxu0 0
        %1792 = vmatpush1.bf16.xpose.msra.mxu0 0
        %1793 = vmatprep.subr.bf16.mxu0 0
        %1794 = vmatpush1.bf16.xpose.msra.mxu0 %v1777
        %1795 = vmatprep.subr.bf16.mxu0 0
        %1796 = vmatpush2.bf16.xpose.msra.mxu0 0
        %1797 = vmatprep.subr.bf16.mxu0 0
        %1798 = vmatpush2.bf16.xpose.msra.mxu0 0
        %1799 = vmatprep.subr.bf16.mxu0 0
        %1800 = vmatpush2.bf16.xpose.msra.mxu0 0
        %1801 = vmatprep.subr.bf16.mxu0 0
        %1802 = vmatpush2.bf16.xpose.msra.mxu0 0
        %1803 = vmatprep.subr.bf16.mxu0 0
        %1804 = vmatpush2.bf16.xpose.msra.mxu0 0
        %1805 = vmatprep.subr.bf16.mxu0 0
        %1806 = vmatpush2.bf16.xpose.msra.mxu0 0
        %1807 = vmatprep.subr.bf16.mxu0 0
        %1808 = vmatpush2.bf16.xpose.msra.mxu0 0
        %1809 = vmatprep.subr.bf16.mxu0 0
        %1810 = vmatpush2.bf16.xpose.msra.mxu0 0
        %1811 = vmatprep.mubr.bf16.mxu0 0
        %1812 = vmatmul.mubr.bf16.gmra.mxu0 %v1774
        %v1813 = vpop.f32.mrf.mxu0
        %v1814 = vadd.f32 %v1273, %v1813
        %v1815 = vpop.f32.mrf.mxu0
        %v1816 = vpop.f32.mrf.mxu0
        %v1817 = vpop.f32.mrf.mxu0
        %1818 = vdwg.mxu0
        %v1819 = vsel %vm1375, %v1764, -inf
        %1820 = vmax.xlane.f32.xlu0 %v1819
        %v1821 = vpop.xlane.xlu0 %1820
        %v1822 = vsel %vm1375, %v1814, -inf
        %1823 = vmax.xlane.f32.xlu0 %v1822
        %v1824 = vpop.xlane.xlu0 %1823
        %v1825 = vsub.f32 %v1764, %v1821
        %v1826 = vsub.f32 %v1814, %v1824
        %v1827 = vmul.f32 %v1825, 1.442695
        %v1828 = vpow.pop %v1827
        %v1829 = vmul.f32 %v1826, 1.442695
        %v1830 = vpow.pop %v1829
        %v1831 = vsel %vm1375, %v1828, 0.0
        %1832 = vadd.xlane.f32.xlu0 %v1831
        %v1833 = vpop.xlane.xlu0 %1832
        %v1834 = vsel %vm1375, %v1830, 0.0
        %1835 = vadd.xlane.f32.xlu0 %v1834
        %v1836 = vpop.xlane.xlu0 %1835
        %v1837 = vrcp.pop %v1833
        %v1838 = vrcp.pop %v1836
        %v1839 = vmul.f32 %v1828, %v1837
        %v1840 = vmul.f32 %v1830, %v1838
        %v1841 = vpack.c.bf16 %v1839, %v1839
        %v1842 = vpack.c.bf16 %v1840, %v1840
        %1843 = vrot.lane.b32.xlu0 %v1280, 64
        %v1844 = vpop.permute.xlu0 %1843
        %v1846 = vsel %vm1375, %v1841, 0
        %v1849 = vsel %vm1403, %v1844, 0
        %1851 = vmatprep.subr.bf16.mxu0 0
        %1852 = vmatpush1.bf16.msra.mxu0 0
        %1853 = vmatprep.subr.bf16.mxu0 0
        %1854 = vmatpush1.bf16.msra.mxu0 0
        %1855 = vmatprep.subr.bf16.mxu0 0
        %1856 = vmatpush1.bf16.msra.mxu0 0
        %1857 = vmatprep.subr.bf16.mxu0 0
        %1858 = vmatpush1.bf16.msra.mxu0 0
        %1859 = vmatprep.subr.bf16.mxu0 0
        %1860 = vmatpush1.bf16.msra.mxu0 0
        %1861 = vmatprep.subr.bf16.mxu0 0
        %1862 = vmatpush1.bf16.msra.mxu0 0
        %1863 = vmatprep.subr.bf16.mxu0 0
        %1864 = vmatpush1.bf16.msra.mxu0 0
        %1865 = vmatprep.subr.bf16.mxu0 0
        %1866 = vmatpush1.bf16.msra.mxu0 %v1849
        %1867 = vmatprep.subr.bf16.mxu0 0
        %1868 = vmatpush2.bf16.msra.mxu0 0
        %1869 = vmatprep.subr.bf16.mxu0 0
        %1870 = vmatpush2.bf16.msra.mxu0 0
        %1871 = vmatprep.subr.bf16.mxu0 0
        %1872 = vmatpush2.bf16.msra.mxu0 0
        %1873 = vmatprep.subr.bf16.mxu0 0
        %1874 = vmatpush2.bf16.msra.mxu0 0
        %1875 = vmatprep.subr.bf16.mxu0 0
        %1876 = vmatpush2.bf16.msra.mxu0 0
        %1877 = vmatprep.subr.bf16.mxu0 0
        %1878 = vmatpush2.bf16.msra.mxu0 0
        %1879 = vmatprep.subr.bf16.mxu0 0
        %1880 = vmatpush2.bf16.msra.mxu0 0
        %1881 = vmatprep.subr.bf16.mxu0 0
        %1882 = vmatpush2.bf16.msra.mxu0 0
        %1883 = vmatprep.mubr.bf16.mxu0 0
        %1884 = vmatmul.mubr.bf16.gmra.mxu0 %v1846
        %v1885 = vpop.f32.mrf.mxu0
        %v1886 = vadd.f32 0.0, %v1885
        %v1887 = vpop.f32.mrf.mxu0
        %v1888 = vpop.f32.mrf.mxu0
        %v1889 = vpop.f32.mrf.mxu0
        %1890 = vdwg.mxu0
        %1891 = vrot.lane.b32.xlu0 %v1281, 64
        %v1892 = vpop.permute.xlu0 %1891
        %v1894 = vsel %vm1375, %v1842, 0
        %v1897 = vsel %vm1403, %v1892, 0
        %1899 = vmatprep.subr.bf16.mxu0 0
        %1900 = vmatpush1.bf16.msra.mxu0 0
        %1901 = vmatprep.subr.bf16.mxu0 0
        %1902 = vmatpush1.bf16.msra.mxu0 0
        %1903 = vmatprep.subr.bf16.mxu0 0
        %1904 = vmatpush1.bf16.msra.mxu0 0
        %1905 = vmatprep.subr.bf16.mxu0 0
        %1906 = vmatpush1.bf16.msra.mxu0 0
        %1907 = vmatprep.subr.bf16.mxu0 0
        %1908 = vmatpush1.bf16.msra.mxu0 0
        %1909 = vmatprep.subr.bf16.mxu0 0
        %1910 = vmatpush1.bf16.msra.mxu0 0
        %1911 = vmatprep.subr.bf16.mxu0 0
        %1912 = vmatpush1.bf16.msra.mxu0 0
        %1913 = vmatprep.subr.bf16.mxu0 0
        %1914 = vmatpush1.bf16.msra.mxu0 %v1897
        %1915 = vmatprep.subr.bf16.mxu0 0
        %1916 = vmatpush2.bf16.msra.mxu0 0
        %1917 = vmatprep.subr.bf16.mxu0 0
        %1918 = vmatpush2.bf16.msra.mxu0 0
        %1919 = vmatprep.subr.bf16.mxu0 0
        %1920 = vmatpush2.bf16.msra.mxu0 0
        %1921 = vmatprep.subr.bf16.mxu0 0
        %1922 = vmatpush2.bf16.msra.mxu0 0
        %1923 = vmatprep.subr.bf16.mxu0 0
        %1924 = vmatpush2.bf16.msra.mxu0 0
        %1925 = vmatprep.subr.bf16.mxu0 0
        %1926 = vmatpush2.bf16.msra.mxu0 0
        %1927 = vmatprep.subr.bf16.mxu0 0
        %1928 = vmatpush2.bf16.msra.mxu0 0
        %1929 = vmatprep.subr.bf16.mxu0 0
        %1930 = vmatpush2.bf16.msra.mxu0 0
        %1931 = vmatprep.mubr.bf16.mxu0 0
        %1932 = vmatmul.mubr.bf16.gmra.mxu0 %v1894
        %v1933 = vpop.f32.mrf.mxu0
        %v1934 = vadd.f32 0.0, %v1933
        %v1935 = vpop.f32.mrf.mxu0
        %v1936 = vpop.f32.mrf.mxu0
        %v1937 = vpop.f32.mrf.mxu0
        %1938 = vdwg.mxu0
        %1939 = vrot.lane.b32.xlu0 %v1276, 32
        %v1940 = vpop.permute.xlu0 %1939
        %1941 = vrot.lane.b32.xlu0 %v1278, 32
        %v1942 = vpop.permute.xlu0 %1941
        %v1944 = vsel %vm1282, %v1940, 0
        %v1947 = vsel %vm1282, %v1942, 0
        %1949 = vmatprep.subr.bf16.mxu0 0
        %1950 = vmatpush1.bf16.xpose.msra.mxu0 0
        %1951 = vmatprep.subr.bf16.mxu0 0
        %1952 = vmatpush1.bf16.xpose.msra.mxu0 0
        %1953 = vmatprep.subr.bf16.mxu0 0
        %1954 = vmatpush1.bf16.xpose.msra.mxu0 0
        %1955 = vmatprep.subr.bf16.mxu0 0
        %1956 = vmatpush1.bf16.xpose.msra.mxu0 0
        %1957 = vmatprep.subr.bf16.mxu0 0
        %1958 = vmatpush1.bf16.xpose.msra.mxu0 0
        %1959 = vmatprep.subr.bf16.mxu0 0
        %1960 = vmatpush1.bf16.xpose.msra.mxu0 0
        %1961 = vmatprep.subr.bf16.mxu0 0
        %1962 = vmatpush1.bf16.xpose.msra.mxu0 0
        %1963 = vmatprep.subr.bf16.mxu0 0
        %1964 = vmatpush1.bf16.xpose.msra.mxu0 %v1947
        %1965 = vmatprep.subr.bf16.mxu0 0
        %1966 = vmatpush2.bf16.xpose.msra.mxu0 0
        %1967 = vmatprep.subr.bf16.mxu0 0
        %1968 = vmatpush2.bf16.xpose.msra.mxu0 0
        %1969 = vmatprep.subr.bf16.mxu0 0
        %1970 = vmatpush2.bf16.xpose.msra.mxu0 0
        %1971 = vmatprep.subr.bf16.mxu0 0
        %1972 = vmatpush2.bf16.xpose.msra.mxu0 0
        %1973 = vmatprep.subr.bf16.mxu0 0
        %1974 = vmatpush2.bf16.xpose.msra.mxu0 0
        %1975 = vmatprep.subr.bf16.mxu0 0
        %1976 = vmatpush2.bf16.xpose.msra.mxu0 0
        %1977 = vmatprep.subr.bf16.mxu0 0
        %1978 = vmatpush2.bf16.xpose.msra.mxu0 0
        %1979 = vmatprep.subr.bf16.mxu0 0
        %1980 = vmatpush2.bf16.xpose.msra.mxu0 0
        %1981 = vmatprep.mubr.bf16.mxu0 0
        %1982 = vmatmul.mubr.bf16.gmra.mxu0 %v1944
        %v1983 = vpop.f32.mrf.mxu0
        %v1984 = vadd.f32 %v1269, %v1983
        %v1985 = vpop.f32.mrf.mxu0
        %v1986 = vpop.f32.mrf.mxu0
        %v1987 = vpop.f32.mrf.mxu0
        %1988 = vdwg.mxu0
        %1989 = vrot.lane.b32.xlu0 %v1277, 32
        %v1990 = vpop.permute.xlu0 %1989
        %1991 = vrot.lane.b32.xlu0 %v1279, 32
        %v1992 = vpop.permute.xlu0 %1991
        %v1994 = vsel %vm1282, %v1990, 0
        %v1997 = vsel %vm1282, %v1992, 0
        %1999 = vmatprep.subr.bf16.mxu0 0
        %2000 = vmatpush1.bf16.xpose.msra.mxu0 0
        %2001 = vmatprep.subr.bf16.mxu0 0
        %2002 = vmatpush1.bf16.xpose.msra.mxu0 0
        %2003 = vmatprep.subr.bf16.mxu0 0
        %2004 = vmatpush1.bf16.xpose.msra.mxu0 0
        %2005 = vmatprep.subr.bf16.mxu0 0
        %2006 = vmatpush1.bf16.xpose.msra.mxu0 0
        %2007 = vmatprep.subr.bf16.mxu0 0
        %2008 = vmatpush1.bf16.xpose.msra.mxu0 0
        %2009 = vmatprep.subr.bf16.mxu0 0
        %2010 = vmatpush1.bf16.xpose.msra.mxu0 0
        %2011 = vmatprep.subr.bf16.mxu0 0
        %2012 = vmatpush1.bf16.xpose.msra.mxu0 0
        %2013 = vmatprep.subr.bf16.mxu0 0
        %2014 = vmatpush1.bf16.xpose.msra.mxu0 %v1997
        %2015 = vmatprep.subr.bf16.mxu0 0
        %2016 = vmatpush2.bf16.xpose.msra.mxu0 0
        %2017 = vmatprep.subr.bf16.mxu0 0
        %2018 = vmatpush2.bf16.xpose.msra.mxu0 0
        %2019 = vmatprep.subr.bf16.mxu0 0
        %2020 = vmatpush2.bf16.xpose.msra.mxu0 0
        %2021 = vmatprep.subr.bf16.mxu0 0
        %2022 = vmatpush2.bf16.xpose.msra.mxu0 0
        %2023 = vmatprep.subr.bf16.mxu0 0
        %2024 = vmatpush2.bf16.xpose.msra.mxu0 0
        %2025 = vmatprep.subr.bf16.mxu0 0
        %2026 = vmatpush2.bf16.xpose.msra.mxu0 0
        %2027 = vmatprep.subr.bf16.mxu0 0
        %2028 = vmatpush2.bf16.xpose.msra.mxu0 0
        %2029 = vmatprep.subr.bf16.mxu0 0
        %2030 = vmatpush2.bf16.xpose.msra.mxu0 0
        %2031 = vmatprep.mubr.bf16.mxu0 0
        %2032 = vmatmul.mubr.bf16.gmra.mxu0 %v1994
        %v2033 = vpop.f32.mrf.mxu0
        %v2034 = vadd.f32 %v1273, %v2033
        %v2035 = vpop.f32.mrf.mxu0
        %v2036 = vpop.f32.mrf.mxu0
        %v2037 = vpop.f32.mrf.mxu0
        %2038 = vdwg.mxu0
        %v2039 = vsel %vm1375, %v1984, -inf
        %2040 = vmax.xlane.f32.xlu0 %v2039
        %v2041 = vpop.xlane.xlu0 %2040
        %v2042 = vsel %vm1375, %v2034, -inf
        %2043 = vmax.xlane.f32.xlu0 %v2042
        %v2044 = vpop.xlane.xlu0 %2043
        %v2045 = vsub.f32 %v1984, %v2041
        %v2046 = vsub.f32 %v2034, %v2044
        %v2047 = vmul.f32 %v2045, 1.442695
        %v2048 = vpow.pop %v2047
        %v2049 = vmul.f32 %v2046, 1.442695
        %v2050 = vpow.pop %v2049
        %v2051 = vsel %vm1375, %v2048, 0.0
        %2052 = vadd.xlane.f32.xlu0 %v2051
        %v2053 = vpop.xlane.xlu0 %2052
        %v2054 = vsel %vm1375, %v2050, 0.0
        %2055 = vadd.xlane.f32.xlu0 %v2054
        %v2056 = vpop.xlane.xlu0 %2055
        %v2057 = vrcp.pop %v2053
        %v2058 = vrcp.pop %v2056
        %v2059 = vmul.f32 %v2048, %v2057
        %v2060 = vmul.f32 %v2050, %v2058
        %v2061 = vpack.c.bf16 %v2059, %v2059
        %v2062 = vpack.c.bf16 %v2060, %v2060
        %2063 = vrot.lane.b32.xlu0 %v1280, 32
        %v2064 = vpop.permute.xlu0 %2063
        %v2066 = vsel %vm1375, %v2061, 0
        %v2069 = vsel %vm1403, %v2064, 0
        %2071 = vmatprep.subr.bf16.mxu0 0
        %2072 = vmatpush1.bf16.msra.mxu0 0
        %2073 = vmatprep.subr.bf16.mxu0 0
        %2074 = vmatpush1.bf16.msra.mxu0 0
        %2075 = vmatprep.subr.bf16.mxu0 0
        %2076 = vmatpush1.bf16.msra.mxu0 0
        %2077 = vmatprep.subr.bf16.mxu0 0
        %2078 = vmatpush1.bf16.msra.mxu0 0
        %2079 = vmatprep.subr.bf16.mxu0 0
        %2080 = vmatpush1.bf16.msra.mxu0 0
        %2081 = vmatprep.subr.bf16.mxu0 0
        %2082 = vmatpush1.bf16.msra.mxu0 0
        %2083 = vmatprep.subr.bf16.mxu0 0
        %2084 = vmatpush1.bf16.msra.mxu0 0
        %2085 = vmatprep.subr.bf16.mxu0 0
        %2086 = vmatpush1.bf16.msra.mxu0 %v2069
        %2087 = vmatprep.subr.bf16.mxu0 0
        %2088 = vmatpush2.bf16.msra.mxu0 0
        %2089 = vmatprep.subr.bf16.mxu0 0
        %2090 = vmatpush2.bf16.msra.mxu0 0
        %2091 = vmatprep.subr.bf16.mxu0 0
        %2092 = vmatpush2.bf16.msra.mxu0 0
        %2093 = vmatprep.subr.bf16.mxu0 0
        %2094 = vmatpush2.bf16.msra.mxu0 0
        %2095 = vmatprep.subr.bf16.mxu0 0
        %2096 = vmatpush2.bf16.msra.mxu0 0
        %2097 = vmatprep.subr.bf16.mxu0 0
        %2098 = vmatpush2.bf16.msra.mxu0 0
        %2099 = vmatprep.subr.bf16.mxu0 0
        %2100 = vmatpush2.bf16.msra.mxu0 0
        %2101 = vmatprep.subr.bf16.mxu0 0
        %2102 = vmatpush2.bf16.msra.mxu0 0
        %2103 = vmatprep.mubr.bf16.mxu0 0
        %2104 = vmatmul.mubr.bf16.gmra.mxu0 %v2066
        %v2105 = vpop.f32.mrf.mxu0
        %v2106 = vadd.f32 0.0, %v2105
        %v2107 = vpop.f32.mrf.mxu0
        %v2108 = vpop.f32.mrf.mxu0
        %v2109 = vpop.f32.mrf.mxu0
        %2110 = vdwg.mxu0
        %2111 = vrot.lane.b32.xlu0 %v1281, 32
        %v2112 = vpop.permute.xlu0 %2111
        %v2114 = vsel %vm1375, %v2062, 0
        %v2117 = vsel %vm1403, %v2112, 0
        %2119 = vmatprep.subr.bf16.mxu0 0
        %2120 = vmatpush1.bf16.msra.mxu0 0
        %2121 = vmatprep.subr.bf16.mxu0 0
        %2122 = vmatpush1.bf16.msra.mxu0 0
        %2123 = vmatprep.subr.bf16.mxu0 0
        %2124 = vmatpush1.bf16.msra.mxu0 0
        %2125 = vmatprep.subr.bf16.mxu0 0
        %2126 = vmatpush1.bf16.msra.mxu0 0
        %2127 = vmatprep.subr.bf16.mxu0 0
        %2128 = vmatpush1.bf16.msra.mxu0 0
        %2129 = vmatprep.subr.bf16.mxu0 0
        %2130 = vmatpush1.bf16.msra.mxu0 0
        %2131 = vmatprep.subr.bf16.mxu0 0
        %2132 = vmatpush1.bf16.msra.mxu0 0
        %2133 = vmatprep.subr.bf16.mxu0 0
        %2134 = vmatpush1.bf16.msra.mxu0 %v2117
        %2135 = vmatprep.subr.bf16.mxu0 0
        %2136 = vmatpush2.bf16.msra.mxu0 0
        %2137 = vmatprep.subr.bf16.mxu0 0
        %2138 = vmatpush2.bf16.msra.mxu0 0
        %2139 = vmatprep.subr.bf16.mxu0 0
        %2140 = vmatpush2.bf16.msra.mxu0 0
        %2141 = vmatprep.subr.bf16.mxu0 0
        %2142 = vmatpush2.bf16.msra.mxu0 0
        %2143 = vmatprep.subr.bf16.mxu0 0
        %2144 = vmatpush2.bf16.msra.mxu0 0
        %2145 = vmatprep.subr.bf16.mxu0 0
        %2146 = vmatpush2.bf16.msra.mxu0 0
        %2147 = vmatprep.subr.bf16.mxu0 0
        %2148 = vmatpush2.bf16.msra.mxu0 0
        %2149 = vmatprep.subr.bf16.mxu0 0
        %2150 = vmatpush2.bf16.msra.mxu0 0
        %2151 = vmatprep.mubr.bf16.mxu0 0
        %2152 = vmatmul.mubr.bf16.gmra.mxu0 %v2114
        %v2153 = vpop.f32.mrf.mxu0
        %v2154 = vadd.f32 0.0, %v2153
        %v2155 = vpop.f32.mrf.mxu0
        %v2156 = vpop.f32.mrf.mxu0
        %v2157 = vpop.f32.mrf.mxu0
        %2158 = vdwg.mxu0
        %2161 = vrot.lane.b32.xlu0 %v1665, 32
        %v2162 = vpop.permute.xlu0 %2161
        %2163 = vrot.lane.b32.xlu0 %v1714, 32
        %v2164 = vpop.permute.xlu0 %2163
        %2169 = vrot.lane.b32.xlu0 %v1886, 64
        %v2170 = vpop.permute.xlu0 %2169
        %2171 = vrot.lane.b32.xlu0 %v1934, 64
        %v2172 = vpop.permute.xlu0 %2171
        %2177 = vrot.lane.b32.xlu0 %v2106, 96
        %v2178 = vpop.permute.xlu0 %2177
        %2179 = vrot.lane.b32.xlu0 %v2154, 96
        %v2180 = vpop.permute.xlu0 %2179
        %v2183 = vsel %vm1282, %v1442, %v2162
        %v2184 = vsel %vm1282, %v1488, %v2164
        %vm2185 = vcmask 523264
        %v2186 = vsel %vm2185, %v2183, %v2170
        %v2187 = vsel %vm2185, %v2184, %v2172
        %vm2188 = vcmask 785408
        %v2189 = vsel %vm2188, %v2186, %v2178
        %v2190 = vsel %vm2188, %v2187, %v2180
        %v2191 = vpack.c.bf16 %v2190, %v2189
        %v2192 = vld [vmem:[%s800] sm:$0xf]
        %v2193 = vld [vmem:[%s800 + $0x4] sm:$0xf]
        %v2194 = vld [vmem:[%s800 + $0x8] sm:$0xf]
        %v2195 = vld [vmem:[%s800 + $0xc] sm:$0xf]
        %v2196 = vld [vmem:[%s800 + $0x10] sm:$0xf]
        %v2197 = vld [vmem:[%s800 + $0x14] sm:$0xf]
        %v2198 = vld [vmem:[%s800 + $0x18] sm:$0xf]
        %v2199 = vld [vmem:[%s800 + $0x1c] sm:$0xf]
        %v2200 = vld [vmem:[%s800 + $0x20] sm:$0xf]
        %v2201 = vld [vmem:[%s800 + $0x24] sm:$0xf]
        %v2202 = vld [vmem:[%s800 + $0x28] sm:$0xf]
        %v2203 = vld [vmem:[%s800 + $0x2c] sm:$0xf]
        %v2204 = vld [vmem:[%s800 + $0x30] sm:$0xf]
        %v2205 = vld [vmem:[%s800 + $0x34] sm:$0xf]
        %v2206 = vld [vmem:[%s800 + $0x38] sm:$0xf]
        %v2207 = vld [vmem:[%s800 + $0x3c] sm:$0xf]
        %v2208 = vld [vmem:[%s925] sm:$0x1]
        %v2210 = vlaneseq
        %v2211 = vshrl.u32 %v2210, 7
        %v2212 = vsub.s32 0, %v2211
        %v2213 = vrot.slane %v2208, %v2212
        %v2231 = vunpack.c.l.b16 %v2192
        %v2232 = vunpack.c.l.b16 %v2193
        %v2233 = vunpack.c.l.b16 %v2194
        %v2234 = vunpack.c.l.b16 %v2195
        %v2235 = vunpack.c.l.b16 %v2196
        %v2236 = vunpack.c.l.b16 %v2197
        %v2237 = vunpack.c.l.b16 %v2198
        %v2238 = vunpack.c.l.b16 %v2199
        %v2239 = vunpack.c.l.b16 %v2200
        %v2240 = vunpack.c.l.b16 %v2201
        %v2241 = vunpack.c.l.b16 %v2202
        %v2242 = vunpack.c.l.b16 %v2203
        %v2243 = vunpack.c.l.b16 %v2204
        %v2244 = vunpack.c.l.b16 %v2205
        %v2245 = vunpack.c.l.b16 %v2206
        %v2246 = vunpack.c.l.b16 %v2207
        %v2247 = vpack.c.b16 %v2232, %v2231
        %v2248 = vpack.c.b16 %v2234, %v2233
        %v2249 = vpack.c.b16 %v2236, %v2235
        %v2250 = vpack.c.b16 %v2238, %v2237
        %v2251 = vpack.c.b16 %v2240, %v2239
        %v2252 = vpack.c.b16 %v2242, %v2241
        %v2253 = vpack.c.b16 %v2244, %v2243
        %v2254 = vpack.c.b16 %v2246, %v2245
        %2263 = vmatprep.subr.bf16.mxu0 0
        %2264 = vmatpush1.bf16.msra.mxu0 %v2254
        %2265 = vmatprep.subr.bf16.mxu0 0
        %2266 = vmatpush1.bf16.msra.mxu0 %v2253
        %2267 = vmatprep.subr.bf16.mxu0 0
        %2268 = vmatpush1.bf16.msra.mxu0 %v2252
        %2269 = vmatprep.subr.bf16.mxu0 0
        %2270 = vmatpush1.bf16.msra.mxu0 %v2251
        %2271 = vmatprep.subr.bf16.mxu0 0
        %2272 = vmatpush1.bf16.msra.mxu0 %v2250
        %2273 = vmatprep.subr.bf16.mxu0 0
        %2274 = vmatpush1.bf16.msra.mxu0 %v2249
        %2275 = vmatprep.subr.bf16.mxu0 0
        %2276 = vmatpush1.bf16.msra.mxu0 %v2248
        %2277 = vmatprep.subr.bf16.mxu0 0
        %2278 = vmatpush1.bf16.msra.mxu0 %v2247
        %2279 = vmatprep.subr.bf16.mxu0 0
        %2280 = vmatpush2.bf16.msra.mxu0 0
        %2281 = vmatprep.subr.bf16.mxu0 0
        %2282 = vmatpush2.bf16.msra.mxu0 0
        %2283 = vmatprep.subr.bf16.mxu0 0
        %2284 = vmatpush2.bf16.msra.mxu0 0
        %2285 = vmatprep.subr.bf16.mxu0 0
        %2286 = vmatpush2.bf16.msra.mxu0 0
        %2287 = vmatprep.subr.bf16.mxu0 0
        %2288 = vmatpush2.bf16.msra.mxu0 0
        %2289 = vmatprep.subr.bf16.mxu0 0
        %2290 = vmatpush2.bf16.msra.mxu0 0
        %2291 = vmatprep.subr.bf16.mxu0 0
        %2292 = vmatpush2.bf16.msra.mxu0 0
        %2293 = vmatprep.subr.bf16.mxu0 0
        %2294 = vmatpush2.bf16.msra.mxu0 0
        %2295 = vmatprep.mubr.bf16.mxu0 0
        %2296 = vmatmul.mubr.bf16.gmra.mxu0 %v2191
        %v2297 = vpop.f32.mrf.mxu0
        %v2298 = vadd.f32 %v2213, %v2297
        %v2299 = vpop.f32.mrf.mxu0
        %v2300 = vpop.f32.mrf.mxu0
        %v2301 = vadd.f32 %v2213, %v2300
        %v2302 = vpop.f32.mrf.mxu0
        %2303 = vdwg.mxu0
        %v2304 = vadd.f32 %v996, %v2298
        %v2305 = vadd.f32 %v997, %v2301
        %v2306 = vld [vmem:[%s928] sm:$0x1]
        %v2307 = vld [vmem:[%s931] sm:$0x1]
        %2308 = vadd.xlane.f32.xlu0 %v2304
        %v2309 = vpop.xlane.xlu0 %2308
        %2310 = vadd.xlane.f32.xlu0 %v2305
        %v2311 = vpop.xlane.xlu0 %2310
        %v2312 = vrcp.pop 128.0
        %v2313 = vmul.f32 %v2309, %v2312
        %v2314 = vmul.f32 %v2311, %v2312
        %v2315 = vsub.f32 %v2304, %v2313
        %v2316 = vsub.f32 %v2305, %v2314
        %v2317 = vmul.f32 %v2315, %v2315
        %v2318 = vmul.f32 %v2316, %v2316
        %2319 = vadd.xlane.f32.xlu0 %v2317
        %v2320 = vpop.xlane.xlu0 %2319
        %2321 = vadd.xlane.f32.xlu0 %v2318
        %v2322 = vpop.xlane.xlu0 %2321
        %v2323 = vmul.f32 %v2320, %v2312
        %v2324 = vmul.f32 %v2322, %v2312
        %v2325 = vadd.f32 %v2323, 1e-12
        %v2326 = vadd.f32 %v2324, 1e-12
        %v2327 = vrsqrt.pop %v2325
        %v2328 = vrsqrt.pop %v2326
        %v2329 = vmul.f32 %v2315, %v2327
        %v2330 = vmul.f32 %v2316, %v2328
        %v2332 = vlaneseq
        %v2333 = vshrl.u32 %v2332, 7
        %v2334 = vsub.s32 0, %v2333
        %v2335 = vrot.slane %v2306, %v2334
        %v2337 = vmul.f32 %v2329, %v2335
        %v2338 = vmul.f32 %v2330, %v2335
        %v2340 = vlaneseq
        %v2341 = vshrl.u32 %v2340, 7
        %v2342 = vsub.s32 0, %v2341
        %v2343 = vrot.slane %v2307, %v2342
        %v2345 = vadd.f32 %v2337, %v2343
        %v2346 = vadd.f32 %v2338, %v2343
        %v2347 = vpack.c.bf16 %v2346, %v2345
        %v2348 = vld [vmem:[%s809] sm:$0xff]
        %v2349 = vld [vmem:[%s809 + $0x8] sm:$0xff]
        %v2350 = vld [vmem:[%s809 + $0x10] sm:$0xff]
        %v2351 = vld [vmem:[%s809 + $0x18] sm:$0xff]
        %v2352 = vld [vmem:[%s809 + $0x20] sm:$0xff]
        %v2353 = vld [vmem:[%s809 + $0x28] sm:$0xff]
        %v2354 = vld [vmem:[%s809 + $0x30] sm:$0xff]
        %v2355 = vld [vmem:[%s809 + $0x38] sm:$0xff]
        %v2356 = vld [vmem:[%s809 + $0x40] sm:$0xff]
        %v2357 = vld [vmem:[%s809 + $0x48] sm:$0xff]
        %v2358 = vld [vmem:[%s809 + $0x50] sm:$0xff]
        %v2359 = vld [vmem:[%s809 + $0x58] sm:$0xff]
        %v2360 = vld [vmem:[%s809 + $0x60] sm:$0xff]
        %v2361 = vld [vmem:[%s809 + $0x68] sm:$0xff]
        %v2362 = vld [vmem:[%s809 + $0x70] sm:$0xff]
        %v2363 = vld [vmem:[%s809 + $0x78] sm:$0xff]
        %v2364 = vld [vmem:[%s935] sm:$0x3]
        %v2366 = vlaneseq
        %v2367 = vshrl.u32 %v2366, 7
        %v2368 = vsub.s32 0, %v2367
        %v2369 = vrot.slane %v2364, %v2368
        %v2370 = vlaneseq
        %v2371 = vshrl.u32 %v2370, 7
        %v2372 = vsub.s32 1, %v2371
        %v2373 = vrot.slane %v2364, %v2372
        %v2392 = vunpack.c.l.b16 %v2348
        %v2393 = vunpack.c.h.b16 %v2348
        %v2394 = vunpack.c.l.b16 %v2349
        %v2395 = vunpack.c.h.b16 %v2349
        %v2396 = vunpack.c.l.b16 %v2350
        %v2397 = vunpack.c.h.b16 %v2350
        %v2398 = vunpack.c.l.b16 %v2351
        %v2399 = vunpack.c.h.b16 %v2351
        %v2400 = vunpack.c.l.b16 %v2352
        %v2401 = vunpack.c.h.b16 %v2352
        %v2402 = vunpack.c.l.b16 %v2353
        %v2403 = vunpack.c.h.b16 %v2353
        %v2404 = vunpack.c.l.b16 %v2354
        %v2405 = vunpack.c.h.b16 %v2354
        %v2406 = vunpack.c.l.b16 %v2355
        %v2407 = vunpack.c.h.b16 %v2355
        %v2408 = vunpack.c.l.b16 %v2356
        %v2409 = vunpack.c.h.b16 %v2356
        %v2410 = vunpack.c.l.b16 %v2357
        %v2411 = vunpack.c.h.b16 %v2357
        %v2412 = vunpack.c.l.b16 %v2358
        %v2413 = vunpack.c.h.b16 %v2358
        %v2414 = vunpack.c.l.b16 %v2359
        %v2415 = vunpack.c.h.b16 %v2359
        %v2416 = vunpack.c.l.b16 %v2360
        %v2417 = vunpack.c.h.b16 %v2360
        %v2418 = vunpack.c.l.b16 %v2361
        %v2419 = vunpack.c.h.b16 %v2361
        %v2420 = vunpack.c.l.b16 %v2362
        %v2421 = vunpack.c.h.b16 %v2362
        %v2422 = vunpack.c.l.b16 %v2363
        %v2423 = vunpack.c.h.b16 %v2363
        %v2424 = vpack.c.b16 %v2394, %v2392
        %v2425 = vpack.c.b16 %v2395, %v2393
        %v2426 = vpack.c.b16 %v2398, %v2396
        %v2427 = vpack.c.b16 %v2399, %v2397
        %v2428 = vpack.c.b16 %v2402, %v2400
        %v2429 = vpack.c.b16 %v2403, %v2401
        %v2430 = vpack.c.b16 %v2406, %v2404
        %v2431 = vpack.c.b16 %v2407, %v2405
        %v2432 = vpack.c.b16 %v2410, %v2408
        %v2433 = vpack.c.b16 %v2411, %v2409
        %v2434 = vpack.c.b16 %v2414, %v2412
        %v2435 = vpack.c.b16 %v2415, %v2413
        %v2436 = vpack.c.b16 %v2418, %v2416
        %v2437 = vpack.c.b16 %v2419, %v2417
        %v2438 = vpack.c.b16 %v2422, %v2420
        %v2439 = vpack.c.b16 %v2423, %v2421
        %2456 = vmatprep.subr.bf16.mxu0 %v2439
        %2457 = vmatpush1.bf16.msra.mxu0 %v2438
        %2458 = vmatprep.subr.bf16.mxu0 %v2437
        %2459 = vmatpush1.bf16.msra.mxu0 %v2436
        %2460 = vmatprep.subr.bf16.mxu0 %v2435
        %2461 = vmatpush1.bf16.msra.mxu0 %v2434
        %2462 = vmatprep.subr.bf16.mxu0 %v2433
        %2463 = vmatpush1.bf16.msra.mxu0 %v2432
        %2464 = vmatprep.subr.bf16.mxu0 %v2431
        %2465 = vmatpush1.bf16.msra.mxu0 %v2430
        %2466 = vmatprep.subr.bf16.mxu0 %v2429
        %2467 = vmatpush1.bf16.msra.mxu0 %v2428
        %2468 = vmatprep.subr.bf16.mxu0 %v2427
        %2469 = vmatpush1.bf16.msra.mxu0 %v2426
        %2470 = vmatprep.subr.bf16.mxu0 %v2425
        %2471 = vmatpush1.bf16.msra.mxu0 %v2424
        %2472 = vmatprep.subr.bf16.mxu0 0
        %2473 = vmatpush2.bf16.msra.mxu0 0
        %2474 = vmatprep.subr.bf16.mxu0 0
        %2475 = vmatpush2.bf16.msra.mxu0 0
        %2476 = vmatprep.subr.bf16.mxu0 0
        %2477 = vmatpush2.bf16.msra.mxu0 0
        %2478 = vmatprep.subr.bf16.mxu0 0
        %2479 = vmatpush2.bf16.msra.mxu0 0
        %2480 = vmatprep.subr.bf16.mxu0 0
        %2481 = vmatpush2.bf16.msra.mxu0 0
        %2482 = vmatprep.subr.bf16.mxu0 0
        %2483 = vmatpush2.bf16.msra.mxu0 0
        %2484 = vmatprep.subr.bf16.mxu0 0
        %2485 = vmatpush2.bf16.msra.mxu0 0
        %2486 = vmatprep.subr.bf16.mxu0 0
        %2487 = vmatpush2.bf16.msra.mxu0 0
        %2488 = vmatprep.mubr.bf16.mxu0 0
        %2489 = vmatmul.mubr.bf16.gmra.mxu0 %v2347
        %v2490 = vpop.f32.mrf.mxu0
        %v2491 = vadd.f32 %v2369, %v2490
        %v2492 = vpop.f32.mrf.mxu0
        %v2493 = vadd.f32 %v2373, %v2492
        %v2494 = vpop.f32.mrf.mxu0
        %v2495 = vadd.f32 %v2369, %v2494
        %v2496 = vpop.f32.mrf.mxu0
        %v2497 = vadd.f32 %v2373, %v2496
        %2498 = vdwg.mxu0
        %v2499 = vmul.f32 %v2491, %v2491
        %v2500 = vmul.f32 %v2493, %v2493
        %v2501 = vmul.f32 %v2495, %v2495
        %v2502 = vmul.f32 %v2497, %v2497
        %v2503 = vmul.f32 %v2491, %v2499
        %v2504 = vmul.f32 %v2493, %v2500
        %v2505 = vmul.f32 %v2495, %v2501
        %v2506 = vmul.f32 %v2497, %v2502
        %v2507 = vmul.f32 %v2503, 0.044715
        %v2508 = vmul.f32 %v2504, 0.044715
        %v2509 = vmul.f32 %v2505, 0.044715
        %v2510 = vmul.f32 %v2506, 0.044715
        %v2511 = vadd.f32 %v2491, %v2507
        %v2512 = vadd.f32 %v2493, %v2508
        %v2513 = vadd.f32 %v2495, %v2509
        %v2514 = vadd.f32 %v2497, %v2510
        %v2515 = vmul.f32 %v2511, 0.7978846
        %v2516 = vmul.f32 %v2512, 0.7978846
        %v2517 = vmul.f32 %v2513, 0.7978846
        %v2518 = vmul.f32 %v2514, 0.7978846
        %v2519 = vtanh.pop %v2515
        %v2520 = vtanh.pop %v2516
        %v2521 = vtanh.pop %v2517
        %v2522 = vtanh.pop %v2518
        %v2523 = vadd.f32 %v2519, 1.0
        %v2524 = vadd.f32 %v2520, 1.0
        %v2525 = vadd.f32 %v2521, 1.0
        %v2526 = vadd.f32 %v2522, 1.0
        %v2527 = vmul.f32 %v2523, 0.5
        %v2528 = vmul.f32 %v2524, 0.5
        %v2529 = vmul.f32 %v2525, 0.5
        %v2530 = vmul.f32 %v2526, 0.5
        %v2531 = vmul.f32 %v2491, %v2527
        %v2532 = vmul.f32 %v2493, %v2528
        %v2533 = vmul.f32 %v2495, %v2529
        %v2534 = vmul.f32 %v2497, %v2530
        %v2535 = vpack.c.bf16 %v2533, %v2531
        %v2536 = vpack.c.bf16 %v2534, %v2532
        %v2537 = vld [vmem:[%s818] sm:$0xf]
        %v2538 = vld [vmem:[%s818 + $0x4] sm:$0xf]
        %v2539 = vld [vmem:[%s818 + $0x8] sm:$0xf]
        %v2540 = vld [vmem:[%s818 + $0xc] sm:$0xf]
        %v2541 = vld [vmem:[%s818 + $0x10] sm:$0xf]
        %v2542 = vld [vmem:[%s818 + $0x14] sm:$0xf]
        %v2543 = vld [vmem:[%s818 + $0x18] sm:$0xf]
        %v2544 = vld [vmem:[%s818 + $0x1c] sm:$0xf]
        %v2545 = vld [vmem:[%s818 + $0x20] sm:$0xf]
        %v2546 = vld [vmem:[%s818 + $0x24] sm:$0xf]
        %v2547 = vld [vmem:[%s818 + $0x28] sm:$0xf]
        %v2548 = vld [vmem:[%s818 + $0x2c] sm:$0xf]
        %v2549 = vld [vmem:[%s818 + $0x30] sm:$0xf]
        %v2550 = vld [vmem:[%s818 + $0x34] sm:$0xf]
        %v2551 = vld [vmem:[%s818 + $0x38] sm:$0xf]
        %v2552 = vld [vmem:[%s818 + $0x3c] sm:$0xf]
        %v2553 = vld [vmem:[%s818 + $0x40] sm:$0xf]
        %v2554 = vld [vmem:[%s818 + $0x44] sm:$0xf]
        %v2555 = vld [vmem:[%s818 + $0x48] sm:$0xf]
        %v2556 = vld [vmem:[%s818 + $0x4c] sm:$0xf]
        %v2557 = vld [vmem:[%s818 + $0x50] sm:$0xf]
        %v2558 = vld [vmem:[%s818 + $0x54] sm:$0xf]
        %v2559 = vld [vmem:[%s818 + $0x58] sm:$0xf]
        %v2560 = vld [vmem:[%s818 + $0x5c] sm:$0xf]
        %v2561 = vld [vmem:[%s818 + $0x60] sm:$0xf]
        %v2562 = vld [vmem:[%s818 + $0x64] sm:$0xf]
        %v2563 = vld [vmem:[%s818 + $0x68] sm:$0xf]
        %v2564 = vld [vmem:[%s818 + $0x6c] sm:$0xf]
        %v2565 = vld [vmem:[%s818 + $0x70] sm:$0xf]
        %v2566 = vld [vmem:[%s818 + $0x74] sm:$0xf]
        %v2567 = vld [vmem:[%s818 + $0x78] sm:$0xf]
        %v2568 = vld [vmem:[%s818 + $0x7c] sm:$0xf]
        %v2569 = vld [vmem:[%s938] sm:$0x1]
        %v2571 = vlaneseq
        %v2572 = vshrl.u32 %v2571, 7
        %v2573 = vsub.s32 0, %v2572
        %v2574 = vrot.slane %v2569, %v2573
        %v2608 = vunpack.c.l.b16 %v2537
        %v2609 = vunpack.c.l.b16 %v2538
        %v2610 = vunpack.c.l.b16 %v2539
        %v2611 = vunpack.c.l.b16 %v2540
        %v2612 = vunpack.c.l.b16 %v2541
        %v2613 = vunpack.c.l.b16 %v2542
        %v2614 = vunpack.c.l.b16 %v2543
        %v2615 = vunpack.c.l.b16 %v2544
        %v2616 = vunpack.c.l.b16 %v2545
        %v2617 = vunpack.c.l.b16 %v2546
        %v2618 = vunpack.c.l.b16 %v2547
        %v2619 = vunpack.c.l.b16 %v2548
        %v2620 = vunpack.c.l.b16 %v2549
        %v2621 = vunpack.c.l.b16 %v2550
        %v2622 = vunpack.c.l.b16 %v2551
        %v2623 = vunpack.c.l.b16 %v2552
        %v2624 = vunpack.c.l.b16 %v2553
        %v2625 = vunpack.c.l.b16 %v2554
        %v2626 = vunpack.c.l.b16 %v2555
        %v2627 = vunpack.c.l.b16 %v2556
        %v2628 = vunpack.c.l.b16 %v2557
        %v2629 = vunpack.c.l.b16 %v2558
        %v2630 = vunpack.c.l.b16 %v2559
        %v2631 = vunpack.c.l.b16 %v2560
        %v2632 = vunpack.c.l.b16 %v2561
        %v2633 = vunpack.c.l.b16 %v2562
        %v2634 = vunpack.c.l.b16 %v2563
        %v2635 = vunpack.c.l.b16 %v2564
        %v2636 = vunpack.c.l.b16 %v2565
        %v2637 = vunpack.c.l.b16 %v2566
        %v2638 = vunpack.c.l.b16 %v2567
        %v2639 = vunpack.c.l.b16 %v2568
        %v2640 = vpack.c.b16 %v2609, %v2608
        %v2641 = vpack.c.b16 %v2611, %v2610
        %v2642 = vpack.c.b16 %v2613, %v2612
        %v2643 = vpack.c.b16 %v2615, %v2614
        %v2644 = vpack.c.b16 %v2617, %v2616
        %v2645 = vpack.c.b16 %v2619, %v2618
        %v2646 = vpack.c.b16 %v2621, %v2620
        %v2647 = vpack.c.b16 %v2623, %v2622
        %v2648 = vpack.c.b16 %v2625, %v2624
        %v2649 = vpack.c.b16 %v2627, %v2626
        %v2650 = vpack.c.b16 %v2629, %v2628
        %v2651 = vpack.c.b16 %v2631, %v2630
        %v2652 = vpack.c.b16 %v2633, %v2632
        %v2653 = vpack.c.b16 %v2635, %v2634
        %v2654 = vpack.c.b16 %v2637, %v2636
        %v2655 = vpack.c.b16 %v2639, %v2638
        %2672 = vmatprep.subr.bf16.mxu0 0
        %2673 = vmatpush1.bf16.msra.mxu0 %v2647
        %2674 = vmatprep.subr.bf16.mxu0 0
        %2675 = vmatpush1.bf16.msra.mxu0 %v2646
        %2676 = vmatprep.subr.bf16.mxu0 0
        %2677 = vmatpush1.bf16.msra.mxu0 %v2645
        %2678 = vmatprep.subr.bf16.mxu0 0
        %2679 = vmatpush1.bf16.msra.mxu0 %v2644
        %2680 = vmatprep.subr.bf16.mxu0 0
        %2681 = vmatpush1.bf16.msra.mxu0 %v2643
        %2682 = vmatprep.subr.bf16.mxu0 0
        %2683 = vmatpush1.bf16.msra.mxu0 %v2642
        %2684 = vmatprep.subr.bf16.mxu0 0
        %2685 = vmatpush1.bf16.msra.mxu0 %v2641
        %2686 = vmatprep.subr.bf16.mxu0 0
        %2687 = vmatpush1.bf16.msra.mxu0 %v2640
        %2688 = vmatprep.subr.bf16.mxu0 0
        %2689 = vmatpush2.bf16.msra.mxu0 %v2655
        %2690 = vmatprep.subr.bf16.mxu0 0
        %2691 = vmatpush2.bf16.msra.mxu0 %v2654
        %2692 = vmatprep.subr.bf16.mxu0 0
        %2693 = vmatpush2.bf16.msra.mxu0 %v2653
        %2694 = vmatprep.subr.bf16.mxu0 0
        %2695 = vmatpush2.bf16.msra.mxu0 %v2652
        %2696 = vmatprep.subr.bf16.mxu0 0
        %2697 = vmatpush2.bf16.msra.mxu0 %v2651
        %2698 = vmatprep.subr.bf16.mxu0 0
        %2699 = vmatpush2.bf16.msra.mxu0 %v2650
        %2700 = vmatprep.subr.bf16.mxu0 0
        %2701 = vmatpush2.bf16.msra.mxu0 %v2649
        %2702 = vmatprep.subr.bf16.mxu0 0
        %2703 = vmatpush2.bf16.msra.mxu0 %v2648
        %2704 = vmatprep.mubr.bf16.mxu0 %v2536
        %2705 = vmatmul.mubr.bf16.gmra.mxu0 %v2535
        %v2706 = vpop.f32.mrf.mxu0
        %v2707 = vadd.f32 %v2574, %v2706
        %v2708 = vpop.f32.mrf.mxu0
        %v2709 = vpop.f32.mrf.mxu0
        %v2710 = vadd.f32 %v2574, %v2709
        %v2711 = vpop.f32.mrf.mxu0
        %2712 = vdwg.mxu0
        %v2713 = vadd.f32 %v2345, %v2707
        %v2714 = vadd.f32 %v2346, %v2710
        %v2715 = vld [vmem:[%s941] sm:$0x1]
        %v2716 = vld [vmem:[%s944] sm:$0x1]
        %2717 = vadd.xlane.f32.xlu0 %v2713
        %v2718 = vpop.xlane.xlu0 %2717
        %2719 = vadd.xlane.f32.xlu0 %v2714
        %v2720 = vpop.xlane.xlu0 %2719
        %v2721 = vmul.f32 %v2718, %v2312
        %v2722 = vmul.f32 %v2720, %v2312
        %v2723 = vsub.f32 %v2713, %v2721
        %v2724 = vsub.f32 %v2714, %v2722
        %v2725 = vmul.f32 %v2723, %v2723
        %v2726 = vmul.f32 %v2724, %v2724
        %2727 = vadd.xlane.f32.xlu0 %v2725
        %v2728 = vpop.xlane.xlu0 %2727
        %2729 = vadd.xlane.f32.xlu0 %v2726
        %v2730 = vpop.xlane.xlu0 %2729
        %v2731 = vmul.f32 %v2728, %v2312
        %v2732 = vmul.f32 %v2730, %v2312
        %v2733 = vadd.f32 %v2731, 1e-12
        %v2734 = vadd.f32 %v2732, 1e-12
        %v2735 = vrsqrt.pop %v2733
        %v2736 = vrsqrt.pop %v2734
        %v2737 = vmul.f32 %v2723, %v2735
        %v2738 = vmul.f32 %v2724, %v2736
        %v2740 = vlaneseq
        %v2741 = vshrl.u32 %v2740, 7
        %v2742 = vsub.s32 0, %v2741
        %v2743 = vrot.slane %v2715, %v2742
        %v2745 = vmul.f32 %v2737, %v2743
        %v2746 = vmul.f32 %v2738, %v2743
        %v2748 = vlaneseq
        %v2749 = vshrl.u32 %v2748, 7
        %v2750 = vsub.s32 0, %v2749
        %v2751 = vrot.slane %v2716, %v2750
        %v2753 = vadd.f32 %v2745, %v2751
        %v2754 = vadd.f32 %v2746, %v2751
        %2755 = vst [vmem:[#allocation2] sm:$0xff] %v2753
        %2756 = vst [vmem:[#allocation2 + $0x8] sm:$0xff] %v2754
        %p2757 = scmp.eq.s32.totalorder %s35, 1
        // Predicated region
        $region145: #{tpu_custom_call.1} parent=99 // pred_check
          %p2758 = pneg %p2757
        $region146: #{tpu_custom_call.1} parent=99 // pred_check_branch
          %2760 = sbr.rel (%p2758) target = $region148
        $region147: #{tpu_custom_call.1} parent=99 // pred_region
          %v2761 = vpack.c.bf16 %v2753, %v2753
          %v2762 = vpack.c.bf16 %v2754, %v2754
          %v2763 = vld [vmem:[#allocation15] sm:$0xf]
          %v2764 = vld [vmem:[#allocation15 + $0x4] sm:$0xf]
          %v2765 = vld [vmem:[#allocation15 + $0x8] sm:$0xf]
          %v2766 = vld [vmem:[#allocation15 + $0xc] sm:$0xf]
          %v2767 = vld [vmem:[#allocation15 + $0x10] sm:$0xf]
          %v2768 = vld [vmem:[#allocation15 + $0x14] sm:$0xf]
          %v2769 = vld [vmem:[#allocation15 + $0x18] sm:$0xf]
          %v2770 = vld [vmem:[#allocation15 + $0x1c] sm:$0xf]
          %v2771 = vld [vmem:[#allocation15 + $0x20] sm:$0xf]
          %v2772 = vld [vmem:[#allocation15 + $0x24] sm:$0xf]
          %v2773 = vld [vmem:[#allocation15 + $0x28] sm:$0xf]
          %v2774 = vld [vmem:[#allocation15 + $0x2c] sm:$0xf]
          %v2775 = vld [vmem:[#allocation15 + $0x30] sm:$0xf]
          %v2776 = vld [vmem:[#allocation15 + $0x34] sm:$0xf]
          %v2777 = vld [vmem:[#allocation15 + $0x38] sm:$0xf]
          %v2778 = vld [vmem:[#allocation15 + $0x3c] sm:$0xf]
          %v2779 = vld [vmem:[%s17] sm:$0x1]
          %v2781 = vlaneseq
          %v2782 = vshrl.u32 %v2781, 7
          %v2783 = vsub.s32 0, %v2782
          %v2784 = vrot.slane %v2779, %v2783
          %v2788 = vunpack.c.l.b16 %v2761
          %v2789 = vunpack.c.l.b16 %v2762
          %v2790 = vrot.slane %v2789, 7
          %vm2791 = vcmask 1041409
          %v2792 = vsel %vm2791, %v2790, %v2788
          %v2793 = vpack.c.b16 %v2792, %v2792
          %v2811 = vunpack.c.l.b16 %v2763
          %v2812 = vunpack.c.l.b16 %v2764
          %v2813 = vunpack.c.l.b16 %v2765
          %v2814 = vunpack.c.l.b16 %v2766
          %v2815 = vunpack.c.l.b16 %v2767
          %v2816 = vunpack.c.l.b16 %v2768
          %v2817 = vunpack.c.l.b16 %v2769
          %v2818 = vunpack.c.l.b16 %v2770
          %v2819 = vunpack.c.l.b16 %v2771
          %v2820 = vunpack.c.l.b16 %v2772
          %v2821 = vunpack.c.l.b16 %v2773
          %v2822 = vunpack.c.l.b16 %v2774
          %v2823 = vunpack.c.l.b16 %v2775
          %v2824 = vunpack.c.l.b16 %v2776
          %v2825 = vunpack.c.l.b16 %v2777
          %v2826 = vunpack.c.l.b16 %v2778
          %v2827 = vpack.c.b16 %v2812, %v2811
          %v2828 = vpack.c.b16 %v2814, %v2813
          %v2829 = vpack.c.b16 %v2816, %v2815
          %v2830 = vpack.c.b16 %v2818, %v2817
          %v2831 = vpack.c.b16 %v2820, %v2819
          %v2832 = vpack.c.b16 %v2822, %v2821
          %v2833 = vpack.c.b16 %v2824, %v2823
          %v2834 = vpack.c.b16 %v2826, %v2825
          %2843 = vmatprep.subr.bf16.mxu0 0
          %2844 = vmatpush1.bf16.msra.mxu0 %v2834
          %2845 = vmatprep.subr.bf16.mxu0 0
          %2846 = vmatpush1.bf16.msra.mxu0 %v2833
          %2847 = vmatprep.subr.bf16.mxu0 0
          %2848 = vmatpush1.bf16.msra.mxu0 %v2832
          %2849 = vmatprep.subr.bf16.mxu0 0
          %2850 = vmatpush1.bf16.msra.mxu0 %v2831
          %2851 = vmatprep.subr.bf16.mxu0 0
          %2852 = vmatpush1.bf16.msra.mxu0 %v2830
          %2853 = vmatprep.subr.bf16.mxu0 0
          %2854 = vmatpush1.bf16.msra.mxu0 %v2829
          %2855 = vmatprep.subr.bf16.mxu0 0
          %2856 = vmatpush1.bf16.msra.mxu0 %v2828
          %2857 = vmatprep.subr.bf16.mxu0 0
          %2858 = vmatpush1.bf16.msra.mxu0 %v2827
          %2859 = vmatprep.subr.bf16.mxu0 0
          %2860 = vmatpush2.bf16.msra.mxu0 0
          %2861 = vmatprep.subr.bf16.mxu0 0
          %2862 = vmatpush2.bf16.msra.mxu0 0
          %2863 = vmatprep.subr.bf16.mxu0 0
          %2864 = vmatpush2.bf16.msra.mxu0 0
          %2865 = vmatprep.subr.bf16.mxu0 0
          %2866 = vmatpush2.bf16.msra.mxu0 0
          %2867 = vmatprep.subr.bf16.mxu0 0
          %2868 = vmatpush2.bf16.msra.mxu0 0
          %2869 = vmatprep.subr.bf16.mxu0 0
          %2870 = vmatpush2.bf16.msra.mxu0 0
          %2871 = vmatprep.subr.bf16.mxu0 0
          %2872 = vmatpush2.bf16.msra.mxu0 0
          %2873 = vmatprep.subr.bf16.mxu0 0
          %2874 = vmatpush2.bf16.msra.mxu0 0
          %2875 = vmatprep.mubr.bf16.mxu0 0
          %2876 = vmatmul.mubr.bf16.gmra.mxu0 %v2793
          %v2877 = vpop.f32.mrf.mxu0
          %v2878 = vadd.f32 %v2784, %v2877
          %v2879 = vpop.f32.mrf.mxu0
          %v2880 = vpop.f32.mrf.mxu0
          %v2881 = vpop.f32.mrf.mxu0
          %2882 = vdwg.mxu0
          %v2883 = vmax.f32 %v2878, 0.0
          %v2884 = vpack.c.bf16 %v2883, %v2883
          %v2885 = vld [vmem:[#allocation16] sm:$0xf]
          %v2886 = vld [vmem:[#allocation16 + $0x4] sm:$0xf]
          %v2887 = vld [vmem:[#allocation16 + $0x8] sm:$0xf]
          %v2888 = vld [vmem:[#allocation16 + $0xc] sm:$0xf]
          %v2889 = vld [vmem:[#allocation16 + $0x10] sm:$0xf]
          %v2890 = vld [vmem:[#allocation16 + $0x14] sm:$0xf]
          %v2891 = vld [vmem:[#allocation16 + $0x18] sm:$0xf]
          %v2892 = vld [vmem:[#allocation16 + $0x1c] sm:$0xf]
          %v2893 = vld [vmem:[#allocation16 + $0x20] sm:$0xf]
          %v2894 = vld [vmem:[#allocation16 + $0x24] sm:$0xf]
          %v2895 = vld [vmem:[#allocation16 + $0x28] sm:$0xf]
          %v2896 = vld [vmem:[#allocation16 + $0x2c] sm:$0xf]
          %v2897 = vld [vmem:[#allocation16 + $0x30] sm:$0xf]
          %v2898 = vld [vmem:[#allocation16 + $0x34] sm:$0xf]
          %v2899 = vld [vmem:[#allocation16 + $0x38] sm:$0xf]
          %v2900 = vld [vmem:[#allocation16 + $0x3c] sm:$0xf]
          %v2901 = vld [vmem:[%s19] sm:$0x1]
          %v2903 = vlaneseq
          %v2904 = vshrl.u32 %v2903, 7
          %v2905 = vsub.s32 0, %v2904
          %v2906 = vrot.slane %v2901, %v2905
          %v2924 = vunpack.c.l.b16 %v2885
          %v2925 = vunpack.c.l.b16 %v2886
          %v2926 = vunpack.c.l.b16 %v2887
          %v2927 = vunpack.c.l.b16 %v2888
          %v2928 = vunpack.c.l.b16 %v2889
          %v2929 = vunpack.c.l.b16 %v2890
          %v2930 = vunpack.c.l.b16 %v2891
          %v2931 = vunpack.c.l.b16 %v2892
          %v2932 = vunpack.c.l.b16 %v2893
          %v2933 = vunpack.c.l.b16 %v2894
          %v2934 = vunpack.c.l.b16 %v2895
          %v2935 = vunpack.c.l.b16 %v2896
          %v2936 = vunpack.c.l.b16 %v2897
          %v2937 = vunpack.c.l.b16 %v2898
          %v2938 = vunpack.c.l.b16 %v2899
          %v2939 = vunpack.c.l.b16 %v2900
          %v2940 = vpack.c.b16 %v2925, %v2924
          %v2941 = vpack.c.b16 %v2927, %v2926
          %v2942 = vpack.c.b16 %v2929, %v2928
          %v2943 = vpack.c.b16 %v2931, %v2930
          %v2944 = vpack.c.b16 %v2933, %v2932
          %v2945 = vpack.c.b16 %v2935, %v2934
          %v2946 = vpack.c.b16 %v2937, %v2936
          %v2947 = vpack.c.b16 %v2939, %v2938
          %2956 = vmatprep.subr.bf16.mxu0 0
          %2957 = vmatpush1.bf16.msra.mxu0 %v2947
          %2958 = vmatprep.subr.bf16.mxu0 0
          %2959 = vmatpush1.bf16.msra.mxu0 %v2946
          %2960 = vmatprep.subr.bf16.mxu0 0
          %2961 = vmatpush1.bf16.msra.mxu0 %v2945
          %2962 = vmatprep.subr.bf16.mxu0 0
          %2963 = vmatpush1.bf16.msra.mxu0 %v2944
          %2964 = vmatprep.subr.bf16.mxu0 0
          %2965 = vmatpush1.bf16.msra.mxu0 %v2943
          %2966 = vmatprep.subr.bf16.mxu0 0
          %2967 = vmatpush1.bf16.msra.mxu0 %v2942
          %2968 = vmatprep.subr.bf16.mxu0 0
          %2969 = vmatpush1.bf16.msra.mxu0 %v2941
          %2970 = vmatprep.subr.bf16.mxu0 0
          %2971 = vmatpush1.bf16.msra.mxu0 %v2940
          %2972 = vmatprep.subr.bf16.mxu0 0
          %2973 = vmatpush2.bf16.msra.mxu0 0
          %2974 = vmatprep.subr.bf16.mxu0 0
          %2975 = vmatpush2.bf16.msra.mxu0 0
          %2976 = vmatprep.subr.bf16.mxu0 0
          %2977 = vmatpush2.bf16.msra.mxu0 0
          %2978 = vmatprep.subr.bf16.mxu0 0
          %2979 = vmatpush2.bf16.msra.mxu0 0
          %2980 = vmatprep.subr.bf16.mxu0 0
          %2981 = vmatpush2.bf16.msra.mxu0 0
          %2982 = vmatprep.subr.bf16.mxu0 0
          %2983 = vmatpush2.bf16.msra.mxu0 0
          %2984 = vmatprep.subr.bf16.mxu0 0
          %2985 = vmatpush2.bf16.msra.mxu0 0
          %2986 = vmatprep.subr.bf16.mxu0 0
          %2987 = vmatpush2.bf16.msra.mxu0 0
          %2988 = vmatprep.mubr.bf16.mxu0 0
          %2989 = vmatmul.mubr.bf16.gmra.mxu0 %v2884
          %v2990 = vpop.f32.mrf.mxu0
          %v2991 = vadd.f32 %v2906, %v2990
          %v2992 = vpop.f32.mrf.mxu0
          %v2993 = vpop.f32.mrf.mxu0
          %v2994 = vpop.f32.mrf.mxu0
          %2995 = vdwg.mxu0
          %2996 = vst [vmem:[#allocation17] sm:$0x3] %v2991
        $region148: #{tpu_custom_call.1} parent=99 // pred_fallthru
          _
        // Predicated region
        $region149: #{tpu_custom_call.1} parent=99 // pred_check
          %p2997 = pneg %p528
        $region150: #{tpu_custom_call.1} parent=99 // pred_check_branch
          %2999 = sbr.rel (%p2997) target = $region152
        $region151: #{tpu_custom_call.1} parent=99 // pred_region
          %s3001 = ssub.s32 32, 32
          %3002 = vsyncadd [#allocation5], %s3001
          %s3004 = sshll.u32 [#allocation17], 4
          %s3005 = int_to_ptr.vmem [resolvable:$true] %s3004
          %3007 = dma.vmem_to_hbm [thread:$0]  %s3005, 32, %s20, [#allocation5]
        $region152: #{tpu_custom_call.1} parent=99 // pred_fallthru
          _
        // Predicated region
        $region153: #{tpu_custom_call.1} parent=99 // pred_check
          %p3008 = pneg %p528
        $region154: #{tpu_custom_call.1} parent=99 // pred_check_branch
          %3010 = sbr.rel (%p3008) target = $region156
        $region155: #{tpu_custom_call.1} parent=99 // pred_region
          %3011 = dma.done [#allocation5], 32
        $region156: #{tpu_custom_call.1} parent=99 // pred_fallthru
          _
      $region100: #{tpu_custom_call.1} parent=5 // pred_fallthru
        _
      %p3012 = scmp.le.s32.totalorder 2, %s30
      // Predicated region
      $region157: #{tpu_custom_call.1} parent=5 // pred_check
        %p3013 = pneg %p3012
      $region158: #{tpu_custom_call.1} parent=5 // pred_check_branch
        %3015 = sbr.rel (%p3013) target = $region160
      $region159: #{tpu_custom_call.1} parent=5 // pred_region
        %s3016 = ssub.s32 %s30, 2
      $region160: #{tpu_custom_call.1} parent=5 // pred_fallthru
        _
    $region6: #{tpu_custom_call.1} parent=1 // loop_footer
      %s34 = sadd.s32 1, %s30
    $region7: #{tpu_custom_call.1} parent=1 // loop_footer_branch
      %29 = sbr.rel target = $region3
    $region8: #{tpu_custom_call.1} parent=1 // loop_exit
      _
    %3017 = vsyncpa [#allocation4], 1
    %s3018 = scalar_lea.sflag [#allocation4], 1
    %3019 = vsyncpa %s3018, 1
    %3020 = vsyncpa [#allocation7], 1
    %3021 = vsyncpa [#allocation10], 1
    %3022 = vsyncpa [#allocation5], 1
    %s3023 = scalar_lea.sflag [#allocation5], 1
    %3024 = vsyncpa %s3023, 1

</llo_original>
